<compile_context>
chip_gen: v6e
topology: v6e:2x2x1
jax: 0.10.0
libtpu: 0.0.40
codegen_flags: <defaults>
</compile_context>

<pallas_src>
import math

import jax
import jax.numpy as jnp
from jax.experimental import pallas as pl
from jax.experimental.pallas import tpu as pltpu


# ----------------------------------------------------------------------------
# Kernel
# ----------------------------------------------------------------------------
def cmlp_kernel(
    x_ref,
    w1, b1, w2, b2, w3, b3, w4, b4, w5, b5, w6, b6,
    w_heads, b_heads,
    o_ref,
):
    def lin(h, w_r, b_r):
        # bf16 x bf16 MXU matmul with f32 accumulation; f32 bias add.
        return jnp.dot(h.astype(w_r.dtype), w_r[...],
                       preferred_element_type=jnp.float32) + b_r[...]

    def lin_lrelu(h, w_r, b_r):
        y = lin(h, w_r, b_r)
        # LeakyReLU(0.2): max(y, 0.2*y) == where(y > 0, y, 0.2*y) for slope < 1.
        return jnp.maximum(y, 0.2 * y)

    h = x_ref[...].astype(jnp.float32)
    h = lin_lrelu(h, w1, b1)   # n_parameters -> 64
    h = lin_lrelu(h, w2, b2)   # 64   -> 128
    h = lin_lrelu(h, w3, b3)   # 128  -> 256
    h = lin_lrelu(h, w4, b4)   # 256  -> 512
    h = lin_lrelu(h, w5, b5)   # 512  -> 1024
    h = lin_lrelu(h, w6, b6)   # 1024 -> 4*profile_len (LeakyReLU applied, per nn.Sequential)

    # Fused heads: block-diagonal [4P, 4P] weight, single lane-dense [B, 4P] output.
    o_ref[...] = lin(h, w_heads, b_heads).astype(o_ref.dtype)


# ----------------------------------------------------------------------------
# Parameter packing (f32 "torch" params -> kernel params: bf16 weights, fused heads)
# ----------------------------------------------------------------------------
def pack_params(params):
    P = params["wh"].shape[0]

    packed = {}
    for i in range(1, 7):
        packed[f"w{i}"] = params[f"w{i}"].astype(jnp.bfloat16)
        packed[f"b{i}"] = params[f"b{i}"].astype(jnp.float32)

    # Block-diagonal fused head weight [4P, 4P] and concatenated bias [1, 4P].
    w_heads = jnp.zeros((4 * P, 4 * P), jnp.float32)
    for j, name in enumerate(("h", "t", "he2", "he3")):
        w_heads = w_heads.at[j * P:(j + 1) * P, j * P:(j + 1) * P].set(
            params[f"w{name}"])
    packed["w_heads"] = w_heads.astype(jnp.bfloat16)
    packed["b_heads"] = jnp.concatenate(
        [params[f"b{name}"] for name in ("h", "t", "he2", "he3")], axis=1
    ).astype(jnp.float32)
    packed["profile_len"] = P
    return packed


# ----------------------------------------------------------------------------
# Wrapper
# ----------------------------------------------------------------------------
def _round_up(x, m):
    return ((x + m - 1) // m) * m


def cmlp_forward(x, packed, *, tile_b=256):
    """x: [B, n_parameters] float32.  Returns 4 arrays of shape [B, profile_len]."""
    B, n_params = x.shape
    P = int(packed["profile_len"])
    out_dim = 4 * P

    # Batch tile: multiple of 8 sublanes, capped at tile_b.
    tb = min(tile_b, _round_up(B, 8))
    B_pad = _round_up(B, tb)
    if B_pad != B:
        x = jnp.pad(x, ((0, B_pad - B), (0, 0)))
    num_tiles = B_pad // tb

    layer_ws = [packed[f"w{i}"] for i in range(1, 7)] + [packed["w_heads"]]
    layer_bs = [packed[f"b{i}"] for i in range(1, 7)] + [packed["b_heads"]]

    flat_inputs = [x]
    for w, b in zip(layer_ws, layer_bs):
        flat_inputs += [w, b]

    def _const_spec(shape):
        # Weights/biases: same block every grid step -> DMA'd once, VMEM resident.
        return pl.BlockSpec(shape, lambda i: (0, 0))

    in_specs = [pl.BlockSpec((tb, n_params), lambda i: (i, 0))]
    for w, b in zip(layer_ws, layer_bs):
        in_specs.append(_const_spec(w.shape))
        in_specs.append(_const_spec(b.shape))

    out_specs = pl.BlockSpec((tb, out_dim), lambda i: (i, 0))
    out_shape = jax.ShapeDtypeStruct((B_pad, out_dim), jnp.float32)

    # Advisory cost hint for XLA's scheduler.
    flops = 2 * B_pad * sum(int(w.shape[0]) * int(w.shape[1]) for w in layer_ws)
    bytes_accessed = (
        sum(int(a.size) * a.dtype.itemsize for a in layer_ws + layer_bs)
        + int(x.size) * x.dtype.itemsize
        + B_pad * out_dim * 4
    )
    cost = pl.CostEstimate(flops=flops, transcendentals=0,
                           bytes_accessed=bytes_accessed)

    out = pl.pallas_call(
        cmlp_kernel,
        out_shape=out_shape,
        grid_spec=pltpu.PrefetchScalarGridSpec(
            num_scalar_prefetch=0,
            grid=(num_tiles,),
            in_specs=in_specs,
            out_specs=out_specs,
        ),
        compiler_params=pltpu.CompilerParams(
            dimension_semantics=("parallel",),
        ),
        cost_estimate=cost,
    )(*flat_inputs)

    out = out[:B]
    return (out[:, 0 * P:1 * P], out[:, 1 * P:2 * P],
            out[:, 2 * P:3 * P], out[:, 3 * P:4 * P])


# ----------------------------------------------------------------------------
# Init + reference
# ----------------------------------------------------------------------------
def init_params(key, n_parameters, profile_len):
    """Deterministic init mimicking torch.nn.Linear default (U[-1/sqrt(fan_in), ..])."""
    dims = [n_parameters, 64, 128, 256, 512, 1024, 4 * profile_len]
    params = {}
    keys = jax.random.split(key, 2 * (len(dims) - 1) + 8)
    ki = 0

    def linear(fan_in, fan_out):
        nonlocal ki
        bound = 1.0 / math.sqrt(fan_in)
        w = jax.random.uniform(keys[ki], (fan_in, fan_out), jnp.float32, -bound, bound)
        b = jax.random.uniform(keys[ki + 1], (1, fan_out), jnp.float32, -bound, bound)
        ki += 2
        return w, b

    for i in range(len(dims) - 1):
        w, b = linear(dims[i], dims[i + 1])
        params[f"w{i + 1}"] = w
        params[f"b{i + 1}"] = b

    for name in ("h", "t", "he2", "he3"):
        w, b = linear(profile_len, profile_len)
        params[f"w{name}"] = w
        params[f"b{name}"] = b
    return params


def cmlp_reference(x, params):
    """Pure-JAX reference mirroring the kernel's bf16 weight/activation rounding."""
    def lrelu(v):
        return jnp.maximum(v, 0.2 * v)

    def bf(a):
        return a.astype(jnp.bfloat16).astype(jnp.float32)

    h = x.astype(jnp.float32)
    for i in range(1, 7):
        h = lrelu(jnp.dot(bf(h), bf(params[f"w{i}"]),
                          preferred_element_type=jnp.float32) + params[f"b{i}"])
    P = params["wh"].shape[0]
    outs = []
    for j, name in enumerate(("h", "t", "he2", "he3")):
        chunk = bf(h[:, j * P:(j + 1) * P])
        outs.append(jnp.dot(chunk, bf(params[f"w{name}"]),
                            preferred_element_type=jnp.float32) + params[f"b{name}"])
    return tuple(outs)


# ----------------------------------------------------------------------------
# Demo / self-check
# ----------------------------------------------------------------------------
if __name__ == "__main__":
    # Small config: conf.n_parameters = 8, conf.profile_len = 32, batch = 8
    N_PARAMETERS = 8
    PROFILE_LEN = 32
    BATCH = 8

    key = jax.random.PRNGKey(0)
    k_params, k_x = jax.random.split(key)
    params = init_params(k_params, N_PARAMETERS, PROFILE_LEN)
    x = jax.random.normal(k_x, (BATCH, N_PARAMETERS), jnp.float32)

    packed = pack_params(params)
    outs = cmlp_forward(x, packed)
    outs = jax.block_until_ready(outs)

    refs = cmlp_reference(x, params)
    for o, r in zip(outs, refs):
        assert o.shape == (BATCH, PROFILE_LEN)
        if not jnp.allclose(o, r, atol=2e-2, rtol=2e-2):
            max_err = float(jnp.max(jnp.abs(o - r)))
            raise AssertionError(
                f"Pallas output does not match JAX reference (max |err| = {max_err})")

    print("KERNEL_OK")
</pallas_src>

<mosaic_0001>
module attributes {stable_mosaic.version = 11 : i64} {
  func.func @cmlp_kernel(%arg0: i32, %arg1: memref<8x8xf32, #tpu.memory_space<vmem>>, %arg2: memref<8x64xbf16, #tpu.memory_space<vmem>>, %arg3: memref<1x64xf32, #tpu.memory_space<vmem>>, %arg4: memref<64x128xbf16, #tpu.memory_space<vmem>>, %arg5: memref<1x128xf32, #tpu.memory_space<vmem>>, %arg6: memref<128x256xbf16, #tpu.memory_space<vmem>>, %arg7: memref<1x256xf32, #tpu.memory_space<vmem>>, %arg8: memref<256x512xbf16, #tpu.memory_space<vmem>>, %arg9: memref<1x512xf32, #tpu.memory_space<vmem>>, %arg10: memref<512x1024xbf16, #tpu.memory_space<vmem>>, %arg11: memref<1x1024xf32, #tpu.memory_space<vmem>>, %arg12: memref<1024x128xbf16, #tpu.memory_space<vmem>>, %arg13: memref<1x128xf32, #tpu.memory_space<vmem>>, %arg14: memref<128x128xbf16, #tpu.memory_space<vmem>>, %arg15: memref<1x128xf32, #tpu.memory_space<vmem>>, %arg16: memref<8x128xf32, #tpu.memory_space<vmem>>) attributes {dimension_semantics = [#tpu.dimension_semantics<parallel>], iteration_bounds = array<i64: 1>, scalar_prefetch = 0 : i64, scratch_operands = 0 : i64, tpu.core_type = #tpu.core_type<tc>, window_params = [{transform_indices = @transform_0, window_bounds = array<i64: 8, 8>}, {pipeline_mode = #tpu.pipeline_mode<synchronous>, transform_indices = @transform_1, window_bounds = array<i64: 8, 64>}, {pipeline_mode = #tpu.pipeline_mode<synchronous>, transform_indices = @transform_2, window_bounds = array<i64: 1, 64>}, {pipeline_mode = #tpu.pipeline_mode<synchronous>, transform_indices = @transform_3, window_bounds = array<i64: 64, 128>}, {pipeline_mode = #tpu.pipeline_mode<synchronous>, transform_indices = @transform_4, window_bounds = array<i64: 1, 128>}, {pipeline_mode = #tpu.pipeline_mode<synchronous>, transform_indices = @transform_5, window_bounds = array<i64: 128, 256>}, {pipeline_mode = #tpu.pipeline_mode<synchronous>, transform_indices = @transform_6, window_bounds = array<i64: 1, 256>}, {pipeline_mode = #tpu.pipeline_mode<synchronous>, transform_indices = @transform_7, window_bounds = array<i64: 256, 512>}, {pipeline_mode = #tpu.pipeline_mode<synchronous>, transform_indices = @transform_8, window_bounds = array<i64: 1, 512>}, {pipeline_mode = #tpu.pipeline_mode<synchronous>, transform_indices = @transform_9, window_bounds = array<i64: 512, 1024>}, {pipeline_mode = #tpu.pipeline_mode<synchronous>, transform_indices = @transform_10, window_bounds = array<i64: 1, 1024>}, {pipeline_mode = #tpu.pipeline_mode<synchronous>, transform_indices = @transform_11, window_bounds = array<i64: 1024, 128>}, {pipeline_mode = #tpu.pipeline_mode<synchronous>, transform_indices = @transform_12, window_bounds = array<i64: 1, 128>}, {pipeline_mode = #tpu.pipeline_mode<synchronous>, transform_indices = @transform_13, window_bounds = array<i64: 128, 128>}, {pipeline_mode = #tpu.pipeline_mode<synchronous>, transform_indices = @transform_14, window_bounds = array<i64: 1, 128>}, {transform_indices = @transform_15, window_bounds = array<i64: 8, 128>}]} {
    %c0 = arith.constant 0 : index
    %c0_0 = arith.constant 0 : index
    %0 = vector.load %arg1[%c0, %c0_0] : memref<8x8xf32, #tpu.memory_space<vmem>>, vector<8x8xf32>
    %1 = arith.truncf %0 : vector<8x8xf32> to vector<8x8xbf16>
    %c0_1 = arith.constant 0 : index
    %c0_2 = arith.constant 0 : index
    %2 = vector.load %arg2[%c0_1, %c0_2] : memref<8x64xbf16, #tpu.memory_space<vmem>>, vector<8x64xbf16>
    %cst = arith.constant dense<0.000000e+00> : vector<8x64xf32>
    %3 = tpu.matmul %1, %2, %cst {dimension_numbers = #tpu.dot_dimension_numbers<[1], [0], [0], [1], [0, 0, 1, 1], [], []>} : vector<8x8xbf16>, vector<8x64xbf16>, vector<8x64xf32> -> vector<8x64xf32>
    %c0_3 = arith.constant 0 : index
    %c0_4 = arith.constant 0 : index
    %4 = vector.load %arg3[%c0_3, %c0_4] : memref<1x64xf32, #tpu.memory_space<vmem>>, vector<1x64xf32>
    %5 = vector.broadcast %4 : vector<1x64xf32> to vector<8x64xf32>
    %6 = arith.addf %3, %5 : vector<8x64xf32>
    %cst_5 = arith.constant 2.000000e-01 : f32
    %7 = vector.broadcast %cst_5 : f32 to vector<8x64xf32>
    %8 = arith.mulf %7, %6 : vector<8x64xf32>
    %9 = arith.maximumf %6, %8 : vector<8x64xf32>
    %10 = arith.truncf %9 : vector<8x64xf32> to vector<8x64xbf16>
    %c0_6 = arith.constant 0 : index
    %c0_7 = arith.constant 0 : index
    %11 = vector.load %arg4[%c0_6, %c0_7] : memref<64x128xbf16, #tpu.memory_space<vmem>>, vector<64x128xbf16>
    %cst_8 = arith.constant dense<0.000000e+00> : vector<8x128xf32>
    %12 = tpu.matmul %10, %11, %cst_8 {dimension_numbers = #tpu.dot_dimension_numbers<[1], [0], [0], [1], [0, 0, 1, 1], [], []>} : vector<8x64xbf16>, vector<64x128xbf16>, vector<8x128xf32> -> vector<8x128xf32>
    %c0_9 = arith.constant 0 : index
    %c0_10 = arith.constant 0 : index
    %13 = vector.load %arg5[%c0_9, %c0_10] : memref<1x128xf32, #tpu.memory_space<vmem>>, vector<1x128xf32>
    %14 = vector.broadcast %13 : vector<1x128xf32> to vector<8x128xf32>
    %15 = arith.addf %12, %14 : vector<8x128xf32>
    %cst_11 = arith.constant 2.000000e-01 : f32
    %16 = vector.broadcast %cst_11 : f32 to vector<8x128xf32>
    %17 = arith.mulf %16, %15 : vector<8x128xf32>
    %18 = arith.maximumf %15, %17 : vector<8x128xf32>
    %19 = arith.truncf %18 : vector<8x128xf32> to vector<8x128xbf16>
    %c0_12 = arith.constant 0 : index
    %c0_13 = arith.constant 0 : index
    %20 = vector.load %arg6[%c0_12, %c0_13] : memref<128x256xbf16, #tpu.memory_space<vmem>>, vector<128x256xbf16>
    %cst_14 = arith.constant dense<0.000000e+00> : vector<8x256xf32>
    %21 = tpu.matmul %19, %20, %cst_14 {dimension_numbers = #tpu.dot_dimension_numbers<[1], [0], [0], [1], [0, 0, 1, 1], [], []>} : vector<8x128xbf16>, vector<128x256xbf16>, vector<8x256xf32> -> vector<8x256xf32>
    %c0_15 = arith.constant 0 : index
    %c0_16 = arith.constant 0 : index
    %22 = vector.load %arg7[%c0_15, %c0_16] : memref<1x256xf32, #tpu.memory_space<vmem>>, vector<1x256xf32>
    %23 = vector.broadcast %22 : vector<1x256xf32> to vector<8x256xf32>
    %24 = arith.addf %21, %23 : vector<8x256xf32>
    %cst_17 = arith.constant 2.000000e-01 : f32
    %25 = vector.broadcast %cst_17 : f32 to vector<8x256xf32>
    %26 = arith.mulf %25, %24 : vector<8x256xf32>
    %27 = arith.maximumf %24, %26 : vector<8x256xf32>
    %28 = arith.truncf %27 : vector<8x256xf32> to vector<8x256xbf16>
    %c0_18 = arith.constant 0 : index
    %c0_19 = arith.constant 0 : index
    %29 = vector.load %arg8[%c0_18, %c0_19] : memref<256x512xbf16, #tpu.memory_space<vmem>>, vector<256x512xbf16>
    %cst_20 = arith.constant dense<0.000000e+00> : vector<8x512xf32>
    %30 = tpu.matmul %28, %29, %cst_20 {dimension_numbers = #tpu.dot_dimension_numbers<[1], [0], [0], [1], [0, 0, 1, 1], [], []>} : vector<8x256xbf16>, vector<256x512xbf16>, vector<8x512xf32> -> vector<8x512xf32>
    %c0_21 = arith.constant 0 : index
    %c0_22 = arith.constant 0 : index
    %31 = vector.load %arg9[%c0_21, %c0_22] : memref<1x512xf32, #tpu.memory_space<vmem>>, vector<1x512xf32>
    %32 = vector.broadcast %31 : vector<1x512xf32> to vector<8x512xf32>
    %33 = arith.addf %30, %32 : vector<8x512xf32>
    %cst_23 = arith.constant 2.000000e-01 : f32
    %34 = vector.broadcast %cst_23 : f32 to vector<8x512xf32>
    %35 = arith.mulf %34, %33 : vector<8x512xf32>
    %36 = arith.maximumf %33, %35 : vector<8x512xf32>
    %37 = arith.truncf %36 : vector<8x512xf32> to vector<8x512xbf16>
    %c0_24 = arith.constant 0 : index
    %c0_25 = arith.constant 0 : index
    %38 = vector.load %arg10[%c0_24, %c0_25] : memref<512x1024xbf16, #tpu.memory_space<vmem>>, vector<512x1024xbf16>
    %cst_26 = arith.constant dense<0.000000e+00> : vector<8x1024xf32>
    %39 = tpu.matmul %37, %38, %cst_26 {dimension_numbers = #tpu.dot_dimension_numbers<[1], [0], [0], [1], [0, 0, 1, 1], [], []>} : vector<8x512xbf16>, vector<512x1024xbf16>, vector<8x1024xf32> -> vector<8x1024xf32>
    %c0_27 = arith.constant 0 : index
    %c0_28 = arith.constant 0 : index
    %40 = vector.load %arg11[%c0_27, %c0_28] : memref<1x1024xf32, #tpu.memory_space<vmem>>, vector<1x1024xf32>
    %41 = vector.broadcast %40 : vector<1x1024xf32> to vector<8x1024xf32>
    %42 = arith.addf %39, %41 : vector<8x1024xf32>
    %cst_29 = arith.constant 2.000000e-01 : f32
    %43 = vector.broadcast %cst_29 : f32 to vector<8x1024xf32>
    %44 = arith.mulf %43, %42 : vector<8x1024xf32>
    %45 = arith.maximumf %42, %44 : vector<8x1024xf32>
    %46 = arith.truncf %45 : vector<8x1024xf32> to vector<8x1024xbf16>
    %c0_30 = arith.constant 0 : index
    %c0_31 = arith.constant 0 : index
    %47 = vector.load %arg12[%c0_30, %c0_31] : memref<1024x128xbf16, #tpu.memory_space<vmem>>, vector<1024x128xbf16>
    %cst_32 = arith.constant dense<0.000000e+00> : vector<8x128xf32>
    %48 = tpu.matmul %46, %47, %cst_32 {dimension_numbers = #tpu.dot_dimension_numbers<[1], [0], [0], [1], [0, 0, 1, 1], [], []>} : vector<8x1024xbf16>, vector<1024x128xbf16>, vector<8x128xf32> -> vector<8x128xf32>
    %c0_33 = arith.constant 0 : index
    %c0_34 = arith.constant 0 : index
    %49 = vector.load %arg13[%c0_33, %c0_34] : memref<1x128xf32, #tpu.memory_space<vmem>>, vector<1x128xf32>
    %50 = vector.broadcast %49 : vector<1x128xf32> to vector<8x128xf32>
    %51 = arith.addf %48, %50 : vector<8x128xf32>
    %cst_35 = arith.constant 2.000000e-01 : f32
    %52 = vector.broadcast %cst_35 : f32 to vector<8x128xf32>
    %53 = arith.mulf %52, %51 : vector<8x128xf32>
    %54 = arith.maximumf %51, %53 : vector<8x128xf32>
    %55 = arith.truncf %54 : vector<8x128xf32> to vector<8x128xbf16>
    %c0_36 = arith.constant 0 : index
    %c0_37 = arith.constant 0 : index
    %56 = vector.load %arg14[%c0_36, %c0_37] : memref<128x128xbf16, #tpu.memory_space<vmem>>, vector<128x128xbf16>
    %cst_38 = arith.constant dense<0.000000e+00> : vector<8x128xf32>
    %57 = tpu.matmul %55, %56, %cst_38 {dimension_numbers = #tpu.dot_dimension_numbers<[1], [0], [0], [1], [0, 0, 1, 1], [], []>} : vector<8x128xbf16>, vector<128x128xbf16>, vector<8x128xf32> -> vector<8x128xf32>
    %c0_39 = arith.constant 0 : index
    %c0_40 = arith.constant 0 : index
    %58 = vector.load %arg15[%c0_39, %c0_40] : memref<1x128xf32, #tpu.memory_space<vmem>>, vector<1x128xf32>
    %59 = vector.broadcast %58 : vector<1x128xf32> to vector<8x128xf32>
    %60 = arith.addf %57, %59 : vector<8x128xf32>
    %c0_41 = arith.constant 0 : index
    %c0_42 = arith.constant 0 : index
    %61 = vector.load %arg16[%c0_41, %c0_42] : memref<8x128xf32, #tpu.memory_space<vmem>>, vector<8x128xf32>
    tpu.vector_store %arg16[%c0_41, %c0_42], %60 {strides = array<i32>} : memref<8x128xf32, #tpu.memory_space<vmem>>, vector<8x128xf32>,
    return
  }
  func.func @transform_0(%arg0: i32) -> (i32, i32) {
    %c0_i32 = arith.constant 0 : i32
    %c0_i32_0 = arith.constant 0 : i32
    return %arg0, %c0_i32 : i32, i32
  }
  func.func @transform_1(%arg0: i32) -> (i32, i32) {
    %c0_i32 = arith.constant 0 : i32
    %c0_i32_0 = arith.constant 0 : i32
    %c0_i32_1 = arith.constant 0 : i32
    return %c0_i32, %c0_i32_0 : i32, i32
  }
  func.func @transform_2(%arg0: i32) -> (i32, i32) {
    %c0_i32 = arith.constant 0 : i32
    %c0_i32_0 = arith.constant 0 : i32
    %c0_i32_1 = arith.constant 0 : i32
    return %c0_i32, %c0_i32_0 : i32, i32
  }
  func.func @transform_3(%arg0: i32) -> (i32, i32) {
    %c0_i32 = arith.constant 0 : i32
    %c0_i32_0 = arith.constant 0 : i32
    %c0_i32_1 = arith.constant 0 : i32
    return %c0_i32, %c0_i32_0 : i32, i32
  }
  func.func @transform_4(%arg0: i32) -> (i32, i32) {
    %c0_i32 = arith.constant 0 : i32
    %c0_i32_0 = arith.constant 0 : i32
    %c0_i32_1 = arith.constant 0 : i32
    return %c0_i32, %c0_i32_0 : i32, i32
  }
  func.func @transform_5(%arg0: i32) -> (i32, i32) {
    %c0_i32 = arith.constant 0 : i32
    %c0_i32_0 = arith.constant 0 : i32
    %c0_i32_1 = arith.constant 0 : i32
    return %c0_i32, %c0_i32_0 : i32, i32
  }
  func.func @transform_6(%arg0: i32) -> (i32, i32) {
    %c0_i32 = arith.constant 0 : i32
    %c0_i32_0 = arith.constant 0 : i32
    %c0_i32_1 = arith.constant 0 : i32
    return %c0_i32, %c0_i32_0 : i32, i32
  }
  func.func @transform_7(%arg0: i32) -> (i32, i32) {
    %c0_i32 = arith.constant 0 : i32
    %c0_i32_0 = arith.constant 0 : i32
    %c0_i32_1 = arith.constant 0 : i32
    return %c0_i32, %c0_i32_0 : i32, i32
  }
  func.func @transform_8(%arg0: i32) -> (i32, i32) {
    %c0_i32 = arith.constant 0 : i32
    %c0_i32_0 = arith.constant 0 : i32
    %c0_i32_1 = arith.constant 0 : i32
    return %c0_i32, %c0_i32_0 : i32, i32
  }
  func.func @transform_9(%arg0: i32) -> (i32, i32) {
    %c0_i32 = arith.constant 0 : i32
    %c0_i32_0 = arith.constant 0 : i32
    %c0_i32_1 = arith.constant 0 : i32
    return %c0_i32, %c0_i32_0 : i32, i32
  }
  func.func @transform_10(%arg0: i32) -> (i32, i32) {
    %c0_i32 = arith.constant 0 : i32
    %c0_i32_0 = arith.constant 0 : i32
    %c0_i32_1 = arith.constant 0 : i32
    return %c0_i32, %c0_i32_0 : i32, i32
  }
  func.func @transform_11(%arg0: i32) -> (i32, i32) {
    %c0_i32 = arith.constant 0 : i32
    %c0_i32_0 = arith.constant 0 : i32
    %c0_i32_1 = arith.constant 0 : i32
    return %c0_i32, %c0_i32_0 : i32, i32
  }
  func.func @transform_12(%arg0: i32) -> (i32, i32) {
    %c0_i32 = arith.constant 0 : i32
    %c0_i32_0 = arith.constant 0 : i32
    %c0_i32_1 = arith.constant 0 : i32
    return %c0_i32, %c0_i32_0 : i32, i32
  }
  func.func @transform_13(%arg0: i32) -> (i32, i32) {
    %c0_i32 = arith.constant 0 : i32
    %c0_i32_0 = arith.constant 0 : i32
    %c0_i32_1 = arith.constant 0 : i32
    return %c0_i32, %c0_i32_0 : i32, i32
  }
  func.func @transform_14(%arg0: i32) -> (i32, i32) {
    %c0_i32 = arith.constant 0 : i32
    %c0_i32_0 = arith.constant 0 : i32
    %c0_i32_1 = arith.constant 0 : i32
    return %c0_i32, %c0_i32_0 : i32, i32
  }
  func.func @transform_15(%arg0: i32) -> (i32, i32) {
    %c0_i32 = arith.constant 0 : i32
    %c0_i32_0 = arith.constant 0 : i32
    return %arg0, %c0_i32 : i32, i32
  }
}

</mosaic_0001>

<llo_original>
// kernel: tpu_custom_call.1
$region0: #{tpu_custom_call.1}
  #allocation0 [shape = 'u32[]', space=smem, size = 0x4, offset = 0x4, fixed_abs, tag = 'smem constant byte address 0x4 - core index']
  #allocation1 [shape = 'u32[144,128]{1,0:T(1,128)}', space=vmem, size = 0x12000, scoped, tag = 'internal scratch']
  %s0 = inlined_call_operand.hbm [shape: f32[8,8], index: 0, kind: input, shape index: {}]
  %s1 = inlined_call_operand.hbm [shape: bf16[8,64], index: 1, kind: input, shape index: {}]
  %s2 = inlined_call_operand.vmem [shape: f32[1,64], index: 2, kind: input, shape index: {}]
  %s3 = inlined_call_operand.hbm [shape: bf16[64,128], index: 3, kind: input, shape index: {}]
  %s4 = inlined_call_operand.hbm [shape: f32[1,128], index: 4, kind: input, shape index: {}]
  %s5 = inlined_call_operand.hbm [shape: bf16[128,256], index: 5, kind: input, shape index: {}]
  %s6 = inlined_call_operand.vmem [shape: f32[1,256], index: 6, kind: input, shape index: {}]
  %s7 = inlined_call_operand.hbm [shape: bf16[256,512], index: 7, kind: input, shape index: {}]
  %s8 = inlined_call_operand.vmem [shape: f32[1,512], index: 8, kind: input, shape index: {}]
  %s9 = inlined_call_operand.hbm [shape: bf16[512,1024], index: 9, kind: input, shape index: {}]
  %s10 = inlined_call_operand.vmem [shape: f32[1,1024], index: 10, kind: input, shape index: {}]
  %s11 = inlined_call_operand.hbm [shape: bf16[1024,128], index: 11, kind: input, shape index: {}]
  %s12 = inlined_call_operand.vmem [shape: f32[1,128], index: 12, kind: input, shape index: {}]
  %s13 = inlined_call_operand.hbm [shape: bf16[128,128], index: 13, kind: input, shape index: {}]
  %s14 = inlined_call_operand.vmem [shape: f32[1,128], index: 14, kind: input, shape index: {}]
  %s15 = inlined_call_operand.hbm [shape: f32[8,128], index: 15, kind: output, shape index: {}]
  %s16 = sld [smem:[#allocation0]]
  $region106: #{tpu_custom_call.1} parent=0
    _
  %s18 = ssub.s32 1, %s16
  %s19 = scalar_select 0, %s18, %s16
  $region1: #{tpu_custom_call.1} parent=0
    #allocation2 [shape = 'u8[4096]{0}', space=vmem, size = 0x1000, scoped, tag = 'input window, operand 0, single buffered']
    #allocation3 [shape = 's32[1]{0}', space=sflag, size = 0x4, scoped, tag = 'scoped memory for tpu_custom_call.1']
    #allocation4 [shape = 's32[1]{0}', space=sflag, size = 0x4, scoped, tag = 'scoped memory for tpu_custom_call.1']
    #allocation5 [shape = 'u8[2048]{0}', space=vmem, size = 0x800, scoped, tag = 'input window, operand 1, single buffered']
    #allocation6 [shape = 's32[1]{0}', space=sflag, size = 0x4, scoped, tag = 'scoped memory for tpu_custom_call.1']
    #allocation7 [shape = 'u8[16384]{0}', space=vmem, size = 0x4000, scoped, tag = 'input window, operand 3, single buffered']
    #allocation8 [shape = 'u8[512]{0}', space=vmem, size = 0x400, scoped, tag = 'input window, operand 4, single buffered']
    #allocation9 [shape = 's32[1]{0}', space=sflag, size = 0x4, scoped, tag = 'scoped memory for tpu_custom_call.1']
    #allocation10 [shape = 'u8[65536]{0}', space=vmem, size = 0x10000, scoped, tag = 'input window, operand 5, single buffered']
    #allocation11 [shape = 'u8[262144]{0}', space=vmem, size = 0x40000, scoped, tag = 'input window, operand 7, single buffered']
    #allocation12 [shape = 's32[1]{0}', space=sflag, size = 0x4, scoped, tag = 'scoped memory for tpu_custom_call.1']
    #allocation13 [shape = 'u8[1048576]{0}', space=vmem, size = 0x100000, scoped, tag = 'input window, operand 9, single buffered']
    #allocation14 [shape = 'u8[262144]{0}', space=vmem, size = 0x40000, scoped, tag = 'input window, operand 11, single buffered']
    #allocation15 [shape = 's32[1]{0}', space=sflag, size = 0x4, scoped, tag = 'scoped memory for tpu_custom_call.1']
    #allocation16 [shape = 'u8[32768]{0}', space=vmem, size = 0x8000, scoped, tag = 'input window, operand 13, single buffered']
    #allocation17 [shape = 'u8[4096]{0}', space=vmem, size = 0x1000, scoped, tag = 'output window, operand 0, single buffered']
    %20 = vsyncpa [#allocation3], 0
    %21 = vsyncpa [#allocation6], 0
    %22 = vsyncpa [#allocation9], 0
    %23 = vsyncpa [#allocation12], 0
    %24 = vsyncpa [#allocation15], 0
    %25 = vsyncpa [#allocation4], 0
    // Predicated region
    $region2: #{tpu_custom_call.1} parent=1 // pred_check
      _
    $region3: #{tpu_custom_call.1} parent=1 // pred_check_branch
      %27 = sbr.rel (0) target = $region5
    $region4: #{tpu_custom_call.1} parent=1 // pred_region
      %s29 = ssub.s32 128, 128
      %30 = vsyncadd [#allocation3], %s29
      %s32 = sshll.u32 [#allocation2], 4
      %s33 = int_to_ptr.vmem [resolvable:$true] %s32
      %35 = dma.hbm_to_vmem [thread:$0]  %s0, 128, %s33, [#allocation3]
    $region5: #{tpu_custom_call.1} parent=1 // pred_fallthru
      _
    // Predicated region
    $region6: #{tpu_custom_call.1} parent=1 // pred_check
      _
    $region7: #{tpu_custom_call.1} parent=1 // pred_check_branch
      %37 = sbr.rel (0) target = $region9
    $region8: #{tpu_custom_call.1} parent=1 // pred_region
      %s39 = ssub.s32 64, 64
      %40 = vsyncadd [#allocation6], %s39
      %s42 = sshll.u32 [#allocation5], 4
      %s43 = int_to_ptr.vmem [resolvable:$true] %s42
      %45 = dma.hbm_to_vmem [thread:$0]  %s1, 64, %s43, [#allocation6]
    $region9: #{tpu_custom_call.1} parent=1 // pred_fallthru
      _
    // Predicated region
    $region10: #{tpu_custom_call.1} parent=1 // pred_check
      _
    $region11: #{tpu_custom_call.1} parent=1 // pred_check_branch
      %47 = sbr.rel (0) target = $region13
    $region12: #{tpu_custom_call.1} parent=1 // pred_region
      _
    $region13: #{tpu_custom_call.1} parent=1 // pred_fallthru
      _
    // Predicated region
    $region14: #{tpu_custom_call.1} parent=1 // pred_check
      _
    $region15: #{tpu_custom_call.1} parent=1 // pred_check_branch
      %49 = sbr.rel (0) target = $region17
    $region16: #{tpu_custom_call.1} parent=1 // pred_region
      %s51 = ssub.s32 512, 512
      %52 = vsyncadd [#allocation6], %s51
      %s53 = sshll.u32 [#allocation7], 4
      %s54 = int_to_ptr.vmem [resolvable:$true] %s53
      %59 = dma.hbm_to_vmem [thread:$0]  %s3, 512, %s54, [#allocation6], 64, 64, 4
    $region17: #{tpu_custom_call.1} parent=1 // pred_fallthru
      _
    // Predicated region
    $region18: #{tpu_custom_call.1} parent=1 // pred_check
      _
    $region19: #{tpu_custom_call.1} parent=1 // pred_check_branch
      %61 = sbr.rel (0) target = $region21
    $region20: #{tpu_custom_call.1} parent=1 // pred_region
      %s63 = ssub.s32 16, 16
      %64 = vsyncadd [#allocation9], %s63
      %s66 = sshll.u32 [#allocation8], 4
      %s67 = int_to_ptr.vmem [resolvable:$true] %s66
      %69 = dma.hbm_to_vmem [thread:$0]  %s4, 16, %s67, [#allocation9]
    $region21: #{tpu_custom_call.1} parent=1 // pred_fallthru
      _
    // Predicated region
    $region22: #{tpu_custom_call.1} parent=1 // pred_check
      _
    $region23: #{tpu_custom_call.1} parent=1 // pred_check_branch
      %71 = sbr.rel (0) target = $region25
    $region24: #{tpu_custom_call.1} parent=1 // pred_region
      %s73 = ssub.s32 2048, 2048
      %74 = vsyncadd [#allocation9], %s73
      %s75 = sshll.u32 [#allocation10], 4
      %s76 = int_to_ptr.vmem [resolvable:$true] %s75
      %81 = dma.hbm_to_vmem [thread:$0]  %s5, 2048, %s76, [#allocation9], 128, 128, 8
    $region25: #{tpu_custom_call.1} parent=1 // pred_fallthru
      _
    // Predicated region
    $region26: #{tpu_custom_call.1} parent=1 // pred_check
      _
    $region27: #{tpu_custom_call.1} parent=1 // pred_check_branch
      %83 = sbr.rel (0) target = $region29
    $region28: #{tpu_custom_call.1} parent=1 // pred_region
      _
    $region29: #{tpu_custom_call.1} parent=1 // pred_fallthru
      _
    // Predicated region
    $region30: #{tpu_custom_call.1} parent=1 // pred_check
      _
    $region31: #{tpu_custom_call.1} parent=1 // pred_check_branch
      %85 = sbr.rel (0) target = $region33
    $region32: #{tpu_custom_call.1} parent=1 // pred_region
      %s87 = ssub.s32 8192, 8192
      %88 = vsyncadd [#allocation12], %s87
      %s89 = sshll.u32 [#allocation11], 4
      %s90 = int_to_ptr.vmem [resolvable:$true] %s89
      %95 = dma.hbm_to_vmem [thread:$0]  %s7, 8192, %s90, [#allocation12], 256, 256, 16
    $region33: #{tpu_custom_call.1} parent=1 // pred_fallthru
      _
    // Predicated region
    $region34: #{tpu_custom_call.1} parent=1 // pred_check
      _
    $region35: #{tpu_custom_call.1} parent=1 // pred_check_branch
      %97 = sbr.rel (0) target = $region37
    $region36: #{tpu_custom_call.1} parent=1 // pred_region
      _
    $region37: #{tpu_custom_call.1} parent=1 // pred_fallthru
      _
    // Predicated region
    $region38: #{tpu_custom_call.1} parent=1 // pred_check
      _
    $region39: #{tpu_custom_call.1} parent=1 // pred_check_branch
      %99 = sbr.rel (0) target = $region41
    $region40: #{tpu_custom_call.1} parent=1 // pred_region
      %s101 = ssub.s32 32768, 32768
      %102 = vsyncadd [#allocation12], %s101
      %s103 = sshll.u32 [#allocation13], 4
      %s104 = int_to_ptr.vmem [resolvable:$true] %s103
      %109 = dma.hbm_to_vmem [thread:$0]  %s9, 32768, %s104, [#allocation12], 512, 512, 32
    $region41: #{tpu_custom_call.1} parent=1 // pred_fallthru
      _
    // Predicated region
    $region42: #{tpu_custom_call.1} parent=1 // pred_check
      _
    $region43: #{tpu_custom_call.1} parent=1 // pred_check_branch
      %111 = sbr.rel (0) target = $region45
    $region44: #{tpu_custom_call.1} parent=1 // pred_region
      _
    $region45: #{tpu_custom_call.1} parent=1 // pred_fallthru
      _
    // Predicated region
    $region46: #{tpu_custom_call.1} parent=1 // pred_check
      _
    $region47: #{tpu_custom_call.1} parent=1 // pred_check_branch
      %113 = sbr.rel (0) target = $region49
    $region48: #{tpu_custom_call.1} parent=1 // pred_region
      %s115 = ssub.s32 8192, 8192
      %116 = vsyncadd [#allocation15], %s115
      %s117 = sshll.u32 [#allocation14], 4
      %s118 = int_to_ptr.vmem [resolvable:$true] %s117
      %123 = dma.hbm_to_vmem [thread:$0]  %s11, 8192, %s118, [#allocation15], 64, 64, 4
    $region49: #{tpu_custom_call.1} parent=1 // pred_fallthru
      _
    // Predicated region
    $region50: #{tpu_custom_call.1} parent=1 // pred_check
      _
    $region51: #{tpu_custom_call.1} parent=1 // pred_check_branch
      %125 = sbr.rel (0) target = $region53
    $region52: #{tpu_custom_call.1} parent=1 // pred_region
      _
    $region53: #{tpu_custom_call.1} parent=1 // pred_fallthru
      _
    // Predicated region
    $region54: #{tpu_custom_call.1} parent=1 // pred_check
      _
    $region55: #{tpu_custom_call.1} parent=1 // pred_check_branch
      %127 = sbr.rel (0) target = $region57
    $region56: #{tpu_custom_call.1} parent=1 // pred_region
      %s129 = ssub.s32 1024, 1024
      %130 = vsyncadd [#allocation15], %s129
      %s131 = sshll.u32 [#allocation16], 4
      %s132 = int_to_ptr.vmem [resolvable:$true] %s131
      %137 = dma.hbm_to_vmem [thread:$0]  %s13, 1024, %s132, [#allocation15], 64, 64, 4
    $region57: #{tpu_custom_call.1} parent=1 // pred_fallthru
      _
    // Predicated region
    $region58: #{tpu_custom_call.1} parent=1 // pred_check
      _
    $region59: #{tpu_custom_call.1} parent=1 // pred_check_branch
      %139 = sbr.rel (0) target = $region61
    $region60: #{tpu_custom_call.1} parent=1 // pred_region
      _
    $region61: #{tpu_custom_call.1} parent=1 // pred_fallthru
      _
    // Predicated region
    $region62: #{tpu_custom_call.1} parent=1 // pred_check
      _
    $region63: #{tpu_custom_call.1} parent=1 // pred_check_branch
      %141 = sbr.rel (0) target = $region65
    $region64: #{tpu_custom_call.1} parent=1 // pred_region
      %142 = dma.done [#allocation3], 128
    $region65: #{tpu_custom_call.1} parent=1 // pred_fallthru
      _
    // Predicated region
    $region66: #{tpu_custom_call.1} parent=1 // pred_check
      _
    $region67: #{tpu_custom_call.1} parent=1 // pred_check_branch
      %144 = sbr.rel (0) target = $region69
    $region68: #{tpu_custom_call.1} parent=1 // pred_region
      %145 = dma.done [#allocation6], 64
    $region69: #{tpu_custom_call.1} parent=1 // pred_fallthru
      _
    // Predicated region
    $region70: #{tpu_custom_call.1} parent=1 // pred_check
      _
    $region71: #{tpu_custom_call.1} parent=1 // pred_check_branch
      %147 = sbr.rel (0) target = $region73
    $region72: #{tpu_custom_call.1} parent=1 // pred_region
      %148 = dma.done [#allocation6], 512
    $region73: #{tpu_custom_call.1} parent=1 // pred_fallthru
      _
    // Predicated region
    $region74: #{tpu_custom_call.1} parent=1 // pred_check
      _
    $region75: #{tpu_custom_call.1} parent=1 // pred_check_branch
      %150 = sbr.rel (0) target = $region77
    $region76: #{tpu_custom_call.1} parent=1 // pred_region
      %151 = dma.done [#allocation9], 16
    $region77: #{tpu_custom_call.1} parent=1 // pred_fallthru
      _
    // Predicated region
    $region78: #{tpu_custom_call.1} parent=1 // pred_check
      _
    $region79: #{tpu_custom_call.1} parent=1 // pred_check_branch
      %153 = sbr.rel (0) target = $region81
    $region80: #{tpu_custom_call.1} parent=1 // pred_region
      %154 = dma.done [#allocation9], 2048
    $region81: #{tpu_custom_call.1} parent=1 // pred_fallthru
      _
    // Predicated region
    $region82: #{tpu_custom_call.1} parent=1 // pred_check
      _
    $region83: #{tpu_custom_call.1} parent=1 // pred_check_branch
      %156 = sbr.rel (0) target = $region85
    $region84: #{tpu_custom_call.1} parent=1 // pred_region
      %157 = dma.done [#allocation12], 8192
    $region85: #{tpu_custom_call.1} parent=1 // pred_fallthru
      _
    // Predicated region
    $region86: #{tpu_custom_call.1} parent=1 // pred_check
      _
    $region87: #{tpu_custom_call.1} parent=1 // pred_check_branch
      %159 = sbr.rel (0) target = $region89
    $region88: #{tpu_custom_call.1} parent=1 // pred_region
      %160 = dma.done [#allocation12], 32768
    $region89: #{tpu_custom_call.1} parent=1 // pred_fallthru
      _
    // Predicated region
    $region90: #{tpu_custom_call.1} parent=1 // pred_check
      _
    $region91: #{tpu_custom_call.1} parent=1 // pred_check_branch
      %162 = sbr.rel (0) target = $region93
    $region92: #{tpu_custom_call.1} parent=1 // pred_region
      %163 = dma.done [#allocation15], 8192
    $region93: #{tpu_custom_call.1} parent=1 // pred_fallthru
      _
    // Predicated region
    $region94: #{tpu_custom_call.1} parent=1 // pred_check
      _
    $region95: #{tpu_custom_call.1} parent=1 // pred_check_branch
      %165 = sbr.rel (0) target = $region97
    $region96: #{tpu_custom_call.1} parent=1 // pred_region
      %166 = dma.done [#allocation15], 1024
    $region97: #{tpu_custom_call.1} parent=1 // pred_fallthru
      _
    %v168 = vld [vmem:[#allocation2] sm:$0xff]
    %v169 = vpack.c.bf16 %v168, %v168
    %v170 = vld [vmem:[#allocation5] sm:$0xf]
    %v171 = vld [vmem:[%s2] sm:$0x1]
    %v173 = vlaneseq
    %v174 = vshrl.u32 %v173, 7
    %v175 = vsub.s32 0, %v174
    %v176 = vrot.slane %v171, %v175
    %vm178 = vcmask 64512
    %v180 = vsel %vm178, %v169, 0
    %vm182 = vcmask 1043456
    %v184 = vsel %vm182, %v170, 0
    %186 = vmatprep.subr.bf16.mxu0 0
    %187 = vmatpush1.bf16.msra.mxu0 0
    %188 = vmatprep.subr.bf16.mxu0 0
    %189 = vmatpush1.bf16.msra.mxu0 0
    %190 = vmatprep.subr.bf16.mxu0 0
    %191 = vmatpush1.bf16.msra.mxu0 0
    %192 = vmatprep.subr.bf16.mxu0 0
    %193 = vmatpush1.bf16.msra.mxu0 0
    %194 = vmatprep.subr.bf16.mxu0 0
    %195 = vmatpush1.bf16.msra.mxu0 0
    %196 = vmatprep.subr.bf16.mxu0 0
    %197 = vmatpush1.bf16.msra.mxu0 0
    %198 = vmatprep.subr.bf16.mxu0 0
    %199 = vmatpush1.bf16.msra.mxu0 0
    %200 = vmatprep.subr.bf16.mxu0 0
    %201 = vmatpush1.bf16.msra.mxu0 %v184
    %202 = vmatprep.subr.bf16.mxu0 0
    %203 = vmatpush2.bf16.msra.mxu0 0
    %204 = vmatprep.subr.bf16.mxu0 0
    %205 = vmatpush2.bf16.msra.mxu0 0
    %206 = vmatprep.subr.bf16.mxu0 0
    %207 = vmatpush2.bf16.msra.mxu0 0
    %208 = vmatprep.subr.bf16.mxu0 0
    %209 = vmatpush2.bf16.msra.mxu0 0
    %210 = vmatprep.subr.bf16.mxu0 0
    %211 = vmatpush2.bf16.msra.mxu0 0
    %212 = vmatprep.subr.bf16.mxu0 0
    %213 = vmatpush2.bf16.msra.mxu0 0
    %214 = vmatprep.subr.bf16.mxu0 0
    %215 = vmatpush2.bf16.msra.mxu0 0
    %216 = vmatprep.subr.bf16.mxu0 0
    %217 = vmatpush2.bf16.msra.mxu0 0
    %218 = vmatprep.mubr.bf16.mxu0 0
    %219 = vmatmul.mubr.bf16.gmra.mxu0 %v180
    %v220 = vpop.f32.mrf.mxu0
    %v221 = vadd.f32 %v176, %v220
    %v222 = vpop.f32.mrf.mxu0
    %v223 = vpop.f32.mrf.mxu0
    %v224 = vpop.f32.mrf.mxu0
    %225 = vdwg.mxu0
    %v226 = vmul.f32 %v221, 0.2
    %v227 = vmax.f32 %v221, %v226
    %v228 = vpack.c.bf16 %v227, %v227
    %v229 = vld [vmem:[#allocation7] sm:$0xf]
    %v230 = vld [vmem:[#allocation7 + $0x4] sm:$0xf]
    %v231 = vld [vmem:[#allocation7 + $0x8] sm:$0xf]
    %v232 = vld [vmem:[#allocation7 + $0xc] sm:$0xf]
    %v233 = vld [vmem:[#allocation7 + $0x10] sm:$0xf]
    %v234 = vld [vmem:[#allocation7 + $0x14] sm:$0xf]
    %v235 = vld [vmem:[#allocation7 + $0x18] sm:$0xf]
    %v236 = vld [vmem:[#allocation7 + $0x1c] sm:$0xf]
    %v237 = vld [vmem:[#allocation8] sm:$0x1]
    %v239 = vlaneseq
    %v240 = vshrl.u32 %v239, 7
    %v241 = vsub.s32 0, %v240
    %v242 = vrot.slane %v237, %v241
    %v252 = vunpack.c.l.b16 %v229
    %v253 = vunpack.c.l.b16 %v230
    %v254 = vunpack.c.l.b16 %v231
    %v255 = vunpack.c.l.b16 %v232
    %v256 = vunpack.c.l.b16 %v233
    %v257 = vunpack.c.l.b16 %v234
    %v258 = vunpack.c.l.b16 %v235
    %v259 = vunpack.c.l.b16 %v236
    %v260 = vpack.c.b16 %v253, %v252
    %v261 = vpack.c.b16 %v255, %v254
    %v262 = vpack.c.b16 %v257, %v256
    %v263 = vpack.c.b16 %v259, %v258
    %vm268 = vcmask 523264
    %v270 = vsel %vm268, %v228, 0
    %272 = vmatprep.subr.bf16.mxu0 0
    %273 = vmatpush1.bf16.msra.mxu0 0
    %274 = vmatprep.subr.bf16.mxu0 0
    %275 = vmatpush1.bf16.msra.mxu0 0
    %276 = vmatprep.subr.bf16.mxu0 0
    %277 = vmatpush1.bf16.msra.mxu0 0
    %278 = vmatprep.subr.bf16.mxu0 0
    %279 = vmatpush1.bf16.msra.mxu0 0
    %280 = vmatprep.subr.bf16.mxu0 0
    %281 = vmatpush1.bf16.msra.mxu0 %v263
    %282 = vmatprep.subr.bf16.mxu0 0
    %283 = vmatpush1.bf16.msra.mxu0 %v262
    %284 = vmatprep.subr.bf16.mxu0 0
    %285 = vmatpush1.bf16.msra.mxu0 %v261
    %286 = vmatprep.subr.bf16.mxu0 0
    %287 = vmatpush1.bf16.msra.mxu0 %v260
    %288 = vmatprep.subr.bf16.mxu0 0
    %289 = vmatpush2.bf16.msra.mxu0 0
    %290 = vmatprep.subr.bf16.mxu0 0
    %291 = vmatpush2.bf16.msra.mxu0 0
    %292 = vmatprep.subr.bf16.mxu0 0
    %293 = vmatpush2.bf16.msra.mxu0 0
    %294 = vmatprep.subr.bf16.mxu0 0
    %295 = vmatpush2.bf16.msra.mxu0 0
    %296 = vmatprep.subr.bf16.mxu0 0
    %297 = vmatpush2.bf16.msra.mxu0 0
    %298 = vmatprep.subr.bf16.mxu0 0
    %299 = vmatpush2.bf16.msra.mxu0 0
    %300 = vmatprep.subr.bf16.mxu0 0
    %301 = vmatpush2.bf16.msra.mxu0 0
    %302 = vmatprep.subr.bf16.mxu0 0
    %303 = vmatpush2.bf16.msra.mxu0 0
    %304 = vmatprep.mubr.bf16.mxu0 0
    %305 = vmatmul.mubr.bf16.gmra.mxu0 %v270
    %v306 = vpop.f32.mrf.mxu0
    %v307 = vadd.f32 %v242, %v306
    %v308 = vpop.f32.mrf.mxu0
    %v309 = vpop.f32.mrf.mxu0
    %v310 = vpop.f32.mrf.mxu0
    %311 = vdwg.mxu0
    %v312 = vmul.f32 %v307, 0.2
    %v313 = vmax.f32 %v307, %v312
    %v314 = vpack.c.bf16 %v313, %v313
    %v315 = vld [vmem:[#allocation10] sm:$0xff]
    %v316 = vld [vmem:[#allocation10 + $0x8] sm:$0xff]
    %v317 = vld [vmem:[#allocation10 + $0x10] sm:$0xff]
    %v318 = vld [vmem:[#allocation10 + $0x18] sm:$0xff]
    %v319 = vld [vmem:[#allocation10 + $0x20] sm:$0xff]
    %v320 = vld [vmem:[#allocation10 + $0x28] sm:$0xff]
    %v321 = vld [vmem:[#allocation10 + $0x30] sm:$0xff]
    %v322 = vld [vmem:[#allocation10 + $0x38] sm:$0xff]
    %v323 = vld [vmem:[#allocation10 + $0x40] sm:$0xff]
    %v324 = vld [vmem:[#allocation10 + $0x48] sm:$0xff]
    %v325 = vld [vmem:[#allocation10 + $0x50] sm:$0xff]
    %v326 = vld [vmem:[#allocation10 + $0x58] sm:$0xff]
    %v327 = vld [vmem:[#allocation10 + $0x60] sm:$0xff]
    %v328 = vld [vmem:[#allocation10 + $0x68] sm:$0xff]
    %v329 = vld [vmem:[#allocation10 + $0x70] sm:$0xff]
    %v330 = vld [vmem:[#allocation10 + $0x78] sm:$0xff]
    %v331 = vld [vmem:[%s6] sm:$0x3]
    %v333 = vlaneseq
    %v334 = vshrl.u32 %v333, 7
    %v335 = vsub.s32 0, %v334
    %v336 = vrot.slane %v331, %v335
    %v337 = vlaneseq
    %v338 = vshrl.u32 %v337, 7
    %v339 = vsub.s32 1, %v338
    %v340 = vrot.slane %v331, %v339
    %v359 = vunpack.c.l.b16 %v315
    %v360 = vunpack.c.h.b16 %v315
    %v361 = vunpack.c.l.b16 %v316
    %v362 = vunpack.c.h.b16 %v316
    %v363 = vunpack.c.l.b16 %v317
    %v364 = vunpack.c.h.b16 %v317
    %v365 = vunpack.c.l.b16 %v318
    %v366 = vunpack.c.h.b16 %v318
    %v367 = vunpack.c.l.b16 %v319
    %v368 = vunpack.c.h.b16 %v319
    %v369 = vunpack.c.l.b16 %v320
    %v370 = vunpack.c.h.b16 %v320
    %v371 = vunpack.c.l.b16 %v321
    %v372 = vunpack.c.h.b16 %v321
    %v373 = vunpack.c.l.b16 %v322
    %v374 = vunpack.c.h.b16 %v322
    %v375 = vunpack.c.l.b16 %v323
    %v376 = vunpack.c.h.b16 %v323
    %v377 = vunpack.c.l.b16 %v324
    %v378 = vunpack.c.h.b16 %v324
    %v379 = vunpack.c.l.b16 %v325
    %v380 = vunpack.c.h.b16 %v325
    %v381 = vunpack.c.l.b16 %v326
    %v382 = vunpack.c.h.b16 %v326
    %v383 = vunpack.c.l.b16 %v327
    %v384 = vunpack.c.h.b16 %v327
    %v385 = vunpack.c.l.b16 %v328
    %v386 = vunpack.c.h.b16 %v328
    %v387 = vunpack.c.l.b16 %v329
    %v388 = vunpack.c.h.b16 %v329
    %v389 = vunpack.c.l.b16 %v330
    %v390 = vunpack.c.h.b16 %v330
    %v391 = vpack.c.b16 %v361, %v359
    %v392 = vpack.c.b16 %v362, %v360
    %v393 = vpack.c.b16 %v365, %v363
    %v394 = vpack.c.b16 %v366, %v364
    %v395 = vpack.c.b16 %v369, %v367
    %v396 = vpack.c.b16 %v370, %v368
    %v397 = vpack.c.b16 %v373, %v371
    %v398 = vpack.c.b16 %v374, %v372
    %v399 = vpack.c.b16 %v377, %v375
    %v400 = vpack.c.b16 %v378, %v376
    %v401 = vpack.c.b16 %v381, %v379
    %v402 = vpack.c.b16 %v382, %v380
    %v403 = vpack.c.b16 %v385, %v383
    %v404 = vpack.c.b16 %v386, %v384
    %v405 = vpack.c.b16 %v389, %v387
    %v406 = vpack.c.b16 %v390, %v388
    %423 = vmatprep.subr.bf16.mxu0 %v406
    %424 = vmatpush1.bf16.msra.mxu0 %v405
    %425 = vmatprep.subr.bf16.mxu0 %v404
    %426 = vmatpush1.bf16.msra.mxu0 %v403
    %427 = vmatprep.subr.bf16.mxu0 %v402
    %428 = vmatpush1.bf16.msra.mxu0 %v401
    %429 = vmatprep.subr.bf16.mxu0 %v400
    %430 = vmatpush1.bf16.msra.mxu0 %v399
    %431 = vmatprep.subr.bf16.mxu0 %v398
    %432 = vmatpush1.bf16.msra.mxu0 %v397
    %433 = vmatprep.subr.bf16.mxu0 %v396
    %434 = vmatpush1.bf16.msra.mxu0 %v395
    %435 = vmatprep.subr.bf16.mxu0 %v394
    %436 = vmatpush1.bf16.msra.mxu0 %v393
    %437 = vmatprep.subr.bf16.mxu0 %v392
    %438 = vmatpush1.bf16.msra.mxu0 %v391
    %439 = vmatprep.subr.bf16.mxu0 0
    %440 = vmatpush2.bf16.msra.mxu0 0
    %441 = vmatprep.subr.bf16.mxu0 0
    %442 = vmatpush2.bf16.msra.mxu0 0
    %443 = vmatprep.subr.bf16.mxu0 0
    %444 = vmatpush2.bf16.msra.mxu0 0
    %445 = vmatprep.subr.bf16.mxu0 0
    %446 = vmatpush2.bf16.msra.mxu0 0
    %447 = vmatprep.subr.bf16.mxu0 0
    %448 = vmatpush2.bf16.msra.mxu0 0
    %449 = vmatprep.subr.bf16.mxu0 0
    %450 = vmatpush2.bf16.msra.mxu0 0
    %451 = vmatprep.subr.bf16.mxu0 0
    %452 = vmatpush2.bf16.msra.mxu0 0
    %453 = vmatprep.subr.bf16.mxu0 0
    %454 = vmatpush2.bf16.msra.mxu0 0
    %455 = vmatprep.mubr.bf16.mxu0 0
    %456 = vmatmul.mubr.bf16.gmra.mxu0 %v314
    %v457 = vpop.f32.mrf.mxu0
    %v458 = vadd.f32 %v336, %v457
    %v459 = vpop.f32.mrf.mxu0
    %v460 = vadd.f32 %v340, %v459
    %v461 = vpop.f32.mrf.mxu0
    %v462 = vpop.f32.mrf.mxu0
    %463 = vdwg.mxu0
    %v464 = vmul.f32 %v458, 0.2
    %v465 = vmul.f32 %v460, 0.2
    %v466 = vmax.f32 %v458, %v464
    %v467 = vmax.f32 %v460, %v465
    %v468 = vpack.c.bf16 %v466, %v466
    %v469 = vpack.c.bf16 %v467, %v467
    %v470 = vld [vmem:[#allocation11] sm:$0xff]
    %v471 = vld [vmem:[#allocation11 + $0x8] sm:$0xff]
    %v472 = vld [vmem:[#allocation11 + $0x10] sm:$0xff]
    %v473 = vld [vmem:[#allocation11 + $0x18] sm:$0xff]
    %v474 = vld [vmem:[#allocation11 + $0x20] sm:$0xff]
    %v475 = vld [vmem:[#allocation11 + $0x28] sm:$0xff]
    %v476 = vld [vmem:[#allocation11 + $0x30] sm:$0xff]
    %v477 = vld [vmem:[#allocation11 + $0x38] sm:$0xff]
    %v478 = vld [vmem:[#allocation11 + $0x40] sm:$0xff]
    %v479 = vld [vmem:[#allocation11 + $0x48] sm:$0xff]
    %v480 = vld [vmem:[#allocation11 + $0x50] sm:$0xff]
    %v481 = vld [vmem:[#allocation11 + $0x58] sm:$0xff]
    %v482 = vld [vmem:[#allocation11 + $0x60] sm:$0xff]
    %v483 = vld [vmem:[#allocation11 + $0x68] sm:$0xff]
    %v484 = vld [vmem:[#allocation11 + $0x70] sm:$0xff]
    %v485 = vld [vmem:[#allocation11 + $0x78] sm:$0xff]
    %v486 = vld [vmem:[#allocation11 + $0x80] sm:$0xff]
    %v487 = vld [vmem:[#allocation11 + $0x88] sm:$0xff]
    %v488 = vld [vmem:[#allocation11 + $0x90] sm:$0xff]
    %v489 = vld [vmem:[#allocation11 + $0x98] sm:$0xff]
    %v490 = vld [vmem:[#allocation11 + $0xa0] sm:$0xff]
    %v491 = vld [vmem:[#allocation11 + $0xa8] sm:$0xff]
    %v492 = vld [vmem:[#allocation11 + $0xb0] sm:$0xff]
    %v493 = vld [vmem:[#allocation11 + $0xb8] sm:$0xff]
    %v494 = vld [vmem:[#allocation11 + $0xc0] sm:$0xff]
    %v495 = vld [vmem:[#allocation11 + $0xc8] sm:$0xff]
    %v496 = vld [vmem:[#allocation11 + $0xd0] sm:$0xff]
    %v497 = vld [vmem:[#allocation11 + $0xd8] sm:$0xff]
    %v498 = vld [vmem:[#allocation11 + $0xe0] sm:$0xff]
    %v499 = vld [vmem:[#allocation11 + $0xe8] sm:$0xff]
    %v500 = vld [vmem:[#allocation11 + $0xf0] sm:$0xff]
    %v501 = vld [vmem:[#allocation11 + $0xf8] sm:$0xff]
    %v502 = vld [vmem:[#allocation11 + $0x100] sm:$0xff]
    %v503 = vld [vmem:[#allocation11 + $0x108] sm:$0xff]
    %v504 = vld [vmem:[#allocation11 + $0x110] sm:$0xff]
    %v505 = vld [vmem:[#allocation11 + $0x118] sm:$0xff]
    %v506 = vld [vmem:[#allocation11 + $0x120] sm:$0xff]
    %v507 = vld [vmem:[#allocation11 + $0x128] sm:$0xff]
    %v508 = vld [vmem:[#allocation11 + $0x130] sm:$0xff]
    %v509 = vld [vmem:[#allocation11 + $0x138] sm:$0xff]
    %v510 = vld [vmem:[#allocation11 + $0x140] sm:$0xff]
    %v511 = vld [vmem:[#allocation11 + $0x148] sm:$0xff]
    %v512 = vld [vmem:[#allocation11 + $0x150] sm:$0xff]
    %v513 = vld [vmem:[#allocation11 + $0x158] sm:$0xff]
    %v514 = vld [vmem:[#allocation11 + $0x160] sm:$0xff]
    %v515 = vld [vmem:[#allocation11 + $0x168] sm:$0xff]
    %v516 = vld [vmem:[#allocation11 + $0x170] sm:$0xff]
    %v517 = vld [vmem:[#allocation11 + $0x178] sm:$0xff]
    %v518 = vld [vmem:[#allocation11 + $0x180] sm:$0xff]
    %v519 = vld [vmem:[#allocation11 + $0x188] sm:$0xff]
    %v520 = vld [vmem:[#allocation11 + $0x190] sm:$0xff]
    %v521 = vld [vmem:[#allocation11 + $0x198] sm:$0xff]
    %v522 = vld [vmem:[#allocation11 + $0x1a0] sm:$0xff]
    %v523 = vld [vmem:[#allocation11 + $0x1a8] sm:$0xff]
    %v524 = vld [vmem:[#allocation11 + $0x1b0] sm:$0xff]
    %v525 = vld [vmem:[#allocation11 + $0x1b8] sm:$0xff]
    %v526 = vld [vmem:[#allocation11 + $0x1c0] sm:$0xff]
    %v527 = vld [vmem:[#allocation11 + $0x1c8] sm:$0xff]
    %v528 = vld [vmem:[#allocation11 + $0x1d0] sm:$0xff]
    %v529 = vld [vmem:[#allocation11 + $0x1d8] sm:$0xff]
    %v530 = vld [vmem:[#allocation11 + $0x1e0] sm:$0xff]
    %v531 = vld [vmem:[#allocation11 + $0x1e8] sm:$0xff]
    %v532 = vld [vmem:[#allocation11 + $0x1f0] sm:$0xff]
    %v533 = vld [vmem:[#allocation11 + $0x1f8] sm:$0xff]
    %v534 = vld [vmem:[%s8] sm:$0xf]
    %v536 = vlaneseq
    %v537 = vshrl.u32 %v536, 7
    %v538 = vsub.s32 0, %v537
    %v539 = vrot.slane %v534, %v538
    %v540 = vlaneseq
    %v541 = vshrl.u32 %v540, 7
    %v542 = vsub.s32 1, %v541
    %v543 = vrot.slane %v534, %v542
    %v544 = vlaneseq
    %v545 = vshrl.u32 %v544, 7
    %v546 = vsub.s32 2, %v545
    %v547 = vrot.slane %v534, %v546
    %v548 = vlaneseq
    %v549 = vshrl.u32 %v548, 7
    %v550 = vsub.s32 3, %v549
    %v551 = vrot.slane %v534, %v550
    %v620 = vunpack.c.l.b16 %v470
    %v621 = vunpack.c.h.b16 %v470
    %v622 = vunpack.c.l.b16 %v471
    %v623 = vunpack.c.h.b16 %v471
    %v624 = vunpack.c.l.b16 %v472
    %v625 = vunpack.c.h.b16 %v472
    %v626 = vunpack.c.l.b16 %v473
    %v627 = vunpack.c.h.b16 %v473
    %v628 = vunpack.c.l.b16 %v474
    %v629 = vunpack.c.h.b16 %v474
    %v630 = vunpack.c.l.b16 %v475
    %v631 = vunpack.c.h.b16 %v475
    %v632 = vunpack.c.l.b16 %v476
    %v633 = vunpack.c.h.b16 %v476
    %v634 = vunpack.c.l.b16 %v477
    %v635 = vunpack.c.h.b16 %v477
    %v636 = vunpack.c.l.b16 %v478
    %v637 = vunpack.c.h.b16 %v478
    %v638 = vunpack.c.l.b16 %v479
    %v639 = vunpack.c.h.b16 %v479
    %v640 = vunpack.c.l.b16 %v480
    %v641 = vunpack.c.h.b16 %v480
    %v642 = vunpack.c.l.b16 %v481
    %v643 = vunpack.c.h.b16 %v481
    %v644 = vunpack.c.l.b16 %v482
    %v645 = vunpack.c.h.b16 %v482
    %v646 = vunpack.c.l.b16 %v483
    %v647 = vunpack.c.h.b16 %v483
    %v648 = vunpack.c.l.b16 %v484
    %v649 = vunpack.c.h.b16 %v484
    %v650 = vunpack.c.l.b16 %v485
    %v651 = vunpack.c.h.b16 %v485
    %v652 = vunpack.c.l.b16 %v486
    %v653 = vunpack.c.h.b16 %v486
    %v654 = vunpack.c.l.b16 %v487
    %v655 = vunpack.c.h.b16 %v487
    %v656 = vunpack.c.l.b16 %v488
    %v657 = vunpack.c.h.b16 %v488
    %v658 = vunpack.c.l.b16 %v489
    %v659 = vunpack.c.h.b16 %v489
    %v660 = vunpack.c.l.b16 %v490
    %v661 = vunpack.c.h.b16 %v490
    %v662 = vunpack.c.l.b16 %v491
    %v663 = vunpack.c.h.b16 %v491
    %v664 = vunpack.c.l.b16 %v492
    %v665 = vunpack.c.h.b16 %v492
    %v666 = vunpack.c.l.b16 %v493
    %v667 = vunpack.c.h.b16 %v493
    %v668 = vunpack.c.l.b16 %v494
    %v669 = vunpack.c.h.b16 %v494
    %v670 = vunpack.c.l.b16 %v495
    %v671 = vunpack.c.h.b16 %v495
    %v672 = vunpack.c.l.b16 %v496
    %v673 = vunpack.c.h.b16 %v496
    %v674 = vunpack.c.l.b16 %v497
    %v675 = vunpack.c.h.b16 %v497
    %v676 = vunpack.c.l.b16 %v498
    %v677 = vunpack.c.h.b16 %v498
    %v678 = vunpack.c.l.b16 %v499
    %v679 = vunpack.c.h.b16 %v499
    %v680 = vunpack.c.l.b16 %v500
    %v681 = vunpack.c.h.b16 %v500
    %v682 = vunpack.c.l.b16 %v501
    %v683 = vunpack.c.h.b16 %v501
    %v684 = vunpack.c.l.b16 %v502
    %v685 = vunpack.c.h.b16 %v502
    %v686 = vunpack.c.l.b16 %v503
    %v687 = vunpack.c.h.b16 %v503
    %v688 = vunpack.c.l.b16 %v504
    %v689 = vunpack.c.h.b16 %v504
    %v690 = vunpack.c.l.b16 %v505
    %v691 = vunpack.c.h.b16 %v505
    %v692 = vunpack.c.l.b16 %v506
    %v693 = vunpack.c.h.b16 %v506
    %v694 = vunpack.c.l.b16 %v507
    %v695 = vunpack.c.h.b16 %v507
    %v696 = vunpack.c.l.b16 %v508
    %v697 = vunpack.c.h.b16 %v508
    %v698 = vunpack.c.l.b16 %v509
    %v699 = vunpack.c.h.b16 %v509
    %v700 = vunpack.c.l.b16 %v510
    %v701 = vunpack.c.h.b16 %v510
    %v702 = vunpack.c.l.b16 %v511
    %v703 = vunpack.c.h.b16 %v511
    %v704 = vunpack.c.l.b16 %v512
    %v705 = vunpack.c.h.b16 %v512
    %v706 = vunpack.c.l.b16 %v513
    %v707 = vunpack.c.h.b16 %v513
    %v708 = vunpack.c.l.b16 %v514
    %v709 = vunpack.c.h.b16 %v514
    %v710 = vunpack.c.l.b16 %v515
    %v711 = vunpack.c.h.b16 %v515
    %v712 = vunpack.c.l.b16 %v516
    %v713 = vunpack.c.h.b16 %v516
    %v714 = vunpack.c.l.b16 %v517
    %v715 = vunpack.c.h.b16 %v517
    %v716 = vunpack.c.l.b16 %v518
    %v717 = vunpack.c.h.b16 %v518
    %v718 = vunpack.c.l.b16 %v519
    %v719 = vunpack.c.h.b16 %v519
    %v720 = vunpack.c.l.b16 %v520
    %v721 = vunpack.c.h.b16 %v520
    %v722 = vunpack.c.l.b16 %v521
    %v723 = vunpack.c.h.b16 %v521
    %v724 = vunpack.c.l.b16 %v522
    %v725 = vunpack.c.h.b16 %v522
    %v726 = vunpack.c.l.b16 %v523
    %v727 = vunpack.c.h.b16 %v523
    %v728 = vunpack.c.l.b16 %v524
    %v729 = vunpack.c.h.b16 %v524
    %v730 = vunpack.c.l.b16 %v525
    %v731 = vunpack.c.h.b16 %v525
    %v732 = vunpack.c.l.b16 %v526
    %v733 = vunpack.c.h.b16 %v526
    %v734 = vunpack.c.l.b16 %v527
    %v735 = vunpack.c.h.b16 %v527
    %v736 = vunpack.c.l.b16 %v528
    %v737 = vunpack.c.h.b16 %v528
    %v738 = vunpack.c.l.b16 %v529
    %v739 = vunpack.c.h.b16 %v529
    %v740 = vunpack.c.l.b16 %v530
    %v741 = vunpack.c.h.b16 %v530
    %v742 = vunpack.c.l.b16 %v531
    %v743 = vunpack.c.h.b16 %v531
    %v744 = vunpack.c.l.b16 %v532
    %v745 = vunpack.c.h.b16 %v532
    %v746 = vunpack.c.l.b16 %v533
    %v747 = vunpack.c.h.b16 %v533
    %v748 = vpack.c.b16 %v624, %v620
    %v749 = vpack.c.b16 %v625, %v621
    %v750 = vpack.c.b16 %v626, %v622
    %v751 = vpack.c.b16 %v627, %v623
    %v752 = vpack.c.b16 %v632, %v628
    %v753 = vpack.c.b16 %v633, %v629
    %v754 = vpack.c.b16 %v634, %v630
    %v755 = vpack.c.b16 %v635, %v631
    %v756 = vpack.c.b16 %v640, %v636
    %v757 = vpack.c.b16 %v641, %v637
    %v758 = vpack.c.b16 %v642, %v638
    %v759 = vpack.c.b16 %v643, %v639
    %v760 = vpack.c.b16 %v648, %v644
    %v761 = vpack.c.b16 %v649, %v645
    %v762 = vpack.c.b16 %v650, %v646
    %v763 = vpack.c.b16 %v651, %v647
    %v764 = vpack.c.b16 %v656, %v652
    %v765 = vpack.c.b16 %v657, %v653
    %v766 = vpack.c.b16 %v658, %v654
    %v767 = vpack.c.b16 %v659, %v655
    %v768 = vpack.c.b16 %v664, %v660
    %v769 = vpack.c.b16 %v665, %v661
    %v770 = vpack.c.b16 %v666, %v662
    %v771 = vpack.c.b16 %v667, %v663
    %v772 = vpack.c.b16 %v672, %v668
    %v773 = vpack.c.b16 %v673, %v669
    %v774 = vpack.c.b16 %v674, %v670
    %v775 = vpack.c.b16 %v675, %v671
    %v776 = vpack.c.b16 %v680, %v676
    %v777 = vpack.c.b16 %v681, %v677
    %v778 = vpack.c.b16 %v682, %v678
    %v779 = vpack.c.b16 %v683, %v679
    %v780 = vpack.c.b16 %v688, %v684
    %v781 = vpack.c.b16 %v689, %v685
    %v782 = vpack.c.b16 %v690, %v686
    %v783 = vpack.c.b16 %v691, %v687
    %v784 = vpack.c.b16 %v696, %v692
    %v785 = vpack.c.b16 %v697, %v693
    %v786 = vpack.c.b16 %v698, %v694
    %v787 = vpack.c.b16 %v699, %v695
    %v788 = vpack.c.b16 %v704, %v700
    %v789 = vpack.c.b16 %v705, %v701
    %v790 = vpack.c.b16 %v706, %v702
    %v791 = vpack.c.b16 %v707, %v703
    %v792 = vpack.c.b16 %v712, %v708
    %v793 = vpack.c.b16 %v713, %v709
    %v794 = vpack.c.b16 %v714, %v710
    %v795 = vpack.c.b16 %v715, %v711
    %v796 = vpack.c.b16 %v720, %v716
    %v797 = vpack.c.b16 %v721, %v717
    %v798 = vpack.c.b16 %v722, %v718
    %v799 = vpack.c.b16 %v723, %v719
    %v800 = vpack.c.b16 %v728, %v724
    %v801 = vpack.c.b16 %v729, %v725
    %v802 = vpack.c.b16 %v730, %v726
    %v803 = vpack.c.b16 %v731, %v727
    %v804 = vpack.c.b16 %v736, %v732
    %v805 = vpack.c.b16 %v737, %v733
    %v806 = vpack.c.b16 %v738, %v734
    %v807 = vpack.c.b16 %v739, %v735
    %v808 = vpack.c.b16 %v744, %v740
    %v809 = vpack.c.b16 %v745, %v741
    %v810 = vpack.c.b16 %v746, %v742
    %v811 = vpack.c.b16 %v747, %v743
    %876 = vmatprep.subr.bf16.mxu0 %v777
    %877 = vmatpush1.bf16.msra.mxu0 %v776
    %878 = vmatprep.subr.bf16.mxu0 %v773
    %879 = vmatpush1.bf16.msra.mxu0 %v772
    %880 = vmatprep.subr.bf16.mxu0 %v769
    %881 = vmatpush1.bf16.msra.mxu0 %v768
    %882 = vmatprep.subr.bf16.mxu0 %v765
    %883 = vmatpush1.bf16.msra.mxu0 %v764
    %884 = vmatprep.subr.bf16.mxu0 %v761
    %885 = vmatpush1.bf16.msra.mxu0 %v760
    %886 = vmatprep.subr.bf16.mxu0 %v757
    %887 = vmatpush1.bf16.msra.mxu0 %v756
    %888 = vmatprep.subr.bf16.mxu0 %v753
    %889 = vmatpush1.bf16.msra.mxu0 %v752
    %890 = vmatprep.subr.bf16.mxu0 %v749
    %891 = vmatpush1.bf16.msra.mxu0 %v748
    %892 = vmatprep.subr.bf16.mxu0 %v809
    %893 = vmatpush2.bf16.msra.mxu0 %v808
    %894 = vmatprep.subr.bf16.mxu0 %v805
    %895 = vmatpush2.bf16.msra.mxu0 %v804
    %896 = vmatprep.subr.bf16.mxu0 %v801
    %897 = vmatpush2.bf16.msra.mxu0 %v800
    %898 = vmatprep.subr.bf16.mxu0 %v797
    %899 = vmatpush2.bf16.msra.mxu0 %v796
    %900 = vmatprep.subr.bf16.mxu0 %v793
    %901 = vmatpush2.bf16.msra.mxu0 %v792
    %902 = vmatprep.subr.bf16.mxu0 %v789
    %903 = vmatpush2.bf16.msra.mxu0 %v788
    %904 = vmatprep.subr.bf16.mxu0 %v785
    %905 = vmatpush2.bf16.msra.mxu0 %v784
    %906 = vmatprep.subr.bf16.mxu0 %v781
    %907 = vmatpush2.bf16.msra.mxu0 %v780
    %908 = vmatprep.mubr.bf16.mxu0 %v469
    %909 = vmatmul.mubr.bf16.gmra.mxu0 %v468
    %v910 = vpop.f32.mrf.mxu0
    %v911 = vadd.f32 %v539, %v910
    %v912 = vpop.f32.mrf.mxu0
    %v913 = vadd.f32 %v543, %v912
    %v914 = vpop.f32.mrf.mxu0
    %v915 = vpop.f32.mrf.mxu0
    %916 = vdwg.mxu0
    %917 = vmatprep.subr.bf16.mxu0 %v779
    %918 = vmatpush1.bf16.msra.mxu0 %v778
    %919 = vmatprep.subr.bf16.mxu0 %v775
    %920 = vmatpush1.bf16.msra.mxu0 %v774
    %921 = vmatprep.subr.bf16.mxu0 %v771
    %922 = vmatpush1.bf16.msra.mxu0 %v770
    %923 = vmatprep.subr.bf16.mxu0 %v767
    %924 = vmatpush1.bf16.msra.mxu0 %v766
    %925 = vmatprep.subr.bf16.mxu0 %v763
    %926 = vmatpush1.bf16.msra.mxu0 %v762
    %927 = vmatprep.subr.bf16.mxu0 %v759
    %928 = vmatpush1.bf16.msra.mxu0 %v758
    %929 = vmatprep.subr.bf16.mxu0 %v755
    %930 = vmatpush1.bf16.msra.mxu0 %v754
    %931 = vmatprep.subr.bf16.mxu0 %v751
    %932 = vmatpush1.bf16.msra.mxu0 %v750
    %933 = vmatprep.subr.bf16.mxu0 %v811
    %934 = vmatpush2.bf16.msra.mxu0 %v810
    %935 = vmatprep.subr.bf16.mxu0 %v807
    %936 = vmatpush2.bf16.msra.mxu0 %v806
    %937 = vmatprep.subr.bf16.mxu0 %v803
    %938 = vmatpush2.bf16.msra.mxu0 %v802
    %939 = vmatprep.subr.bf16.mxu0 %v799
    %940 = vmatpush2.bf16.msra.mxu0 %v798
    %941 = vmatprep.subr.bf16.mxu0 %v795
    %942 = vmatpush2.bf16.msra.mxu0 %v794
    %943 = vmatprep.subr.bf16.mxu0 %v791
    %944 = vmatpush2.bf16.msra.mxu0 %v790
    %945 = vmatprep.subr.bf16.mxu0 %v787
    %946 = vmatpush2.bf16.msra.mxu0 %v786
    %947 = vmatprep.subr.bf16.mxu0 %v783
    %948 = vmatpush2.bf16.msra.mxu0 %v782
    %949 = vmatprep.mubr.bf16.mxu0 %v469
    %950 = vmatmul.mubr.bf16.gmra.mxu0 %v468
    %v951 = vpop.f32.mrf.mxu0
    %v952 = vadd.f32 %v547, %v951
    %v953 = vpop.f32.mrf.mxu0
    %v954 = vadd.f32 %v551, %v953
    %v955 = vpop.f32.mrf.mxu0
    %v956 = vpop.f32.mrf.mxu0
    %957 = vdwg.mxu0
    %v958 = vmul.f32 %v911, 0.2
    %v959 = vmul.f32 %v913, 0.2
    %v960 = vmul.f32 %v952, 0.2
    %v961 = vmul.f32 %v954, 0.2
    %v962 = vmax.f32 %v911, %v958
    %v963 = vmax.f32 %v913, %v959
    %v964 = vmax.f32 %v952, %v960
    %v965 = vmax.f32 %v954, %v961
    %v966 = vpack.c.bf16 %v962, %v962
    %v967 = vpack.c.bf16 %v963, %v963
    %v968 = vpack.c.bf16 %v964, %v964
    %v969 = vpack.c.bf16 %v965, %v965
    %v970 = vld [vmem:[#allocation13] sm:$0xff]
    %v971 = vld [vmem:[#allocation13 + $0x8] sm:$0xff]
    %v972 = vld [vmem:[#allocation13 + $0x10] sm:$0xff]
    %v973 = vld [vmem:[#allocation13 + $0x18] sm:$0xff]
    %v974 = vld [vmem:[#allocation13 + $0x20] sm:$0xff]
    %v975 = vld [vmem:[#allocation13 + $0x28] sm:$0xff]
    %v976 = vld [vmem:[#allocation13 + $0x30] sm:$0xff]
    %v977 = vld [vmem:[#allocation13 + $0x38] sm:$0xff]
    %v978 = vld [vmem:[#allocation13 + $0x40] sm:$0xff]
    %v979 = vld [vmem:[#allocation13 + $0x48] sm:$0xff]
    %v980 = vld [vmem:[#allocation13 + $0x50] sm:$0xff]
    %v981 = vld [vmem:[#allocation13 + $0x58] sm:$0xff]
    %v982 = vld [vmem:[#allocation13 + $0x60] sm:$0xff]
    %v983 = vld [vmem:[#allocation13 + $0x68] sm:$0xff]
    %v984 = vld [vmem:[#allocation13 + $0x70] sm:$0xff]
    %v985 = vld [vmem:[#allocation13 + $0x78] sm:$0xff]
    %v986 = vld [vmem:[#allocation13 + $0x80] sm:$0xff]
    %v987 = vld [vmem:[#allocation13 + $0x88] sm:$0xff]
    %v988 = vld [vmem:[#allocation13 + $0x90] sm:$0xff]
    %v989 = vld [vmem:[#allocation13 + $0x98] sm:$0xff]
    %v990 = vld [vmem:[#allocation13 + $0xa0] sm:$0xff]
    %v991 = vld [vmem:[#allocation13 + $0xa8] sm:$0xff]
    %v992 = vld [vmem:[#allocation13 + $0xb0] sm:$0xff]
    %v993 = vld [vmem:[#allocation13 + $0xb8] sm:$0xff]
    %v994 = vld [vmem:[#allocation13 + $0xc0] sm:$0xff]
    %v995 = vld [vmem:[#allocation13 + $0xc8] sm:$0xff]
    %v996 = vld [vmem:[#allocation13 + $0xd0] sm:$0xff]
    %v997 = vld [vmem:[#allocation13 + $0xd8] sm:$0xff]
    %v998 = vld [vmem:[#allocation13 + $0xe0] sm:$0xff]
    %v999 = vld [vmem:[#allocation13 + $0xe8] sm:$0xff]
    %v1000 = vld [vmem:[#allocation13 + $0xf0] sm:$0xff]
    %v1001 = vld [vmem:[#allocation13 + $0xf8] sm:$0xff]
    %v1002 = vld [vmem:[#allocation13 + $0x100] sm:$0xff]
    %v1003 = vld [vmem:[#allocation13 + $0x108] sm:$0xff]
    %v1004 = vld [vmem:[#allocation13 + $0x110] sm:$0xff]
    %v1005 = vld [vmem:[#allocation13 + $0x118] sm:$0xff]
    %v1006 = vld [vmem:[#allocation13 + $0x120] sm:$0xff]
    %v1007 = vld [vmem:[#allocation13 + $0x128] sm:$0xff]
    %v1008 = vld [vmem:[#allocation13 + $0x130] sm:$0xff]
    %v1009 = vld [vmem:[#allocation13 + $0x138] sm:$0xff]
    %v1010 = vld [vmem:[#allocation13 + $0x140] sm:$0xff]
    %v1011 = vld [vmem:[#allocation13 + $0x148] sm:$0xff]
    %v1012 = vld [vmem:[#allocation13 + $0x150] sm:$0xff]
    %v1013 = vld [vmem:[#allocation13 + $0x158] sm:$0xff]
    %v1014 = vld [vmem:[#allocation13 + $0x160] sm:$0xff]
    %v1015 = vld [vmem:[#allocation13 + $0x168] sm:$0xff]
    %v1016 = vld [vmem:[#allocation13 + $0x170] sm:$0xff]
    %v1017 = vld [vmem:[#allocation13 + $0x178] sm:$0xff]
    %v1018 = vld [vmem:[#allocation13 + $0x180] sm:$0xff]
    %v1019 = vld [vmem:[#allocation13 + $0x188] sm:$0xff]
    %v1020 = vld [vmem:[#allocation13 + $0x190] sm:$0xff]
    %v1021 = vld [vmem:[#allocation13 + $0x198] sm:$0xff]
    %v1022 = vld [vmem:[#allocation13 + $0x1a0] sm:$0xff]
    %v1023 = vld [vmem:[#allocation13 + $0x1a8] sm:$0xff]
    %v1024 = vld [vmem:[#allocation13 + $0x1b0] sm:$0xff]
    %v1025 = vld [vmem:[#allocation13 + $0x1b8] sm:$0xff]
    %v1026 = vld [vmem:[#allocation13 + $0x1c0] sm:$0xff]
    %v1027 = vld [vmem:[#allocation13 + $0x1c8] sm:$0xff]
    %v1028 = vld [vmem:[#allocation13 + $0x1d0] sm:$0xff]
    %v1029 = vld [vmem:[#allocation13 + $0x1d8] sm:$0xff]
    %v1030 = vld [vmem:[#allocation13 + $0x1e0] sm:$0xff]
    %v1031 = vld [vmem:[#allocation13 + $0x1e8] sm:$0xff]
    %v1032 = vld [vmem:[#allocation13 + $0x1f0] sm:$0xff]
    %v1033 = vld [vmem:[#allocation13 + $0x1f8] sm:$0xff]
    %v1034 = vld [vmem:[#allocation13 + $0x200] sm:$0xff]
    %v1035 = vld [vmem:[#allocation13 + $0x208] sm:$0xff]
    %v1036 = vld [vmem:[#allocation13 + $0x210] sm:$0xff]
    %v1037 = vld [vmem:[#allocation13 + $0x218] sm:$0xff]
    %v1038 = vld [vmem:[#allocation13 + $0x220] sm:$0xff]
    %v1039 = vld [vmem:[#allocation13 + $0x228] sm:$0xff]
    %v1040 = vld [vmem:[#allocation13 + $0x230] sm:$0xff]
    %v1041 = vld [vmem:[#allocation13 + $0x238] sm:$0xff]
    %v1042 = vld [vmem:[#allocation13 + $0x240] sm:$0xff]
    %v1043 = vld [vmem:[#allocation13 + $0x248] sm:$0xff]
    %v1044 = vld [vmem:[#allocation13 + $0x250] sm:$0xff]
    %v1045 = vld [vmem:[#allocation13 + $0x258] sm:$0xff]
    %v1046 = vld [vmem:[#allocation13 + $0x260] sm:$0xff]
    %v1047 = vld [vmem:[#allocation13 + $0x268] sm:$0xff]
    %v1048 = vld [vmem:[#allocation13 + $0x270] sm:$0xff]
    %v1049 = vld [vmem:[#allocation13 + $0x278] sm:$0xff]
    %v1050 = vld [vmem:[#allocation13 + $0x280] sm:$0xff]
    %v1051 = vld [vmem:[#allocation13 + $0x288] sm:$0xff]
    %v1052 = vld [vmem:[#allocation13 + $0x290] sm:$0xff]
    %v1053 = vld [vmem:[#allocation13 + $0x298] sm:$0xff]
    %v1054 = vld [vmem:[#allocation13 + $0x2a0] sm:$0xff]
    %v1055 = vld [vmem:[#allocation13 + $0x2a8] sm:$0xff]
    %v1056 = vld [vmem:[#allocation13 + $0x2b0] sm:$0xff]
    %v1057 = vld [vmem:[#allocation13 + $0x2b8] sm:$0xff]
    %v1058 = vld [vmem:[#allocation13 + $0x2c0] sm:$0xff]
    %v1059 = vld [vmem:[#allocation13 + $0x2c8] sm:$0xff]
    %v1060 = vld [vmem:[#allocation13 + $0x2d0] sm:$0xff]
    %v1061 = vld [vmem:[#allocation13 + $0x2d8] sm:$0xff]
    %v1062 = vld [vmem:[#allocation13 + $0x2e0] sm:$0xff]
    %v1063 = vld [vmem:[#allocation13 + $0x2e8] sm:$0xff]
    %v1064 = vld [vmem:[#allocation13 + $0x2f0] sm:$0xff]
    %v1065 = vld [vmem:[#allocation13 + $0x2f8] sm:$0xff]
    %v1066 = vld [vmem:[#allocation13 + $0x300] sm:$0xff]
    %v1067 = vld [vmem:[#allocation13 + $0x308] sm:$0xff]
    %v1068 = vld [vmem:[#allocation13 + $0x310] sm:$0xff]
    %v1069 = vld [vmem:[#allocation13 + $0x318] sm:$0xff]
    %v1070 = vld [vmem:[#allocation13 + $0x320] sm:$0xff]
    %v1071 = vld [vmem:[#allocation13 + $0x328] sm:$0xff]
    %v1072 = vld [vmem:[#allocation13 + $0x330] sm:$0xff]
    %v1073 = vld [vmem:[#allocation13 + $0x338] sm:$0xff]
    %v1074 = vld [vmem:[#allocation13 + $0x340] sm:$0xff]
    %v1075 = vld [vmem:[#allocation13 + $0x348] sm:$0xff]
    %v1076 = vld [vmem:[#allocation13 + $0x350] sm:$0xff]
    %v1077 = vld [vmem:[#allocation13 + $0x358] sm:$0xff]
    %v1078 = vld [vmem:[#allocation13 + $0x360] sm:$0xff]
    %v1079 = vld [vmem:[#allocation13 + $0x368] sm:$0xff]
    %v1080 = vld [vmem:[#allocation13 + $0x370] sm:$0xff]
    %v1081 = vld [vmem:[#allocation13 + $0x378] sm:$0xff]
    %v1082 = vld [vmem:[#allocation13 + $0x380] sm:$0xff]
    %v1083 = vld [vmem:[#allocation13 + $0x388] sm:$0xff]
    %v1084 = vld [vmem:[#allocation13 + $0x390] sm:$0xff]
    %v1085 = vld [vmem:[#allocation13 + $0x398] sm:$0xff]
    %v1086 = vld [vmem:[#allocation13 + $0x3a0] sm:$0xff]
    %v1087 = vld [vmem:[#allocation13 + $0x3a8] sm:$0xff]
    %v1088 = vld [vmem:[#allocation13 + $0x3b0] sm:$0xff]
    %v1089 = vld [vmem:[#allocation13 + $0x3b8] sm:$0xff]
    %v1090 = vld [vmem:[#allocation13 + $0x3c0] sm:$0xff]
    %v1091 = vld [vmem:[#allocation13 + $0x3c8] sm:$0xff]
    %v1092 = vld [vmem:[#allocation13 + $0x3d0] sm:$0xff]
    %v1093 = vld [vmem:[#allocation13 + $0x3d8] sm:$0xff]
    %v1094 = vld [vmem:[#allocation13 + $0x3e0] sm:$0xff]
    %v1095 = vld [vmem:[#allocation13 + $0x3e8] sm:$0xff]
    %v1096 = vld [vmem:[#allocation13 + $0x3f0] sm:$0xff]
    %v1097 = vld [vmem:[#allocation13 + $0x3f8] sm:$0xff]
    %v1098 = vld [vmem:[#allocation13 + $0x400] sm:$0xff]
    %v1099 = vld [vmem:[#allocation13 + $0x408] sm:$0xff]
    %v1100 = vld [vmem:[#allocation13 + $0x410] sm:$0xff]
    %v1101 = vld [vmem:[#allocation13 + $0x418] sm:$0xff]
    %v1102 = vld [vmem:[#allocation13 + $0x420] sm:$0xff]
    %v1103 = vld [vmem:[#allocation13 + $0x428] sm:$0xff]
    %v1104 = vld [vmem:[#allocation13 + $0x430] sm:$0xff]
    %v1105 = vld [vmem:[#allocation13 + $0x438] sm:$0xff]
    %v1106 = vld [vmem:[#allocation13 + $0x440] sm:$0xff]
    %v1107 = vld [vmem:[#allocation13 + $0x448] sm:$0xff]
    %v1108 = vld [vmem:[#allocation13 + $0x450] sm:$0xff]
    %v1109 = vld [vmem:[#allocation13 + $0x458] sm:$0xff]
    %v1110 = vld [vmem:[#allocation13 + $0x460] sm:$0xff]
    %v1111 = vld [vmem:[#allocation13 + $0x468] sm:$0xff]
    %v1112 = vld [vmem:[#allocation13 + $0x470] sm:$0xff]
    %v1113 = vld [vmem:[#allocation13 + $0x478] sm:$0xff]
    %v1114 = vld [vmem:[#allocation13 + $0x480] sm:$0xff]
    %v1115 = vld [vmem:[#allocation13 + $0x488] sm:$0xff]
    %v1116 = vld [vmem:[#allocation13 + $0x490] sm:$0xff]
    %v1117 = vld [vmem:[#allocation13 + $0x498] sm:$0xff]
    %v1118 = vld [vmem:[#allocation13 + $0x4a0] sm:$0xff]
    %v1119 = vld [vmem:[#allocation13 + $0x4a8] sm:$0xff]
    %v1120 = vld [vmem:[#allocation13 + $0x4b0] sm:$0xff]
    %v1121 = vld [vmem:[#allocation13 + $0x4b8] sm:$0xff]
    %v1122 = vld [vmem:[#allocation13 + $0x4c0] sm:$0xff]
    %v1123 = vld [vmem:[#allocation13 + $0x4c8] sm:$0xff]
    %v1124 = vld [vmem:[#allocation13 + $0x4d0] sm:$0xff]
    %v1125 = vld [vmem:[#allocation13 + $0x4d8] sm:$0xff]
    %v1126 = vld [vmem:[#allocation13 + $0x4e0] sm:$0xff]
    %v1127 = vld [vmem:[#allocation13 + $0x4e8] sm:$0xff]
    %v1128 = vld [vmem:[#allocation13 + $0x4f0] sm:$0xff]
    %v1129 = vld [vmem:[#allocation13 + $0x4f8] sm:$0xff]
    %v1130 = vld [vmem:[#allocation13 + $0x500] sm:$0xff]
    %v1131 = vld [vmem:[#allocation13 + $0x508] sm:$0xff]
    %v1132 = vld [vmem:[#allocation13 + $0x510] sm:$0xff]
    %v1133 = vld [vmem:[#allocation13 + $0x518] sm:$0xff]
    %v1134 = vld [vmem:[#allocation13 + $0x520] sm:$0xff]
    %v1135 = vld [vmem:[#allocation13 + $0x528] sm:$0xff]
    %v1136 = vld [vmem:[#allocation13 + $0x530] sm:$0xff]
    %v1137 = vld [vmem:[#allocation13 + $0x538] sm:$0xff]
    %v1138 = vld [vmem:[#allocation13 + $0x540] sm:$0xff]
    %v1139 = vld [vmem:[#allocation13 + $0x548] sm:$0xff]
    %v1140 = vld [vmem:[#allocation13 + $0x550] sm:$0xff]
    %v1141 = vld [vmem:[#allocation13 + $0x558] sm:$0xff]
    %v1142 = vld [vmem:[#allocation13 + $0x560] sm:$0xff]
    %v1143 = vld [vmem:[#allocation13 + $0x568] sm:$0xff]
    %v1144 = vld [vmem:[#allocation13 + $0x570] sm:$0xff]
    %v1145 = vld [vmem:[#allocation13 + $0x578] sm:$0xff]
    %v1146 = vld [vmem:[#allocation13 + $0x580] sm:$0xff]
    %v1147 = vld [vmem:[#allocation13 + $0x588] sm:$0xff]
    %v1148 = vld [vmem:[#allocation13 + $0x590] sm:$0xff]
    %v1149 = vld [vmem:[#allocation13 + $0x598] sm:$0xff]
    %v1150 = vld [vmem:[#allocation13 + $0x5a0] sm:$0xff]
    %v1151 = vld [vmem:[#allocation13 + $0x5a8] sm:$0xff]
    %v1152 = vld [vmem:[#allocation13 + $0x5b0] sm:$0xff]
    %v1153 = vld [vmem:[#allocation13 + $0x5b8] sm:$0xff]
    %v1154 = vld [vmem:[#allocation13 + $0x5c0] sm:$0xff]
    %v1155 = vld [vmem:[#allocation13 + $0x5c8] sm:$0xff]
    %v1156 = vld [vmem:[#allocation13 + $0x5d0] sm:$0xff]
    %v1157 = vld [vmem:[#allocation13 + $0x5d8] sm:$0xff]
    %v1158 = vld [vmem:[#allocation13 + $0x5e0] sm:$0xff]
    %v1159 = vld [vmem:[#allocation13 + $0x5e8] sm:$0xff]
    %v1160 = vld [vmem:[#allocation13 + $0x5f0] sm:$0xff]
    %v1161 = vld [vmem:[#allocation13 + $0x5f8] sm:$0xff]
    %v1162 = vld [vmem:[#allocation13 + $0x600] sm:$0xff]
    %v1163 = vld [vmem:[#allocation13 + $0x608] sm:$0xff]
    %v1164 = vld [vmem:[#allocation13 + $0x610] sm:$0xff]
    %v1165 = vld [vmem:[#allocation13 + $0x618] sm:$0xff]
    %v1166 = vld [vmem:[#allocation13 + $0x620] sm:$0xff]
    %v1167 = vld [vmem:[#allocation13 + $0x628] sm:$0xff]
    %v1168 = vld [vmem:[#allocation13 + $0x630] sm:$0xff]
    %v1169 = vld [vmem:[#allocation13 + $0x638] sm:$0xff]
    %v1170 = vld [vmem:[#allocation13 + $0x640] sm:$0xff]
    %v1171 = vld [vmem:[#allocation13 + $0x648] sm:$0xff]
    %v1172 = vld [vmem:[#allocation13 + $0x650] sm:$0xff]
    %v1173 = vld [vmem:[#allocation13 + $0x658] sm:$0xff]
    %v1174 = vld [vmem:[#allocation13 + $0x660] sm:$0xff]
    %v1175 = vld [vmem:[#allocation13 + $0x668] sm:$0xff]
    %v1176 = vld [vmem:[#allocation13 + $0x670] sm:$0xff]
    %v1177 = vld [vmem:[#allocation13 + $0x678] sm:$0xff]
    %v1178 = vld [vmem:[#allocation13 + $0x680] sm:$0xff]
    %v1179 = vld [vmem:[#allocation13 + $0x688] sm:$0xff]
    %v1180 = vld [vmem:[#allocation13 + $0x690] sm:$0xff]
    %v1181 = vld [vmem:[#allocation13 + $0x698] sm:$0xff]
    %v1182 = vld [vmem:[#allocation13 + $0x6a0] sm:$0xff]
    %v1183 = vld [vmem:[#allocation13 + $0x6a8] sm:$0xff]
    %v1184 = vld [vmem:[#allocation13 + $0x6b0] sm:$0xff]
    %v1185 = vld [vmem:[#allocation13 + $0x6b8] sm:$0xff]
    %v1186 = vld [vmem:[#allocation13 + $0x6c0] sm:$0xff]
    %v1187 = vld [vmem:[#allocation13 + $0x6c8] sm:$0xff]
    %v1188 = vld [vmem:[#allocation13 + $0x6d0] sm:$0xff]
    %v1189 = vld [vmem:[#allocation13 + $0x6d8] sm:$0xff]
    %v1190 = vld [vmem:[#allocation13 + $0x6e0] sm:$0xff]
    %v1191 = vld [vmem:[#allocation13 + $0x6e8] sm:$0xff]
    %v1192 = vld [vmem:[#allocation13 + $0x6f0] sm:$0xff]
    %v1193 = vld [vmem:[#allocation13 + $0x6f8] sm:$0xff]
    %v1194 = vld [vmem:[#allocation13 + $0x700] sm:$0xff]
    %v1195 = vld [vmem:[#allocation13 + $0x708] sm:$0xff]
    %v1196 = vld [vmem:[#allocation13 + $0x710] sm:$0xff]
    %v1197 = vld [vmem:[#allocation13 + $0x718] sm:$0xff]
    %v1198 = vld [vmem:[#allocation13 + $0x720] sm:$0xff]
    %v1199 = vld [vmem:[#allocation13 + $0x728] sm:$0xff]
    %v1200 = vld [vmem:[#allocation13 + $0x730] sm:$0xff]
    %v1201 = vld [vmem:[#allocation13 + $0x738] sm:$0xff]
    %v1202 = vld [vmem:[#allocation13 + $0x740] sm:$0xff]
    %v1203 = vld [vmem:[#allocation13 + $0x748] sm:$0xff]
    %v1204 = vld [vmem:[#allocation13 + $0x750] sm:$0xff]
    %v1205 = vld [vmem:[#allocation13 + $0x758] sm:$0xff]
    %v1206 = vld [vmem:[#allocation13 + $0x760] sm:$0xff]
    %v1207 = vld [vmem:[#allocation13 + $0x768] sm:$0xff]
    %v1208 = vld [vmem:[#allocation13 + $0x770] sm:$0xff]
    %v1209 = vld [vmem:[#allocation13 + $0x778] sm:$0xff]
    %v1210 = vld [vmem:[#allocation13 + $0x780] sm:$0xff]
    %v1211 = vld [vmem:[#allocation13 + $0x788] sm:$0xff]
    %v1212 = vld [vmem:[#allocation13 + $0x790] sm:$0xff]
    %v1213 = vld [vmem:[#allocation13 + $0x798] sm:$0xff]
    %v1214 = vld [vmem:[#allocation13 + $0x7a0] sm:$0xff]
    %v1215 = vld [vmem:[#allocation13 + $0x7a8] sm:$0xff]
    %v1216 = vld [vmem:[#allocation13 + $0x7b0] sm:$0xff]
    %v1217 = vld [vmem:[#allocation13 + $0x7b8] sm:$0xff]
    %v1218 = vld [vmem:[#allocation13 + $0x7c0] sm:$0xff]
    %v1219 = vld [vmem:[#allocation13 + $0x7c8] sm:$0xff]
    %v1220 = vld [vmem:[#allocation13 + $0x7d0] sm:$0xff]
    %v1221 = vld [vmem:[#allocation13 + $0x7d8] sm:$0xff]
    %v1222 = vld [vmem:[#allocation13 + $0x7e0] sm:$0xff]
    %v1223 = vld [vmem:[#allocation13 + $0x7e8] sm:$0xff]
    %v1224 = vld [vmem:[#allocation13 + $0x7f0] sm:$0xff]
    %v1225 = vld [vmem:[#allocation13 + $0x7f8] sm:$0xff]
    %v1226 = vld [vmem:[%s10] sm:$0xff]
    %v1228 = vlaneseq
    %v1229 = vshrl.u32 %v1228, 7
    %v1230 = vsub.s32 0, %v1229
    %v1231 = vrot.slane %v1226, %v1230
    %v1232 = vlaneseq
    %v1233 = vshrl.u32 %v1232, 7
    %v1234 = vsub.s32 1, %v1233
    %v1235 = vrot.slane %v1226, %v1234
    %v1236 = vlaneseq
    %v1237 = vshrl.u32 %v1236, 7
    %v1238 = vsub.s32 2, %v1237
    %v1239 = vrot.slane %v1226, %v1238
    %v1240 = vlaneseq
    %v1241 = vshrl.u32 %v1240, 7
    %v1242 = vsub.s32 3, %v1241
    %v1243 = vrot.slane %v1226, %v1242
    %v1244 = vlaneseq
    %v1245 = vshrl.u32 %v1244, 7
    %v1246 = vsub.s32 4, %v1245
    %v1247 = vrot.slane %v1226, %v1246
    %v1248 = vlaneseq
    %v1249 = vshrl.u32 %v1248, 7
    %v1250 = vsub.s32 5, %v1249
    %v1251 = vrot.slane %v1226, %v1250
    %v1252 = vlaneseq
    %v1253 = vshrl.u32 %v1252, 7
    %v1254 = vsub.s32 6, %v1253
    %v1255 = vrot.slane %v1226, %v1254
    %v1256 = vlaneseq
    %v1257 = vshrl.u32 %v1256, 7
    %v1258 = vsub.s32 7, %v1257
    %v1259 = vrot.slane %v1226, %v1258
    %v1524 = vunpack.c.l.b16 %v970
    %v1525 = vunpack.c.h.b16 %v970
    %v1526 = vunpack.c.l.b16 %v971
    %v1527 = vunpack.c.h.b16 %v971
    %v1528 = vunpack.c.l.b16 %v972
    %v1529 = vunpack.c.h.b16 %v972
    %v1530 = vunpack.c.l.b16 %v973
    %v1531 = vunpack.c.h.b16 %v973
    %v1532 = vunpack.c.l.b16 %v974
    %v1533 = vunpack.c.h.b16 %v974
    %v1534 = vunpack.c.l.b16 %v975
    %v1535 = vunpack.c.h.b16 %v975
    %v1536 = vunpack.c.l.b16 %v976
    %v1537 = vunpack.c.h.b16 %v976
    %v1538 = vunpack.c.l.b16 %v977
    %v1539 = vunpack.c.h.b16 %v977
    %v1540 = vunpack.c.l.b16 %v978
    %v1541 = vunpack.c.h.b16 %v978
    %v1542 = vunpack.c.l.b16 %v979
    %v1543 = vunpack.c.h.b16 %v979
    %v1544 = vunpack.c.l.b16 %v980
    %v1545 = vunpack.c.h.b16 %v980
    %v1546 = vunpack.c.l.b16 %v981
    %v1547 = vunpack.c.h.b16 %v981
    %v1548 = vunpack.c.l.b16 %v982
    %v1549 = vunpack.c.h.b16 %v982
    %v1550 = vunpack.c.l.b16 %v983
    %v1551 = vunpack.c.h.b16 %v983
    %v1552 = vunpack.c.l.b16 %v984
    %v1553 = vunpack.c.h.b16 %v984
    %v1554 = vunpack.c.l.b16 %v985
    %v1555 = vunpack.c.h.b16 %v985
    %v1556 = vunpack.c.l.b16 %v986
    %v1557 = vunpack.c.h.b16 %v986
    %v1558 = vunpack.c.l.b16 %v987
    %v1559 = vunpack.c.h.b16 %v987
    %v1560 = vunpack.c.l.b16 %v988
    %v1561 = vunpack.c.h.b16 %v988
    %v1562 = vunpack.c.l.b16 %v989
    %v1563 = vunpack.c.h.b16 %v989
    %v1564 = vunpack.c.l.b16 %v990
    %v1565 = vunpack.c.h.b16 %v990
    %v1566 = vunpack.c.l.b16 %v991
    %v1567 = vunpack.c.h.b16 %v991
    %v1568 = vunpack.c.l.b16 %v992
    %v1569 = vunpack.c.h.b16 %v992
    %v1570 = vunpack.c.l.b16 %v993
    %v1571 = vunpack.c.h.b16 %v993
    %v1572 = vunpack.c.l.b16 %v994
    %v1573 = vunpack.c.h.b16 %v994
    %v1574 = vunpack.c.l.b16 %v995
    %v1575 = vunpack.c.h.b16 %v995
    %v1576 = vunpack.c.l.b16 %v996
    %v1577 = vunpack.c.h.b16 %v996
    %v1578 = vunpack.c.l.b16 %v997
    %v1579 = vunpack.c.h.b16 %v997
    %v1580 = vunpack.c.l.b16 %v998
    %v1581 = vunpack.c.h.b16 %v998
    %v1582 = vunpack.c.l.b16 %v999
    %v1583 = vunpack.c.h.b16 %v999
    %v1584 = vunpack.c.l.b16 %v1000
    %v1585 = vunpack.c.h.b16 %v1000
    %v1586 = vunpack.c.l.b16 %v1001
    %v1587 = vunpack.c.h.b16 %v1001
    %v1588 = vunpack.c.l.b16 %v1002
    %v1589 = vunpack.c.h.b16 %v1002
    %v1590 = vunpack.c.l.b16 %v1003
    %v1591 = vunpack.c.h.b16 %v1003
    %v1592 = vunpack.c.l.b16 %v1004
    %v1593 = vunpack.c.h.b16 %v1004
    %v1594 = vunpack.c.l.b16 %v1005
    %v1595 = vunpack.c.h.b16 %v1005
    %v1596 = vunpack.c.l.b16 %v1006
    %v1597 = vunpack.c.h.b16 %v1006
    %v1598 = vunpack.c.l.b16 %v1007
    %v1599 = vunpack.c.h.b16 %v1007
    %v1600 = vunpack.c.l.b16 %v1008
    %v1601 = vunpack.c.h.b16 %v1008
    %v1602 = vunpack.c.l.b16 %v1009
    %v1603 = vunpack.c.h.b16 %v1009
    %v1604 = vunpack.c.l.b16 %v1010
    %v1605 = vunpack.c.h.b16 %v1010
    %v1606 = vunpack.c.l.b16 %v1011
    %v1607 = vunpack.c.h.b16 %v1011
    %v1608 = vunpack.c.l.b16 %v1012
    %v1609 = vunpack.c.h.b16 %v1012
    %v1610 = vunpack.c.l.b16 %v1013
    %v1611 = vunpack.c.h.b16 %v1013
    %v1612 = vunpack.c.l.b16 %v1014
    %v1613 = vunpack.c.h.b16 %v1014
    %v1614 = vunpack.c.l.b16 %v1015
    %v1615 = vunpack.c.h.b16 %v1015
    %v1616 = vunpack.c.l.b16 %v1016
    %v1617 = vunpack.c.h.b16 %v1016
    %v1618 = vunpack.c.l.b16 %v1017
    %v1619 = vunpack.c.h.b16 %v1017
    %v1620 = vunpack.c.l.b16 %v1018
    %v1621 = vunpack.c.h.b16 %v1018
    %v1622 = vunpack.c.l.b16 %v1019
    %v1623 = vunpack.c.h.b16 %v1019
    %v1624 = vunpack.c.l.b16 %v1020
    %v1625 = vunpack.c.h.b16 %v1020
    %v1626 = vunpack.c.l.b16 %v1021
    %v1627 = vunpack.c.h.b16 %v1021
    %v1628 = vunpack.c.l.b16 %v1022
    %v1629 = vunpack.c.h.b16 %v1022
    %v1630 = vunpack.c.l.b16 %v1023
    %v1631 = vunpack.c.h.b16 %v1023
    %v1632 = vunpack.c.l.b16 %v1024
    %v1633 = vunpack.c.h.b16 %v1024
    %v1634 = vunpack.c.l.b16 %v1025
    %v1635 = vunpack.c.h.b16 %v1025
    %v1636 = vunpack.c.l.b16 %v1026
    %v1637 = vunpack.c.h.b16 %v1026
    %v1638 = vunpack.c.l.b16 %v1027
    %v1639 = vunpack.c.h.b16 %v1027
    %v1640 = vunpack.c.l.b16 %v1028
    %v1641 = vunpack.c.h.b16 %v1028
    %v1642 = vunpack.c.l.b16 %v1029
    %v1643 = vunpack.c.h.b16 %v1029
    %v1644 = vunpack.c.l.b16 %v1030
    %v1645 = vunpack.c.h.b16 %v1030
    %v1646 = vunpack.c.l.b16 %v1031
    %v1647 = vunpack.c.h.b16 %v1031
    %v1648 = vunpack.c.l.b16 %v1032
    %v1649 = vunpack.c.h.b16 %v1032
    %v1650 = vunpack.c.l.b16 %v1033
    %v1651 = vunpack.c.h.b16 %v1033
    %v1652 = vunpack.c.l.b16 %v1034
    %v1653 = vunpack.c.h.b16 %v1034
    %v1654 = vunpack.c.l.b16 %v1035
    %v1655 = vunpack.c.h.b16 %v1035
    %v1656 = vunpack.c.l.b16 %v1036
    %v1657 = vunpack.c.h.b16 %v1036
    %v1658 = vunpack.c.l.b16 %v1037
    %v1659 = vunpack.c.h.b16 %v1037
    %v1660 = vunpack.c.l.b16 %v1038
    %v1661 = vunpack.c.h.b16 %v1038
    %v1662 = vunpack.c.l.b16 %v1039
    %v1663 = vunpack.c.h.b16 %v1039
    %v1664 = vunpack.c.l.b16 %v1040
    %v1665 = vunpack.c.h.b16 %v1040
    %v1666 = vunpack.c.l.b16 %v1041
    %v1667 = vunpack.c.h.b16 %v1041
    %v1668 = vunpack.c.l.b16 %v1042
    %v1669 = vunpack.c.h.b16 %v1042
    %v1670 = vunpack.c.l.b16 %v1043
    %v1671 = vunpack.c.h.b16 %v1043
    %v1672 = vunpack.c.l.b16 %v1044
    %v1673 = vunpack.c.h.b16 %v1044
    %v1674 = vunpack.c.l.b16 %v1045
    %v1675 = vunpack.c.h.b16 %v1045
    %v1676 = vunpack.c.l.b16 %v1046
    %v1677 = vunpack.c.h.b16 %v1046
    %v1678 = vunpack.c.l.b16 %v1047
    %v1679 = vunpack.c.h.b16 %v1047
    %v1680 = vunpack.c.l.b16 %v1048
    %v1681 = vunpack.c.h.b16 %v1048
    %v1682 = vunpack.c.l.b16 %v1049
    %v1683 = vunpack.c.h.b16 %v1049
    %v1684 = vunpack.c.l.b16 %v1050
    %v1685 = vunpack.c.h.b16 %v1050
    %v1686 = vunpack.c.l.b16 %v1051
    %v1687 = vunpack.c.h.b16 %v1051
    %v1688 = vunpack.c.l.b16 %v1052
    %v1689 = vunpack.c.h.b16 %v1052
    %v1690 = vunpack.c.l.b16 %v1053
    %v1691 = vunpack.c.h.b16 %v1053
    %v1692 = vunpack.c.l.b16 %v1054
    %v1693 = vunpack.c.h.b16 %v1054
    %v1694 = vunpack.c.l.b16 %v1055
    %v1695 = vunpack.c.h.b16 %v1055
    %v1696 = vunpack.c.l.b16 %v1056
    %v1697 = vunpack.c.h.b16 %v1056
    %v1698 = vunpack.c.l.b16 %v1057
    %v1699 = vunpack.c.h.b16 %v1057
    %v1700 = vunpack.c.l.b16 %v1058
    %v1701 = vunpack.c.h.b16 %v1058
    %v1702 = vunpack.c.l.b16 %v1059
    %v1703 = vunpack.c.h.b16 %v1059
    %v1704 = vunpack.c.l.b16 %v1060
    %v1705 = vunpack.c.h.b16 %v1060
    %v1706 = vunpack.c.l.b16 %v1061
    %v1707 = vunpack.c.h.b16 %v1061
    %v1708 = vunpack.c.l.b16 %v1062
    %v1709 = vunpack.c.h.b16 %v1062
    %v1710 = vunpack.c.l.b16 %v1063
    %v1711 = vunpack.c.h.b16 %v1063
    %v1712 = vunpack.c.l.b16 %v1064
    %v1713 = vunpack.c.h.b16 %v1064
    %v1714 = vunpack.c.l.b16 %v1065
    %v1715 = vunpack.c.h.b16 %v1065
    %v1716 = vunpack.c.l.b16 %v1066
    %v1717 = vunpack.c.h.b16 %v1066
    %v1718 = vunpack.c.l.b16 %v1067
    %v1719 = vunpack.c.h.b16 %v1067
    %v1720 = vunpack.c.l.b16 %v1068
    %v1721 = vunpack.c.h.b16 %v1068
    %v1722 = vunpack.c.l.b16 %v1069
    %v1723 = vunpack.c.h.b16 %v1069
    %v1724 = vunpack.c.l.b16 %v1070
    %v1725 = vunpack.c.h.b16 %v1070
    %v1726 = vunpack.c.l.b16 %v1071
    %v1727 = vunpack.c.h.b16 %v1071
    %v1728 = vunpack.c.l.b16 %v1072
    %v1729 = vunpack.c.h.b16 %v1072
    %v1730 = vunpack.c.l.b16 %v1073
    %v1731 = vunpack.c.h.b16 %v1073
    %v1732 = vunpack.c.l.b16 %v1074
    %v1733 = vunpack.c.h.b16 %v1074
    %v1734 = vunpack.c.l.b16 %v1075
    %v1735 = vunpack.c.h.b16 %v1075
    %v1736 = vunpack.c.l.b16 %v1076
    %v1737 = vunpack.c.h.b16 %v1076
    %v1738 = vunpack.c.l.b16 %v1077
    %v1739 = vunpack.c.h.b16 %v1077
    %v1740 = vunpack.c.l.b16 %v1078
    %v1741 = vunpack.c.h.b16 %v1078
    %v1742 = vunpack.c.l.b16 %v1079
    %v1743 = vunpack.c.h.b16 %v1079
    %v1744 = vunpack.c.l.b16 %v1080
    %v1745 = vunpack.c.h.b16 %v1080
    %v1746 = vunpack.c.l.b16 %v1081
    %v1747 = vunpack.c.h.b16 %v1081
    %v1748 = vunpack.c.l.b16 %v1082
    %v1749 = vunpack.c.h.b16 %v1082
    %v1750 = vunpack.c.l.b16 %v1083
    %v1751 = vunpack.c.h.b16 %v1083
    %v1752 = vunpack.c.l.b16 %v1084
    %v1753 = vunpack.c.h.b16 %v1084
    %v1754 = vunpack.c.l.b16 %v1085
    %v1755 = vunpack.c.h.b16 %v1085
    %v1756 = vunpack.c.l.b16 %v1086
    %v1757 = vunpack.c.h.b16 %v1086
    %v1758 = vunpack.c.l.b16 %v1087
    %v1759 = vunpack.c.h.b16 %v1087
    %v1760 = vunpack.c.l.b16 %v1088
    %v1761 = vunpack.c.h.b16 %v1088
    %v1762 = vunpack.c.l.b16 %v1089
    %v1763 = vunpack.c.h.b16 %v1089
    %v1764 = vunpack.c.l.b16 %v1090
    %v1765 = vunpack.c.h.b16 %v1090
    %v1766 = vunpack.c.l.b16 %v1091
    %v1767 = vunpack.c.h.b16 %v1091
    %v1768 = vunpack.c.l.b16 %v1092
    %v1769 = vunpack.c.h.b16 %v1092
    %v1770 = vunpack.c.l.b16 %v1093
    %v1771 = vunpack.c.h.b16 %v1093
    %v1772 = vunpack.c.l.b16 %v1094
    %v1773 = vunpack.c.h.b16 %v1094
    %v1774 = vunpack.c.l.b16 %v1095
    %v1775 = vunpack.c.h.b16 %v1095
    %v1776 = vunpack.c.l.b16 %v1096
    %v1777 = vunpack.c.h.b16 %v1096
    %v1778 = vunpack.c.l.b16 %v1097
    %v1779 = vunpack.c.h.b16 %v1097
    %v1780 = vunpack.c.l.b16 %v1098
    %v1781 = vunpack.c.h.b16 %v1098
    %v1782 = vunpack.c.l.b16 %v1099
    %v1783 = vunpack.c.h.b16 %v1099
    %v1784 = vunpack.c.l.b16 %v1100
    %v1785 = vunpack.c.h.b16 %v1100
    %v1786 = vunpack.c.l.b16 %v1101
    %v1787 = vunpack.c.h.b16 %v1101
    %v1788 = vunpack.c.l.b16 %v1102
    %v1789 = vunpack.c.h.b16 %v1102
    %v1790 = vunpack.c.l.b16 %v1103
    %v1791 = vunpack.c.h.b16 %v1103
    %v1792 = vunpack.c.l.b16 %v1104
    %v1793 = vunpack.c.h.b16 %v1104
    %v1794 = vunpack.c.l.b16 %v1105
    %v1795 = vunpack.c.h.b16 %v1105
    %v1796 = vunpack.c.l.b16 %v1106
    %v1797 = vunpack.c.h.b16 %v1106
    %v1798 = vunpack.c.l.b16 %v1107
    %v1799 = vunpack.c.h.b16 %v1107
    %v1800 = vunpack.c.l.b16 %v1108
    %v1801 = vunpack.c.h.b16 %v1108
    %v1802 = vunpack.c.l.b16 %v1109
    %v1803 = vunpack.c.h.b16 %v1109
    %v1804 = vunpack.c.l.b16 %v1110
    %v1805 = vunpack.c.h.b16 %v1110
    %v1806 = vunpack.c.l.b16 %v1111
    %v1807 = vunpack.c.h.b16 %v1111
    %v1808 = vunpack.c.l.b16 %v1112
    %v1809 = vunpack.c.h.b16 %v1112
    %v1810 = vunpack.c.l.b16 %v1113
    %v1811 = vunpack.c.h.b16 %v1113
    %v1812 = vunpack.c.l.b16 %v1114
    %v1813 = vunpack.c.h.b16 %v1114
    %v1814 = vunpack.c.l.b16 %v1115
    %v1815 = vunpack.c.h.b16 %v1115
    %v1816 = vunpack.c.l.b16 %v1116
    %v1817 = vunpack.c.h.b16 %v1116
    %v1818 = vunpack.c.l.b16 %v1117
    %v1819 = vunpack.c.h.b16 %v1117
    %v1820 = vunpack.c.l.b16 %v1118
    %v1821 = vunpack.c.h.b16 %v1118
    %v1822 = vunpack.c.l.b16 %v1119
    %v1823 = vunpack.c.h.b16 %v1119
    %v1824 = vunpack.c.l.b16 %v1120
    %v1825 = vunpack.c.h.b16 %v1120
    %v1826 = vunpack.c.l.b16 %v1121
    %v1827 = vunpack.c.h.b16 %v1121
    %v1828 = vunpack.c.l.b16 %v1122
    %v1829 = vunpack.c.h.b16 %v1122
    %v1830 = vunpack.c.l.b16 %v1123
    %v1831 = vunpack.c.h.b16 %v1123
    %v1832 = vunpack.c.l.b16 %v1124
    %v1833 = vunpack.c.h.b16 %v1124
    %v1834 = vunpack.c.l.b16 %v1125
    %v1835 = vunpack.c.h.b16 %v1125
    %v1836 = vunpack.c.l.b16 %v1126
    %v1837 = vunpack.c.h.b16 %v1126
    %v1838 = vunpack.c.l.b16 %v1127
    %v1839 = vunpack.c.h.b16 %v1127
    %v1840 = vunpack.c.l.b16 %v1128
    %v1841 = vunpack.c.h.b16 %v1128
    %v1842 = vunpack.c.l.b16 %v1129
    %v1843 = vunpack.c.h.b16 %v1129
    %v1844 = vunpack.c.l.b16 %v1130
    %v1845 = vunpack.c.h.b16 %v1130
    %v1846 = vunpack.c.l.b16 %v1131
    %v1847 = vunpack.c.h.b16 %v1131
    %v1848 = vunpack.c.l.b16 %v1132
    %v1849 = vunpack.c.h.b16 %v1132
    %v1850 = vunpack.c.l.b16 %v1133
    %v1851 = vunpack.c.h.b16 %v1133
    %v1852 = vunpack.c.l.b16 %v1134
    %v1853 = vunpack.c.h.b16 %v1134
    %v1854 = vunpack.c.l.b16 %v1135
    %v1855 = vunpack.c.h.b16 %v1135
    %v1856 = vunpack.c.l.b16 %v1136
    %v1857 = vunpack.c.h.b16 %v1136
    %v1858 = vunpack.c.l.b16 %v1137
    %v1859 = vunpack.c.h.b16 %v1137
    %v1860 = vunpack.c.l.b16 %v1138
    %v1861 = vunpack.c.h.b16 %v1138
    %v1862 = vunpack.c.l.b16 %v1139
    %v1863 = vunpack.c.h.b16 %v1139
    %v1864 = vunpack.c.l.b16 %v1140
    %v1865 = vunpack.c.h.b16 %v1140
    %v1866 = vunpack.c.l.b16 %v1141
    %v1867 = vunpack.c.h.b16 %v1141
    %v1868 = vunpack.c.l.b16 %v1142
    %v1869 = vunpack.c.h.b16 %v1142
    %v1870 = vunpack.c.l.b16 %v1143
    %v1871 = vunpack.c.h.b16 %v1143
    %v1872 = vunpack.c.l.b16 %v1144
    %v1873 = vunpack.c.h.b16 %v1144
    %v1874 = vunpack.c.l.b16 %v1145
    %v1875 = vunpack.c.h.b16 %v1145
    %v1876 = vunpack.c.l.b16 %v1146
    %v1877 = vunpack.c.h.b16 %v1146
    %v1878 = vunpack.c.l.b16 %v1147
    %v1879 = vunpack.c.h.b16 %v1147
    %v1880 = vunpack.c.l.b16 %v1148
    %v1881 = vunpack.c.h.b16 %v1148
    %v1882 = vunpack.c.l.b16 %v1149
    %v1883 = vunpack.c.h.b16 %v1149
    %v1884 = vunpack.c.l.b16 %v1150
    %v1885 = vunpack.c.h.b16 %v1150
    %v1886 = vunpack.c.l.b16 %v1151
    %v1887 = vunpack.c.h.b16 %v1151
    %v1888 = vunpack.c.l.b16 %v1152
    %v1889 = vunpack.c.h.b16 %v1152
    %v1890 = vunpack.c.l.b16 %v1153
    %v1891 = vunpack.c.h.b16 %v1153
    %v1892 = vunpack.c.l.b16 %v1154
    %v1893 = vunpack.c.h.b16 %v1154
    %v1894 = vunpack.c.l.b16 %v1155
    %v1895 = vunpack.c.h.b16 %v1155
    %v1896 = vunpack.c.l.b16 %v1156
    %v1897 = vunpack.c.h.b16 %v1156
    %v1898 = vunpack.c.l.b16 %v1157
    %v1899 = vunpack.c.h.b16 %v1157
    %v1900 = vunpack.c.l.b16 %v1158
    %v1901 = vunpack.c.h.b16 %v1158
    %v1902 = vunpack.c.l.b16 %v1159
    %v1903 = vunpack.c.h.b16 %v1159
    %v1904 = vunpack.c.l.b16 %v1160
    %v1905 = vunpack.c.h.b16 %v1160
    %v1906 = vunpack.c.l.b16 %v1161
    %v1907 = vunpack.c.h.b16 %v1161
    %v1908 = vunpack.c.l.b16 %v1162
    %v1909 = vunpack.c.h.b16 %v1162
    %v1910 = vunpack.c.l.b16 %v1163
    %v1911 = vunpack.c.h.b16 %v1163
    %v1912 = vunpack.c.l.b16 %v1164
    %v1913 = vunpack.c.h.b16 %v1164
    %v1914 = vunpack.c.l.b16 %v1165
    %v1915 = vunpack.c.h.b16 %v1165
    %v1916 = vunpack.c.l.b16 %v1166
    %v1917 = vunpack.c.h.b16 %v1166
    %v1918 = vunpack.c.l.b16 %v1167
    %v1919 = vunpack.c.h.b16 %v1167
    %v1920 = vunpack.c.l.b16 %v1168
    %v1921 = vunpack.c.h.b16 %v1168
    %v1922 = vunpack.c.l.b16 %v1169
    %v1923 = vunpack.c.h.b16 %v1169
    %v1924 = vunpack.c.l.b16 %v1170
    %v1925 = vunpack.c.h.b16 %v1170
    %v1926 = vunpack.c.l.b16 %v1171
    %v1927 = vunpack.c.h.b16 %v1171
    %v1928 = vunpack.c.l.b16 %v1172
    %v1929 = vunpack.c.h.b16 %v1172
    %v1930 = vunpack.c.l.b16 %v1173
    %v1931 = vunpack.c.h.b16 %v1173
    %v1932 = vunpack.c.l.b16 %v1174
    %v1933 = vunpack.c.h.b16 %v1174
    %v1934 = vunpack.c.l.b16 %v1175
    %v1935 = vunpack.c.h.b16 %v1175
    %v1936 = vunpack.c.l.b16 %v1176
    %v1937 = vunpack.c.h.b16 %v1176
    %v1938 = vunpack.c.l.b16 %v1177
    %v1939 = vunpack.c.h.b16 %v1177
    %v1940 = vunpack.c.l.b16 %v1178
    %v1941 = vunpack.c.h.b16 %v1178
    %v1942 = vunpack.c.l.b16 %v1179
    %v1943 = vunpack.c.h.b16 %v1179
    %v1944 = vunpack.c.l.b16 %v1180
    %v1945 = vunpack.c.h.b16 %v1180
    %v1946 = vunpack.c.l.b16 %v1181
    %v1947 = vunpack.c.h.b16 %v1181
    %v1948 = vunpack.c.l.b16 %v1182
    %v1949 = vunpack.c.h.b16 %v1182
    %v1950 = vunpack.c.l.b16 %v1183
    %v1951 = vunpack.c.h.b16 %v1183
    %v1952 = vunpack.c.l.b16 %v1184
    %v1953 = vunpack.c.h.b16 %v1184
    %v1954 = vunpack.c.l.b16 %v1185
    %v1955 = vunpack.c.h.b16 %v1185
    %v1956 = vunpack.c.l.b16 %v1186
    %v1957 = vunpack.c.h.b16 %v1186
    %v1958 = vunpack.c.l.b16 %v1187
    %v1959 = vunpack.c.h.b16 %v1187
    %v1960 = vunpack.c.l.b16 %v1188
    %v1961 = vunpack.c.h.b16 %v1188
    %v1962 = vunpack.c.l.b16 %v1189
    %v1963 = vunpack.c.h.b16 %v1189
    %v1964 = vunpack.c.l.b16 %v1190
    %v1965 = vunpack.c.h.b16 %v1190
    %v1966 = vunpack.c.l.b16 %v1191
    %v1967 = vunpack.c.h.b16 %v1191
    %v1968 = vunpack.c.l.b16 %v1192
    %v1969 = vunpack.c.h.b16 %v1192
    %v1970 = vunpack.c.l.b16 %v1193
    %v1971 = vunpack.c.h.b16 %v1193
    %v1972 = vunpack.c.l.b16 %v1194
    %v1973 = vunpack.c.h.b16 %v1194
    %v1974 = vunpack.c.l.b16 %v1195
    %v1975 = vunpack.c.h.b16 %v1195
    %v1976 = vunpack.c.l.b16 %v1196
    %v1977 = vunpack.c.h.b16 %v1196
    %v1978 = vunpack.c.l.b16 %v1197
    %v1979 = vunpack.c.h.b16 %v1197
    %v1980 = vunpack.c.l.b16 %v1198
    %v1981 = vunpack.c.h.b16 %v1198
    %v1982 = vunpack.c.l.b16 %v1199
    %v1983 = vunpack.c.h.b16 %v1199
    %v1984 = vunpack.c.l.b16 %v1200
    %v1985 = vunpack.c.h.b16 %v1200
    %v1986 = vunpack.c.l.b16 %v1201
    %v1987 = vunpack.c.h.b16 %v1201
    %v1988 = vunpack.c.l.b16 %v1202
    %v1989 = vunpack.c.h.b16 %v1202
    %v1990 = vunpack.c.l.b16 %v1203
    %v1991 = vunpack.c.h.b16 %v1203
    %v1992 = vunpack.c.l.b16 %v1204
    %v1993 = vunpack.c.h.b16 %v1204
    %v1994 = vunpack.c.l.b16 %v1205
    %v1995 = vunpack.c.h.b16 %v1205
    %v1996 = vunpack.c.l.b16 %v1206
    %v1997 = vunpack.c.h.b16 %v1206
    %v1998 = vunpack.c.l.b16 %v1207
    %v1999 = vunpack.c.h.b16 %v1207
    %v2000 = vunpack.c.l.b16 %v1208
    %v2001 = vunpack.c.h.b16 %v1208
    %v2002 = vunpack.c.l.b16 %v1209
    %v2003 = vunpack.c.h.b16 %v1209
    %v2004 = vunpack.c.l.b16 %v1210
    %v2005 = vunpack.c.h.b16 %v1210
    %v2006 = vunpack.c.l.b16 %v1211
    %v2007 = vunpack.c.h.b16 %v1211
    %v2008 = vunpack.c.l.b16 %v1212
    %v2009 = vunpack.c.h.b16 %v1212
    %v2010 = vunpack.c.l.b16 %v1213
    %v2011 = vunpack.c.h.b16 %v1213
    %v2012 = vunpack.c.l.b16 %v1214
    %v2013 = vunpack.c.h.b16 %v1214
    %v2014 = vunpack.c.l.b16 %v1215
    %v2015 = vunpack.c.h.b16 %v1215
    %v2016 = vunpack.c.l.b16 %v1216
    %v2017 = vunpack.c.h.b16 %v1216
    %v2018 = vunpack.c.l.b16 %v1217
    %v2019 = vunpack.c.h.b16 %v1217
    %v2020 = vunpack.c.l.b16 %v1218
    %v2021 = vunpack.c.h.b16 %v1218
    %v2022 = vunpack.c.l.b16 %v1219
    %v2023 = vunpack.c.h.b16 %v1219
    %v2024 = vunpack.c.l.b16 %v1220
    %v2025 = vunpack.c.h.b16 %v1220
    %v2026 = vunpack.c.l.b16 %v1221
    %v2027 = vunpack.c.h.b16 %v1221
    %v2028 = vunpack.c.l.b16 %v1222
    %v2029 = vunpack.c.h.b16 %v1222
    %v2030 = vunpack.c.l.b16 %v1223
    %v2031 = vunpack.c.h.b16 %v1223
    %v2032 = vunpack.c.l.b16 %v1224
    %v2033 = vunpack.c.h.b16 %v1224
    %v2034 = vunpack.c.l.b16 %v1225
    %v2035 = vunpack.c.h.b16 %v1225
    %v2036 = vpack.c.b16 %v1532, %v1524
    %v2037 = vpack.c.b16 %v1533, %v1525
    %v2038 = vpack.c.b16 %v1534, %v1526
    %v2039 = vpack.c.b16 %v1535, %v1527
    %v2040 = vpack.c.b16 %v1536, %v1528
    %v2041 = vpack.c.b16 %v1537, %v1529
    %v2042 = vpack.c.b16 %v1538, %v1530
    %v2043 = vpack.c.b16 %v1539, %v1531
    %v2044 = vpack.c.b16 %v1548, %v1540
    %v2045 = vpack.c.b16 %v1549, %v1541
    %v2046 = vpack.c.b16 %v1550, %v1542
    %v2047 = vpack.c.b16 %v1551, %v1543
    %v2048 = vpack.c.b16 %v1552, %v1544
    %v2049 = vpack.c.b16 %v1553, %v1545
    %v2050 = vpack.c.b16 %v1554, %v1546
    %v2051 = vpack.c.b16 %v1555, %v1547
    %v2052 = vpack.c.b16 %v1564, %v1556
    %v2053 = vpack.c.b16 %v1565, %v1557
    %v2054 = vpack.c.b16 %v1566, %v1558
    %v2055 = vpack.c.b16 %v1567, %v1559
    %v2056 = vpack.c.b16 %v1568, %v1560
    %v2057 = vpack.c.b16 %v1569, %v1561
    %v2058 = vpack.c.b16 %v1570, %v1562
    %v2059 = vpack.c.b16 %v1571, %v1563
    %v2060 = vpack.c.b16 %v1580, %v1572
    %v2061 = vpack.c.b16 %v1581, %v1573
    %v2062 = vpack.c.b16 %v1582, %v1574
    %v2063 = vpack.c.b16 %v1583, %v1575
    %v2064 = vpack.c.b16 %v1584, %v1576
    %v2065 = vpack.c.b16 %v1585, %v1577
    %v2066 = vpack.c.b16 %v1586, %v1578
    %v2067 = vpack.c.b16 %v1587, %v1579
    %v2068 = vpack.c.b16 %v1596, %v1588
    %v2069 = vpack.c.b16 %v1597, %v1589
    %v2070 = vpack.c.b16 %v1598, %v1590
    %v2071 = vpack.c.b16 %v1599, %v1591
    %v2072 = vpack.c.b16 %v1600, %v1592
    %v2073 = vpack.c.b16 %v1601, %v1593
    %v2074 = vpack.c.b16 %v1602, %v1594
    %v2075 = vpack.c.b16 %v1603, %v1595
    %v2076 = vpack.c.b16 %v1612, %v1604
    %v2077 = vpack.c.b16 %v1613, %v1605
    %v2078 = vpack.c.b16 %v1614, %v1606
    %v2079 = vpack.c.b16 %v1615, %v1607
    %v2080 = vpack.c.b16 %v1616, %v1608
    %v2081 = vpack.c.b16 %v1617, %v1609
    %v2082 = vpack.c.b16 %v1618, %v1610
    %v2083 = vpack.c.b16 %v1619, %v1611
    %v2084 = vpack.c.b16 %v1628, %v1620
    %v2085 = vpack.c.b16 %v1629, %v1621
    %v2086 = vpack.c.b16 %v1630, %v1622
    %v2087 = vpack.c.b16 %v1631, %v1623
    %v2088 = vpack.c.b16 %v1632, %v1624
    %v2089 = vpack.c.b16 %v1633, %v1625
    %v2090 = vpack.c.b16 %v1634, %v1626
    %v2091 = vpack.c.b16 %v1635, %v1627
    %v2092 = vpack.c.b16 %v1644, %v1636
    %v2093 = vpack.c.b16 %v1645, %v1637
    %v2094 = vpack.c.b16 %v1646, %v1638
    %v2095 = vpack.c.b16 %v1647, %v1639
    %v2096 = vpack.c.b16 %v1648, %v1640
    %v2097 = vpack.c.b16 %v1649, %v1641
    %v2098 = vpack.c.b16 %v1650, %v1642
    %v2099 = vpack.c.b16 %v1651, %v1643
    %v2100 = vpack.c.b16 %v1660, %v1652
    %v2101 = vpack.c.b16 %v1661, %v1653
    %v2102 = vpack.c.b16 %v1662, %v1654
    %v2103 = vpack.c.b16 %v1663, %v1655
    %v2104 = vpack.c.b16 %v1664, %v1656
    %v2105 = vpack.c.b16 %v1665, %v1657
    %v2106 = vpack.c.b16 %v1666, %v1658
    %v2107 = vpack.c.b16 %v1667, %v1659
    %v2108 = vpack.c.b16 %v1676, %v1668
    %v2109 = vpack.c.b16 %v1677, %v1669
    %v2110 = vpack.c.b16 %v1678, %v1670
    %v2111 = vpack.c.b16 %v1679, %v1671
    %v2112 = vpack.c.b16 %v1680, %v1672
    %v2113 = vpack.c.b16 %v1681, %v1673
    %v2114 = vpack.c.b16 %v1682, %v1674
    %v2115 = vpack.c.b16 %v1683, %v1675
    %v2116 = vpack.c.b16 %v1692, %v1684
    %v2117 = vpack.c.b16 %v1693, %v1685
    %v2118 = vpack.c.b16 %v1694, %v1686
    %v2119 = vpack.c.b16 %v1695, %v1687
    %v2120 = vpack.c.b16 %v1696, %v1688
    %v2121 = vpack.c.b16 %v1697, %v1689
    %v2122 = vpack.c.b16 %v1698, %v1690
    %v2123 = vpack.c.b16 %v1699, %v1691
    %v2124 = vpack.c.b16 %v1708, %v1700
    %v2125 = vpack.c.b16 %v1709, %v1701
    %v2126 = vpack.c.b16 %v1710, %v1702
    %v2127 = vpack.c.b16 %v1711, %v1703
    %v2128 = vpack.c.b16 %v1712, %v1704
    %v2129 = vpack.c.b16 %v1713, %v1705
    %v2130 = vpack.c.b16 %v1714, %v1706
    %v2131 = vpack.c.b16 %v1715, %v1707
    %v2132 = vpack.c.b16 %v1724, %v1716
    %v2133 = vpack.c.b16 %v1725, %v1717
    %v2134 = vpack.c.b16 %v1726, %v1718
    %v2135 = vpack.c.b16 %v1727, %v1719
    %v2136 = vpack.c.b16 %v1728, %v1720
    %v2137 = vpack.c.b16 %v1729, %v1721
    %v2138 = vpack.c.b16 %v1730, %v1722
    %v2139 = vpack.c.b16 %v1731, %v1723
    %v2140 = vpack.c.b16 %v1740, %v1732
    %v2141 = vpack.c.b16 %v1741, %v1733
    %v2142 = vpack.c.b16 %v1742, %v1734
    %v2143 = vpack.c.b16 %v1743, %v1735
    %v2144 = vpack.c.b16 %v1744, %v1736
    %v2145 = vpack.c.b16 %v1745, %v1737
    %v2146 = vpack.c.b16 %v1746, %v1738
    %v2147 = vpack.c.b16 %v1747, %v1739
    %v2148 = vpack.c.b16 %v1756, %v1748
    %v2149 = vpack.c.b16 %v1757, %v1749
    %v2150 = vpack.c.b16 %v1758, %v1750
    %v2151 = vpack.c.b16 %v1759, %v1751
    %v2152 = vpack.c.b16 %v1760, %v1752
    %v2153 = vpack.c.b16 %v1761, %v1753
    %v2154 = vpack.c.b16 %v1762, %v1754
    %v2155 = vpack.c.b16 %v1763, %v1755
    %v2156 = vpack.c.b16 %v1772, %v1764
    %v2157 = vpack.c.b16 %v1773, %v1765
    %v2158 = vpack.c.b16 %v1774, %v1766
    %v2159 = vpack.c.b16 %v1775, %v1767
    %v2160 = vpack.c.b16 %v1776, %v1768
    %v2161 = vpack.c.b16 %v1777, %v1769
    %v2162 = vpack.c.b16 %v1778, %v1770
    %v2163 = vpack.c.b16 %v1779, %v1771
    %v2164 = vpack.c.b16 %v1788, %v1780
    %v2165 = vpack.c.b16 %v1789, %v1781
    %v2166 = vpack.c.b16 %v1790, %v1782
    %v2167 = vpack.c.b16 %v1791, %v1783
    %v2168 = vpack.c.b16 %v1792, %v1784
    %v2169 = vpack.c.b16 %v1793, %v1785
    %v2170 = vpack.c.b16 %v1794, %v1786
    %v2171 = vpack.c.b16 %v1795, %v1787
    %v2172 = vpack.c.b16 %v1804, %v1796
    %v2173 = vpack.c.b16 %v1805, %v1797
    %v2174 = vpack.c.b16 %v1806, %v1798
    %v2175 = vpack.c.b16 %v1807, %v1799
    %v2176 = vpack.c.b16 %v1808, %v1800
    %v2177 = vpack.c.b16 %v1809, %v1801
    %v2178 = vpack.c.b16 %v1810, %v1802
    %v2179 = vpack.c.b16 %v1811, %v1803
    %v2180 = vpack.c.b16 %v1820, %v1812
    %v2181 = vpack.c.b16 %v1821, %v1813
    %v2182 = vpack.c.b16 %v1822, %v1814
    %v2183 = vpack.c.b16 %v1823, %v1815
    %v2184 = vpack.c.b16 %v1824, %v1816
    %v2185 = vpack.c.b16 %v1825, %v1817
    %v2186 = vpack.c.b16 %v1826, %v1818
    %v2187 = vpack.c.b16 %v1827, %v1819
    %v2188 = vpack.c.b16 %v1836, %v1828
    %v2189 = vpack.c.b16 %v1837, %v1829
    %v2190 = vpack.c.b16 %v1838, %v1830
    %v2191 = vpack.c.b16 %v1839, %v1831
    %v2192 = vpack.c.b16 %v1840, %v1832
    %v2193 = vpack.c.b16 %v1841, %v1833
    %v2194 = vpack.c.b16 %v1842, %v1834
    %v2195 = vpack.c.b16 %v1843, %v1835
    %v2196 = vpack.c.b16 %v1852, %v1844
    %v2197 = vpack.c.b16 %v1853, %v1845
    %v2198 = vpack.c.b16 %v1854, %v1846
    %v2199 = vpack.c.b16 %v1855, %v1847
    %v2200 = vpack.c.b16 %v1856, %v1848
    %v2201 = vpack.c.b16 %v1857, %v1849
    %v2202 = vpack.c.b16 %v1858, %v1850
    %v2203 = vpack.c.b16 %v1859, %v1851
    %v2204 = vpack.c.b16 %v1868, %v1860
    %v2205 = vpack.c.b16 %v1869, %v1861
    %v2206 = vpack.c.b16 %v1870, %v1862
    %v2207 = vpack.c.b16 %v1871, %v1863
    %v2208 = vpack.c.b16 %v1872, %v1864
    %v2209 = vpack.c.b16 %v1873, %v1865
    %v2210 = vpack.c.b16 %v1874, %v1866
    %v2211 = vpack.c.b16 %v1875, %v1867
    %v2212 = vpack.c.b16 %v1884, %v1876
    %v2213 = vpack.c.b16 %v1885, %v1877
    %v2214 = vpack.c.b16 %v1886, %v1878
    %v2215 = vpack.c.b16 %v1887, %v1879
    %v2216 = vpack.c.b16 %v1888, %v1880
    %v2217 = vpack.c.b16 %v1889, %v1881
    %v2218 = vpack.c.b16 %v1890, %v1882
    %v2219 = vpack.c.b16 %v1891, %v1883
    %v2220 = vpack.c.b16 %v1900, %v1892
    %v2221 = vpack.c.b16 %v1901, %v1893
    %v2222 = vpack.c.b16 %v1902, %v1894
    %v2223 = vpack.c.b16 %v1903, %v1895
    %v2224 = vpack.c.b16 %v1904, %v1896
    %v2225 = vpack.c.b16 %v1905, %v1897
    %v2226 = vpack.c.b16 %v1906, %v1898
    %v2227 = vpack.c.b16 %v1907, %v1899
    %v2228 = vpack.c.b16 %v1916, %v1908
    %v2229 = vpack.c.b16 %v1917, %v1909
    %v2230 = vpack.c.b16 %v1918, %v1910
    %v2231 = vpack.c.b16 %v1919, %v1911
    %v2232 = vpack.c.b16 %v1920, %v1912
    %v2233 = vpack.c.b16 %v1921, %v1913
    %v2234 = vpack.c.b16 %v1922, %v1914
    %v2235 = vpack.c.b16 %v1923, %v1915
    %v2236 = vpack.c.b16 %v1932, %v1924
    %v2237 = vpack.c.b16 %v1933, %v1925
    %v2238 = vpack.c.b16 %v1934, %v1926
    %v2239 = vpack.c.b16 %v1935, %v1927
    %v2240 = vpack.c.b16 %v1936, %v1928
    %v2241 = vpack.c.b16 %v1937, %v1929
    %v2242 = vpack.c.b16 %v1938, %v1930
    %v2243 = vpack.c.b16 %v1939, %v1931
    %v2244 = vpack.c.b16 %v1948, %v1940
    %v2245 = vpack.c.b16 %v1949, %v1941
    %v2246 = vpack.c.b16 %v1950, %v1942
    %v2247 = vpack.c.b16 %v1951, %v1943
    %v2248 = vpack.c.b16 %v1952, %v1944
    %v2249 = vpack.c.b16 %v1953, %v1945
    %v2250 = vpack.c.b16 %v1954, %v1946
    %v2251 = vpack.c.b16 %v1955, %v1947
    %v2252 = vpack.c.b16 %v1964, %v1956
    %v2253 = vpack.c.b16 %v1965, %v1957
    %v2254 = vpack.c.b16 %v1966, %v1958
    %v2255 = vpack.c.b16 %v1967, %v1959
    %v2256 = vpack.c.b16 %v1968, %v1960
    %v2257 = vpack.c.b16 %v1969, %v1961
    %v2258 = vpack.c.b16 %v1970, %v1962
    %v2259 = vpack.c.b16 %v1971, %v1963
    %v2260 = vpack.c.b16 %v1980, %v1972
    %v2261 = vpack.c.b16 %v1981, %v1973
    %v2262 = vpack.c.b16 %v1982, %v1974
    %v2263 = vpack.c.b16 %v1983, %v1975
    %v2264 = vpack.c.b16 %v1984, %v1976
    %v2265 = vpack.c.b16 %v1985, %v1977
    %v2266 = vpack.c.b16 %v1986, %v1978
    %v2267 = vpack.c.b16 %v1987, %v1979
    %v2268 = vpack.c.b16 %v1996, %v1988
    %v2269 = vpack.c.b16 %v1997, %v1989
    %v2270 = vpack.c.b16 %v1998, %v1990
    %v2271 = vpack.c.b16 %v1999, %v1991
    %v2272 = vpack.c.b16 %v2000, %v1992
    %v2273 = vpack.c.b16 %v2001, %v1993
    %v2274 = vpack.c.b16 %v2002, %v1994
    %v2275 = vpack.c.b16 %v2003, %v1995
    %v2276 = vpack.c.b16 %v2012, %v2004
    %v2277 = vpack.c.b16 %v2013, %v2005
    %v2278 = vpack.c.b16 %v2014, %v2006
    %v2279 = vpack.c.b16 %v2015, %v2007
    %v2280 = vpack.c.b16 %v2016, %v2008
    %v2281 = vpack.c.b16 %v2017, %v2009
    %v2282 = vpack.c.b16 %v2018, %v2010
    %v2283 = vpack.c.b16 %v2019, %v2011
    %v2284 = vpack.c.b16 %v2028, %v2020
    %v2285 = vpack.c.b16 %v2029, %v2021
    %v2286 = vpack.c.b16 %v2030, %v2022
    %v2287 = vpack.c.b16 %v2031, %v2023
    %v2288 = vpack.c.b16 %v2032, %v2024
    %v2289 = vpack.c.b16 %v2033, %v2025
    %v2290 = vpack.c.b16 %v2034, %v2026
    %v2291 = vpack.c.b16 %v2035, %v2027
    %2548 = vmatprep.subr.bf16.mxu0 %v2093
    %2549 = vmatpush1.bf16.msra.mxu0 %v2092
    %2550 = vmatprep.subr.bf16.mxu0 %v2085
    %2551 = vmatpush1.bf16.msra.mxu0 %v2084
    %2552 = vmatprep.subr.bf16.mxu0 %v2077
    %2553 = vmatpush1.bf16.msra.mxu0 %v2076
    %2554 = vmatprep.subr.bf16.mxu0 %v2069
    %2555 = vmatpush1.bf16.msra.mxu0 %v2068
    %2556 = vmatprep.subr.bf16.mxu0 %v2061
    %2557 = vmatpush1.bf16.msra.mxu0 %v2060
    %2558 = vmatprep.subr.bf16.mxu0 %v2053
    %2559 = vmatpush1.bf16.msra.mxu0 %v2052
    %2560 = vmatprep.subr.bf16.mxu0 %v2045
    %2561 = vmatpush1.bf16.msra.mxu0 %v2044
    %2562 = vmatprep.subr.bf16.mxu0 %v2037
    %2563 = vmatpush1.bf16.msra.mxu0 %v2036
    %2564 = vmatprep.subr.bf16.mxu0 %v2157
    %2565 = vmatpush2.bf16.msra.mxu0 %v2156
    %2566 = vmatprep.subr.bf16.mxu0 %v2149
    %2567 = vmatpush2.bf16.msra.mxu0 %v2148
    %2568 = vmatprep.subr.bf16.mxu0 %v2141
    %2569 = vmatpush2.bf16.msra.mxu0 %v2140
    %2570 = vmatprep.subr.bf16.mxu0 %v2133
    %2571 = vmatpush2.bf16.msra.mxu0 %v2132
    %2572 = vmatprep.subr.bf16.mxu0 %v2125
    %2573 = vmatpush2.bf16.msra.mxu0 %v2124
    %2574 = vmatprep.subr.bf16.mxu0 %v2117
    %2575 = vmatpush2.bf16.msra.mxu0 %v2116
    %2576 = vmatprep.subr.bf16.mxu0 %v2109
    %2577 = vmatpush2.bf16.msra.mxu0 %v2108
    %2578 = vmatprep.subr.bf16.mxu0 %v2101
    %2579 = vmatpush2.bf16.msra.mxu0 %v2100
    %2580 = vmatprep.mubr.bf16.mxu0 %v967
    %2581 = vmatmul.mubr.bf16.gmra.mxu0 %v966
    %v2582 = vpop.f32.mrf.mxu0
    %v2583 = vadd.f32 %v1231, %v2582
    %v2584 = vpop.f32.mrf.mxu0
    %v2585 = vadd.f32 %v1235, %v2584
    %v2586 = vpop.f32.mrf.mxu0
    %v2587 = vpop.f32.mrf.mxu0
    %2588 = vdwg.mxu0
    %2589 = vmatprep.subr.bf16.mxu0 %v2221
    %2590 = vmatpush1.bf16.msra.mxu0 %v2220
    %2591 = vmatprep.subr.bf16.mxu0 %v2213
    %2592 = vmatpush1.bf16.msra.mxu0 %v2212
    %2593 = vmatprep.subr.bf16.mxu0 %v2205
    %2594 = vmatpush1.bf16.msra.mxu0 %v2204
    %2595 = vmatprep.subr.bf16.mxu0 %v2197
    %2596 = vmatpush1.bf16.msra.mxu0 %v2196
    %2597 = vmatprep.subr.bf16.mxu0 %v2189
    %2598 = vmatpush1.bf16.msra.mxu0 %v2188
    %2599 = vmatprep.subr.bf16.mxu0 %v2181
    %2600 = vmatpush1.bf16.msra.mxu0 %v2180
    %2601 = vmatprep.subr.bf16.mxu0 %v2173
    %2602 = vmatpush1.bf16.msra.mxu0 %v2172
    %2603 = vmatprep.subr.bf16.mxu0 %v2165
    %2604 = vmatpush1.bf16.msra.mxu0 %v2164
    %2605 = vmatprep.subr.bf16.mxu0 %v2285
    %2606 = vmatpush2.bf16.msra.mxu0 %v2284
    %2607 = vmatprep.subr.bf16.mxu0 %v2277
    %2608 = vmatpush2.bf16.msra.mxu0 %v2276
    %2609 = vmatprep.subr.bf16.mxu0 %v2269
    %2610 = vmatpush2.bf16.msra.mxu0 %v2268
    %2611 = vmatprep.subr.bf16.mxu0 %v2261
    %2612 = vmatpush2.bf16.msra.mxu0 %v2260
    %2613 = vmatprep.subr.bf16.mxu0 %v2253
    %2614 = vmatpush2.bf16.msra.mxu0 %v2252
    %2615 = vmatprep.subr.bf16.mxu0 %v2245
    %2616 = vmatpush2.bf16.msra.mxu0 %v2244
    %2617 = vmatprep.subr.bf16.mxu0 %v2237
    %2618 = vmatpush2.bf16.msra.mxu0 %v2236
    %2619 = vmatprep.subr.bf16.mxu0 %v2229
    %2620 = vmatpush2.bf16.msra.mxu0 %v2228
    %2621 = vmatprep.mubr.bf16.mxu0 %v969
    %2622 = vmatmul.mubr.bf16.gmra.mxu0 %v968
    %v2623 = vpop.f32.mrf.mxu0
    %v2624 = vadd.f32 %v2583, %v2623
    %v2625 = vpop.f32.mrf.mxu0
    %v2626 = vadd.f32 %v2585, %v2625
    %v2627 = vpop.f32.mrf.mxu0
    %v2628 = vpop.f32.mrf.mxu0
    %2629 = vdwg.mxu0
    %2630 = vmatprep.subr.bf16.mxu0 %v2095
    %2631 = vmatpush1.bf16.msra.mxu0 %v2094
    %2632 = vmatprep.subr.bf16.mxu0 %v2087
    %2633 = vmatpush1.bf16.msra.mxu0 %v2086
    %2634 = vmatprep.subr.bf16.mxu0 %v2079
    %2635 = vmatpush1.bf16.msra.mxu0 %v2078
    %2636 = vmatprep.subr.bf16.mxu0 %v2071
    %2637 = vmatpush1.bf16.msra.mxu0 %v2070
    %2638 = vmatprep.subr.bf16.mxu0 %v2063
    %2639 = vmatpush1.bf16.msra.mxu0 %v2062
    %2640 = vmatprep.subr.bf16.mxu0 %v2055
    %2641 = vmatpush1.bf16.msra.mxu0 %v2054
    %2642 = vmatprep.subr.bf16.mxu0 %v2047
    %2643 = vmatpush1.bf16.msra.mxu0 %v2046
    %2644 = vmatprep.subr.bf16.mxu0 %v2039
    %2645 = vmatpush1.bf16.msra.mxu0 %v2038
    %2646 = vmatprep.subr.bf16.mxu0 %v2159
    %2647 = vmatpush2.bf16.msra.mxu0 %v2158
    %2648 = vmatprep.subr.bf16.mxu0 %v2151
    %2649 = vmatpush2.bf16.msra.mxu0 %v2150
    %2650 = vmatprep.subr.bf16.mxu0 %v2143
    %2651 = vmatpush2.bf16.msra.mxu0 %v2142
    %2652 = vmatprep.subr.bf16.mxu0 %v2135
    %2653 = vmatpush2.bf16.msra.mxu0 %v2134
    %2654 = vmatprep.subr.bf16.mxu0 %v2127
    %2655 = vmatpush2.bf16.msra.mxu0 %v2126
    %2656 = vmatprep.subr.bf16.mxu0 %v2119
    %2657 = vmatpush2.bf16.msra.mxu0 %v2118
    %2658 = vmatprep.subr.bf16.mxu0 %v2111
    %2659 = vmatpush2.bf16.msra.mxu0 %v2110
    %2660 = vmatprep.subr.bf16.mxu0 %v2103
    %2661 = vmatpush2.bf16.msra.mxu0 %v2102
    %2662 = vmatprep.mubr.bf16.mxu0 %v967
    %2663 = vmatmul.mubr.bf16.gmra.mxu0 %v966
    %v2664 = vpop.f32.mrf.mxu0
    %v2665 = vadd.f32 %v1239, %v2664
    %v2666 = vpop.f32.mrf.mxu0
    %v2667 = vadd.f32 %v1243, %v2666
    %v2668 = vpop.f32.mrf.mxu0
    %v2669 = vpop.f32.mrf.mxu0
    %2670 = vdwg.mxu0
    %2671 = vmatprep.subr.bf16.mxu0 %v2223
    %2672 = vmatpush1.bf16.msra.mxu0 %v2222
    %2673 = vmatprep.subr.bf16.mxu0 %v2215
    %2674 = vmatpush1.bf16.msra.mxu0 %v2214
    %2675 = vmatprep.subr.bf16.mxu0 %v2207
    %2676 = vmatpush1.bf16.msra.mxu0 %v2206
    %2677 = vmatprep.subr.bf16.mxu0 %v2199
    %2678 = vmatpush1.bf16.msra.mxu0 %v2198
    %2679 = vmatprep.subr.bf16.mxu0 %v2191
    %2680 = vmatpush1.bf16.msra.mxu0 %v2190
    %2681 = vmatprep.subr.bf16.mxu0 %v2183
    %2682 = vmatpush1.bf16.msra.mxu0 %v2182
    %2683 = vmatprep.subr.bf16.mxu0 %v2175
    %2684 = vmatpush1.bf16.msra.mxu0 %v2174
    %2685 = vmatprep.subr.bf16.mxu0 %v2167
    %2686 = vmatpush1.bf16.msra.mxu0 %v2166
    %2687 = vmatprep.subr.bf16.mxu0 %v2287
    %2688 = vmatpush2.bf16.msra.mxu0 %v2286
    %2689 = vmatprep.subr.bf16.mxu0 %v2279
    %2690 = vmatpush2.bf16.msra.mxu0 %v2278
    %2691 = vmatprep.subr.bf16.mxu0 %v2271
    %2692 = vmatpush2.bf16.msra.mxu0 %v2270
    %2693 = vmatprep.subr.bf16.mxu0 %v2263
    %2694 = vmatpush2.bf16.msra.mxu0 %v2262
    %2695 = vmatprep.subr.bf16.mxu0 %v2255
    %2696 = vmatpush2.bf16.msra.mxu0 %v2254
    %2697 = vmatprep.subr.bf16.mxu0 %v2247
    %2698 = vmatpush2.bf16.msra.mxu0 %v2246
    %2699 = vmatprep.subr.bf16.mxu0 %v2239
    %2700 = vmatpush2.bf16.msra.mxu0 %v2238
    %2701 = vmatprep.subr.bf16.mxu0 %v2231
    %2702 = vmatpush2.bf16.msra.mxu0 %v2230
    %2703 = vmatprep.mubr.bf16.mxu0 %v969
    %2704 = vmatmul.mubr.bf16.gmra.mxu0 %v968
    %v2705 = vpop.f32.mrf.mxu0
    %v2706 = vadd.f32 %v2665, %v2705
    %v2707 = vpop.f32.mrf.mxu0
    %v2708 = vadd.f32 %v2667, %v2707
    %v2709 = vpop.f32.mrf.mxu0
    %v2710 = vpop.f32.mrf.mxu0
    %2711 = vdwg.mxu0
    %2712 = vmatprep.subr.bf16.mxu0 %v2097
    %2713 = vmatpush1.bf16.msra.mxu0 %v2096
    %2714 = vmatprep.subr.bf16.mxu0 %v2089
    %2715 = vmatpush1.bf16.msra.mxu0 %v2088
    %2716 = vmatprep.subr.bf16.mxu0 %v2081
    %2717 = vmatpush1.bf16.msra.mxu0 %v2080
    %2718 = vmatprep.subr.bf16.mxu0 %v2073
    %2719 = vmatpush1.bf16.msra.mxu0 %v2072
    %2720 = vmatprep.subr.bf16.mxu0 %v2065
    %2721 = vmatpush1.bf16.msra.mxu0 %v2064
    %2722 = vmatprep.subr.bf16.mxu0 %v2057
    %2723 = vmatpush1.bf16.msra.mxu0 %v2056
    %2724 = vmatprep.subr.bf16.mxu0 %v2049
    %2725 = vmatpush1.bf16.msra.mxu0 %v2048
    %2726 = vmatprep.subr.bf16.mxu0 %v2041
    %2727 = vmatpush1.bf16.msra.mxu0 %v2040
    %2728 = vmatprep.subr.bf16.mxu0 %v2161
    %2729 = vmatpush2.bf16.msra.mxu0 %v2160
    %2730 = vmatprep.subr.bf16.mxu0 %v2153
    %2731 = vmatpush2.bf16.msra.mxu0 %v2152
    %2732 = vmatprep.subr.bf16.mxu0 %v2145
    %2733 = vmatpush2.bf16.msra.mxu0 %v2144
    %2734 = vmatprep.subr.bf16.mxu0 %v2137
    %2735 = vmatpush2.bf16.msra.mxu0 %v2136
    %2736 = vmatprep.subr.bf16.mxu0 %v2129
    %2737 = vmatpush2.bf16.msra.mxu0 %v2128
    %2738 = vmatprep.subr.bf16.mxu0 %v2121
    %2739 = vmatpush2.bf16.msra.mxu0 %v2120
    %2740 = vmatprep.subr.bf16.mxu0 %v2113
    %2741 = vmatpush2.bf16.msra.mxu0 %v2112
    %2742 = vmatprep.subr.bf16.mxu0 %v2105
    %2743 = vmatpush2.bf16.msra.mxu0 %v2104
    %2744 = vmatprep.mubr.bf16.mxu0 %v967
    %2745 = vmatmul.mubr.bf16.gmra.mxu0 %v966
    %v2746 = vpop.f32.mrf.mxu0
    %v2747 = vadd.f32 %v1247, %v2746
    %v2748 = vpop.f32.mrf.mxu0
    %v2749 = vadd.f32 %v1251, %v2748
    %v2750 = vpop.f32.mrf.mxu0
    %v2751 = vpop.f32.mrf.mxu0
    %2752 = vdwg.mxu0
    %2753 = vmatprep.subr.bf16.mxu0 %v2225
    %2754 = vmatpush1.bf16.msra.mxu0 %v2224
    %2755 = vmatprep.subr.bf16.mxu0 %v2217
    %2756 = vmatpush1.bf16.msra.mxu0 %v2216
    %2757 = vmatprep.subr.bf16.mxu0 %v2209
    %2758 = vmatpush1.bf16.msra.mxu0 %v2208
    %2759 = vmatprep.subr.bf16.mxu0 %v2201
    %2760 = vmatpush1.bf16.msra.mxu0 %v2200
    %2761 = vmatprep.subr.bf16.mxu0 %v2193
    %2762 = vmatpush1.bf16.msra.mxu0 %v2192
    %2763 = vmatprep.subr.bf16.mxu0 %v2185
    %2764 = vmatpush1.bf16.msra.mxu0 %v2184
    %2765 = vmatprep.subr.bf16.mxu0 %v2177
    %2766 = vmatpush1.bf16.msra.mxu0 %v2176
    %2767 = vmatprep.subr.bf16.mxu0 %v2169
    %2768 = vmatpush1.bf16.msra.mxu0 %v2168
    %2769 = vmatprep.subr.bf16.mxu0 %v2289
    %2770 = vmatpush2.bf16.msra.mxu0 %v2288
    %2771 = vmatprep.subr.bf16.mxu0 %v2281
    %2772 = vmatpush2.bf16.msra.mxu0 %v2280
    %2773 = vmatprep.subr.bf16.mxu0 %v2273
    %2774 = vmatpush2.bf16.msra.mxu0 %v2272
    %2775 = vmatprep.subr.bf16.mxu0 %v2265
    %2776 = vmatpush2.bf16.msra.mxu0 %v2264
    %2777 = vmatprep.subr.bf16.mxu0 %v2257
    %2778 = vmatpush2.bf16.msra.mxu0 %v2256
    %2779 = vmatprep.subr.bf16.mxu0 %v2249
    %2780 = vmatpush2.bf16.msra.mxu0 %v2248
    %2781 = vmatprep.subr.bf16.mxu0 %v2241
    %2782 = vmatpush2.bf16.msra.mxu0 %v2240
    %2783 = vmatprep.subr.bf16.mxu0 %v2233
    %2784 = vmatpush2.bf16.msra.mxu0 %v2232
    %2785 = vmatprep.mubr.bf16.mxu0 %v969
    %2786 = vmatmul.mubr.bf16.gmra.mxu0 %v968
    %v2787 = vpop.f32.mrf.mxu0
    %v2788 = vadd.f32 %v2747, %v2787
    %v2789 = vpop.f32.mrf.mxu0
    %v2790 = vadd.f32 %v2749, %v2789
    %v2791 = vpop.f32.mrf.mxu0
    %v2792 = vpop.f32.mrf.mxu0
    %2793 = vdwg.mxu0
    %2794 = vmatprep.subr.bf16.mxu0 %v2099
    %2795 = vmatpush1.bf16.msra.mxu0 %v2098
    %2796 = vmatprep.subr.bf16.mxu0 %v2091
    %2797 = vmatpush1.bf16.msra.mxu0 %v2090
    %2798 = vmatprep.subr.bf16.mxu0 %v2083
    %2799 = vmatpush1.bf16.msra.mxu0 %v2082
    %2800 = vmatprep.subr.bf16.mxu0 %v2075
    %2801 = vmatpush1.bf16.msra.mxu0 %v2074
    %2802 = vmatprep.subr.bf16.mxu0 %v2067
    %2803 = vmatpush1.bf16.msra.mxu0 %v2066
    %2804 = vmatprep.subr.bf16.mxu0 %v2059
    %2805 = vmatpush1.bf16.msra.mxu0 %v2058
    %2806 = vmatprep.subr.bf16.mxu0 %v2051
    %2807 = vmatpush1.bf16.msra.mxu0 %v2050
    %2808 = vmatprep.subr.bf16.mxu0 %v2043
    %2809 = vmatpush1.bf16.msra.mxu0 %v2042
    %2810 = vmatprep.subr.bf16.mxu0 %v2163
    %2811 = vmatpush2.bf16.msra.mxu0 %v2162
    %2812 = vmatprep.subr.bf16.mxu0 %v2155
    %2813 = vmatpush2.bf16.msra.mxu0 %v2154
    %2814 = vmatprep.subr.bf16.mxu0 %v2147
    %2815 = vmatpush2.bf16.msra.mxu0 %v2146
    %2816 = vmatprep.subr.bf16.mxu0 %v2139
    %2817 = vmatpush2.bf16.msra.mxu0 %v2138
    %2818 = vmatprep.subr.bf16.mxu0 %v2131
    %2819 = vmatpush2.bf16.msra.mxu0 %v2130
    %2820 = vmatprep.subr.bf16.mxu0 %v2123
    %2821 = vmatpush2.bf16.msra.mxu0 %v2122
    %2822 = vmatprep.subr.bf16.mxu0 %v2115
    %2823 = vmatpush2.bf16.msra.mxu0 %v2114
    %2824 = vmatprep.subr.bf16.mxu0 %v2107
    %2825 = vmatpush2.bf16.msra.mxu0 %v2106
    %2826 = vmatprep.mubr.bf16.mxu0 %v967
    %2827 = vmatmul.mubr.bf16.gmra.mxu0 %v966
    %v2828 = vpop.f32.mrf.mxu0
    %v2829 = vadd.f32 %v1255, %v2828
    %v2830 = vpop.f32.mrf.mxu0
    %v2831 = vadd.f32 %v1259, %v2830
    %v2832 = vpop.f32.mrf.mxu0
    %v2833 = vpop.f32.mrf.mxu0
    %2834 = vdwg.mxu0
    %2835 = vmatprep.subr.bf16.mxu0 %v2227
    %2836 = vmatpush1.bf16.msra.mxu0 %v2226
    %2837 = vmatprep.subr.bf16.mxu0 %v2219
    %2838 = vmatpush1.bf16.msra.mxu0 %v2218
    %2839 = vmatprep.subr.bf16.mxu0 %v2211
    %2840 = vmatpush1.bf16.msra.mxu0 %v2210
    %2841 = vmatprep.subr.bf16.mxu0 %v2203
    %2842 = vmatpush1.bf16.msra.mxu0 %v2202
    %2843 = vmatprep.subr.bf16.mxu0 %v2195
    %2844 = vmatpush1.bf16.msra.mxu0 %v2194
    %2845 = vmatprep.subr.bf16.mxu0 %v2187
    %2846 = vmatpush1.bf16.msra.mxu0 %v2186
    %2847 = vmatprep.subr.bf16.mxu0 %v2179
    %2848 = vmatpush1.bf16.msra.mxu0 %v2178
    %2849 = vmatprep.subr.bf16.mxu0 %v2171
    %2850 = vmatpush1.bf16.msra.mxu0 %v2170
    %2851 = vmatprep.subr.bf16.mxu0 %v2291
    %2852 = vmatpush2.bf16.msra.mxu0 %v2290
    %2853 = vmatprep.subr.bf16.mxu0 %v2283
    %2854 = vmatpush2.bf16.msra.mxu0 %v2282
    %2855 = vmatprep.subr.bf16.mxu0 %v2275
    %2856 = vmatpush2.bf16.msra.mxu0 %v2274
    %2857 = vmatprep.subr.bf16.mxu0 %v2267
    %2858 = vmatpush2.bf16.msra.mxu0 %v2266
    %2859 = vmatprep.subr.bf16.mxu0 %v2259
    %2860 = vmatpush2.bf16.msra.mxu0 %v2258
    %2861 = vmatprep.subr.bf16.mxu0 %v2251
    %2862 = vmatpush2.bf16.msra.mxu0 %v2250
    %2863 = vmatprep.subr.bf16.mxu0 %v2243
    %2864 = vmatpush2.bf16.msra.mxu0 %v2242
    %2865 = vmatprep.subr.bf16.mxu0 %v2235
    %2866 = vmatpush2.bf16.msra.mxu0 %v2234
    %2867 = vmatprep.mubr.bf16.mxu0 %v969
    %2868 = vmatmul.mubr.bf16.gmra.mxu0 %v968
    %v2869 = vpop.f32.mrf.mxu0
    %v2870 = vadd.f32 %v2829, %v2869
    %v2871 = vpop.f32.mrf.mxu0
    %v2872 = vadd.f32 %v2831, %v2871
    %v2873 = vpop.f32.mrf.mxu0
    %v2874 = vpop.f32.mrf.mxu0
    %2875 = vdwg.mxu0
    %v2876 = vmul.f32 %v2624, 0.2
    %v2877 = vmul.f32 %v2626, 0.2
    %v2878 = vmul.f32 %v2706, 0.2
    %v2879 = vmul.f32 %v2708, 0.2
    %v2880 = vmul.f32 %v2788, 0.2
    %v2881 = vmul.f32 %v2790, 0.2
    %v2882 = vmul.f32 %v2870, 0.2
    %v2883 = vmul.f32 %v2872, 0.2
    %v2884 = vmax.f32 %v2624, %v2876
    %v2885 = vmax.f32 %v2626, %v2877
    %v2886 = vmax.f32 %v2706, %v2878
    %v2887 = vmax.f32 %v2708, %v2879
    %v2888 = vmax.f32 %v2788, %v2880
    %v2889 = vmax.f32 %v2790, %v2881
    %v2890 = vmax.f32 %v2870, %v2882
    %v2891 = vmax.f32 %v2872, %v2883
    %v2892 = vpack.c.bf16 %v2884, %v2884
    %v2893 = vpack.c.bf16 %v2885, %v2885
    %v2894 = vpack.c.bf16 %v2886, %v2886
    %v2895 = vpack.c.bf16 %v2887, %v2887
    %v2896 = vpack.c.bf16 %v2888, %v2888
    %v2897 = vpack.c.bf16 %v2889, %v2889
    %v2898 = vpack.c.bf16 %v2890, %v2890
    %v2899 = vpack.c.bf16 %v2891, %v2891
    %v2900 = vld [vmem:[#allocation14] sm:$0xf]
    %v2901 = vld [vmem:[#allocation14 + $0x4] sm:$0xf]
    %v2902 = vld [vmem:[#allocation14 + $0x8] sm:$0xf]
    %v2903 = vld [vmem:[#allocation14 + $0xc] sm:$0xf]
    %v2904 = vld [vmem:[#allocation14 + $0x10] sm:$0xf]
    %v2905 = vld [vmem:[#allocation14 + $0x14] sm:$0xf]
    %v2906 = vld [vmem:[#allocation14 + $0x18] sm:$0xf]
    %v2907 = vld [vmem:[#allocation14 + $0x1c] sm:$0xf]
    %v2908 = vld [vmem:[#allocation14 + $0x20] sm:$0xf]
    %v2909 = vld [vmem:[#allocation14 + $0x24] sm:$0xf]
    %v2910 = vld [vmem:[#allocation14 + $0x28] sm:$0xf]
    %v2911 = vld [vmem:[#allocation14 + $0x2c] sm:$0xf]
    %v2912 = vld [vmem:[#allocation14 + $0x30] sm:$0xf]
    %v2913 = vld [vmem:[#allocation14 + $0x34] sm:$0xf]
    %v2914 = vld [vmem:[#allocation14 + $0x38] sm:$0xf]
    %v2915 = vld [vmem:[#allocation14 + $0x3c] sm:$0xf]
    %v2916 = vld [vmem:[#allocation14 + $0x40] sm:$0xf]
    %v2917 = vld [vmem:[#allocation14 + $0x44] sm:$0xf]
    %v2918 = vld [vmem:[#allocation14 + $0x48] sm:$0xf]
    %v2919 = vld [vmem:[#allocation14 + $0x4c] sm:$0xf]
    %v2920 = vld [vmem:[#allocation14 + $0x50] sm:$0xf]
    %v2921 = vld [vmem:[#allocation14 + $0x54] sm:$0xf]
    %v2922 = vld [vmem:[#allocation14 + $0x58] sm:$0xf]
    %v2923 = vld [vmem:[#allocation14 + $0x5c] sm:$0xf]
    %v2924 = vld [vmem:[#allocation14 + $0x60] sm:$0xf]
    %v2925 = vld [vmem:[#allocation14 + $0x64] sm:$0xf]
    %v2926 = vld [vmem:[#allocation14 + $0x68] sm:$0xf]
    %v2927 = vld [vmem:[#allocation14 + $0x6c] sm:$0xf]
    %v2928 = vld [vmem:[#allocation14 + $0x70] sm:$0xf]
    %v2929 = vld [vmem:[#allocation14 + $0x74] sm:$0xf]
    %v2930 = vld [vmem:[#allocation14 + $0x78] sm:$0xf]
    %v2931 = vld [vmem:[#allocation14 + $0x7c] sm:$0xf]
    %v2932 = vld [vmem:[#allocation14 + $0x80] sm:$0xf]
    %v2933 = vld [vmem:[#allocation14 + $0x84] sm:$0xf]
    %v2934 = vld [vmem:[#allocation14 + $0x88] sm:$0xf]
    %v2935 = vld [vmem:[#allocation14 + $0x8c] sm:$0xf]
    %v2936 = vld [vmem:[#allocation14 + $0x90] sm:$0xf]
    %v2937 = vld [vmem:[#allocation14 + $0x94] sm:$0xf]
    %v2938 = vld [vmem:[#allocation14 + $0x98] sm:$0xf]
    %v2939 = vld [vmem:[#allocation14 + $0x9c] sm:$0xf]
    %v2940 = vld [vmem:[#allocation14 + $0xa0] sm:$0xf]
    %v2941 = vld [vmem:[#allocation14 + $0xa4] sm:$0xf]
    %v2942 = vld [vmem:[#allocation14 + $0xa8] sm:$0xf]
    %v2943 = vld [vmem:[#allocation14 + $0xac] sm:$0xf]
    %v2944 = vld [vmem:[#allocation14 + $0xb0] sm:$0xf]
    %v2945 = vld [vmem:[#allocation14 + $0xb4] sm:$0xf]
    %v2946 = vld [vmem:[#allocation14 + $0xb8] sm:$0xf]
    %v2947 = vld [vmem:[#allocation14 + $0xbc] sm:$0xf]
    %v2948 = vld [vmem:[#allocation14 + $0xc0] sm:$0xf]
    %v2949 = vld [vmem:[#allocation14 + $0xc4] sm:$0xf]
    %v2950 = vld [vmem:[#allocation14 + $0xc8] sm:$0xf]
    %v2951 = vld [vmem:[#allocation14 + $0xcc] sm:$0xf]
    %v2952 = vld [vmem:[#allocation14 + $0xd0] sm:$0xf]
    %v2953 = vld [vmem:[#allocation14 + $0xd4] sm:$0xf]
    %v2954 = vld [vmem:[#allocation14 + $0xd8] sm:$0xf]
    %v2955 = vld [vmem:[#allocation14 + $0xdc] sm:$0xf]
    %v2956 = vld [vmem:[#allocation14 + $0xe0] sm:$0xf]
    %v2957 = vld [vmem:[#allocation14 + $0xe4] sm:$0xf]
    %v2958 = vld [vmem:[#allocation14 + $0xe8] sm:$0xf]
    %v2959 = vld [vmem:[#allocation14 + $0xec] sm:$0xf]
    %v2960 = vld [vmem:[#allocation14 + $0xf0] sm:$0xf]
    %v2961 = vld [vmem:[#allocation14 + $0xf4] sm:$0xf]
    %v2962 = vld [vmem:[#allocation14 + $0xf8] sm:$0xf]
    %v2963 = vld [vmem:[#allocation14 + $0xfc] sm:$0xf]
    %v2964 = vld [vmem:[#allocation14 + $0x100] sm:$0xf]
    %v2965 = vld [vmem:[#allocation14 + $0x104] sm:$0xf]
    %v2966 = vld [vmem:[#allocation14 + $0x108] sm:$0xf]
    %v2967 = vld [vmem:[#allocation14 + $0x10c] sm:$0xf]
    %v2968 = vld [vmem:[#allocation14 + $0x110] sm:$0xf]
    %v2969 = vld [vmem:[#allocation14 + $0x114] sm:$0xf]
    %v2970 = vld [vmem:[#allocation14 + $0x118] sm:$0xf]
    %v2971 = vld [vmem:[#allocation14 + $0x11c] sm:$0xf]
    %v2972 = vld [vmem:[#allocation14 + $0x120] sm:$0xf]
    %v2973 = vld [vmem:[#allocation14 + $0x124] sm:$0xf]
    %v2974 = vld [vmem:[#allocation14 + $0x128] sm:$0xf]
    %v2975 = vld [vmem:[#allocation14 + $0x12c] sm:$0xf]
    %v2976 = vld [vmem:[#allocation14 + $0x130] sm:$0xf]
    %v2977 = vld [vmem:[#allocation14 + $0x134] sm:$0xf]
    %v2978 = vld [vmem:[#allocation14 + $0x138] sm:$0xf]
    %v2979 = vld [vmem:[#allocation14 + $0x13c] sm:$0xf]
    %v2980 = vld [vmem:[#allocation14 + $0x140] sm:$0xf]
    %v2981 = vld [vmem:[#allocation14 + $0x144] sm:$0xf]
    %v2982 = vld [vmem:[#allocation14 + $0x148] sm:$0xf]
    %v2983 = vld [vmem:[#allocation14 + $0x14c] sm:$0xf]
    %v2984 = vld [vmem:[#allocation14 + $0x150] sm:$0xf]
    %v2985 = vld [vmem:[#allocation14 + $0x154] sm:$0xf]
    %v2986 = vld [vmem:[#allocation14 + $0x158] sm:$0xf]
    %v2987 = vld [vmem:[#allocation14 + $0x15c] sm:$0xf]
    %v2988 = vld [vmem:[#allocation14 + $0x160] sm:$0xf]
    %v2989 = vld [vmem:[#allocation14 + $0x164] sm:$0xf]
    %v2990 = vld [vmem:[#allocation14 + $0x168] sm:$0xf]
    %v2991 = vld [vmem:[#allocation14 + $0x16c] sm:$0xf]
    %v2992 = vld [vmem:[#allocation14 + $0x170] sm:$0xf]
    %v2993 = vld [vmem:[#allocation14 + $0x174] sm:$0xf]
    %v2994 = vld [vmem:[#allocation14 + $0x178] sm:$0xf]
    %v2995 = vld [vmem:[#allocation14 + $0x17c] sm:$0xf]
    %v2996 = vld [vmem:[#allocation14 + $0x180] sm:$0xf]
    %v2997 = vld [vmem:[#allocation14 + $0x184] sm:$0xf]
    %v2998 = vld [vmem:[#allocation14 + $0x188] sm:$0xf]
    %v2999 = vld [vmem:[#allocation14 + $0x18c] sm:$0xf]
    %v3000 = vld [vmem:[#allocation14 + $0x190] sm:$0xf]
    %v3001 = vld [vmem:[#allocation14 + $0x194] sm:$0xf]
    %v3002 = vld [vmem:[#allocation14 + $0x198] sm:$0xf]
    %v3003 = vld [vmem:[#allocation14 + $0x19c] sm:$0xf]
    %v3004 = vld [vmem:[#allocation14 + $0x1a0] sm:$0xf]
    %v3005 = vld [vmem:[#allocation14 + $0x1a4] sm:$0xf]
    %v3006 = vld [vmem:[#allocation14 + $0x1a8] sm:$0xf]
    %v3007 = vld [vmem:[#allocation14 + $0x1ac] sm:$0xf]
    %v3008 = vld [vmem:[#allocation14 + $0x1b0] sm:$0xf]
    %v3009 = vld [vmem:[#allocation14 + $0x1b4] sm:$0xf]
    %v3010 = vld [vmem:[#allocation14 + $0x1b8] sm:$0xf]
    %v3011 = vld [vmem:[#allocation14 + $0x1bc] sm:$0xf]
    %v3012 = vld [vmem:[#allocation14 + $0x1c0] sm:$0xf]
    %v3013 = vld [vmem:[#allocation14 + $0x1c4] sm:$0xf]
    %v3014 = vld [vmem:[#allocation14 + $0x1c8] sm:$0xf]
    %v3015 = vld [vmem:[#allocation14 + $0x1cc] sm:$0xf]
    %v3016 = vld [vmem:[#allocation14 + $0x1d0] sm:$0xf]
    %v3017 = vld [vmem:[#allocation14 + $0x1d4] sm:$0xf]
    %v3018 = vld [vmem:[#allocation14 + $0x1d8] sm:$0xf]
    %v3019 = vld [vmem:[#allocation14 + $0x1dc] sm:$0xf]
    %v3020 = vld [vmem:[#allocation14 + $0x1e0] sm:$0xf]
    %v3021 = vld [vmem:[#allocation14 + $0x1e4] sm:$0xf]
    %v3022 = vld [vmem:[#allocation14 + $0x1e8] sm:$0xf]
    %v3023 = vld [vmem:[#allocation14 + $0x1ec] sm:$0xf]
    %v3024 = vld [vmem:[#allocation14 + $0x1f0] sm:$0xf]
    %v3025 = vld [vmem:[#allocation14 + $0x1f4] sm:$0xf]
    %v3026 = vld [vmem:[#allocation14 + $0x1f8] sm:$0xf]
    %v3027 = vld [vmem:[#allocation14 + $0x1fc] sm:$0xf]
    %v3028 = vld [vmem:[%s12] sm:$0x1]
    %v3030 = vlaneseq
    %v3031 = vshrl.u32 %v3030, 7
    %v3032 = vsub.s32 0, %v3031
    %v3033 = vrot.slane %v3028, %v3032
    %v3163 = vunpack.c.l.b16 %v2900
    %v3164 = vunpack.c.l.b16 %v2901
    %v3165 = vunpack.c.l.b16 %v2902
    %v3166 = vunpack.c.l.b16 %v2903
    %v3167 = vunpack.c.l.b16 %v2904
    %v3168 = vunpack.c.l.b16 %v2905
    %v3169 = vunpack.c.l.b16 %v2906
    %v3170 = vunpack.c.l.b16 %v2907
    %v3171 = vunpack.c.l.b16 %v2908
    %v3172 = vunpack.c.l.b16 %v2909
    %v3173 = vunpack.c.l.b16 %v2910
    %v3174 = vunpack.c.l.b16 %v2911
    %v3175 = vunpack.c.l.b16 %v2912
    %v3176 = vunpack.c.l.b16 %v2913
    %v3177 = vunpack.c.l.b16 %v2914
    %v3178 = vunpack.c.l.b16 %v2915
    %v3179 = vunpack.c.l.b16 %v2916
    %v3180 = vunpack.c.l.b16 %v2917
    %v3181 = vunpack.c.l.b16 %v2918
    %v3182 = vunpack.c.l.b16 %v2919
    %v3183 = vunpack.c.l.b16 %v2920
    %v3184 = vunpack.c.l.b16 %v2921
    %v3185 = vunpack.c.l.b16 %v2922
    %v3186 = vunpack.c.l.b16 %v2923
    %v3187 = vunpack.c.l.b16 %v2924
    %v3188 = vunpack.c.l.b16 %v2925
    %v3189 = vunpack.c.l.b16 %v2926
    %v3190 = vunpack.c.l.b16 %v2927
    %v3191 = vunpack.c.l.b16 %v2928
    %v3192 = vunpack.c.l.b16 %v2929
    %v3193 = vunpack.c.l.b16 %v2930
    %v3194 = vunpack.c.l.b16 %v2931
    %v3195 = vunpack.c.l.b16 %v2932
    %v3196 = vunpack.c.l.b16 %v2933
    %v3197 = vunpack.c.l.b16 %v2934
    %v3198 = vunpack.c.l.b16 %v2935
    %v3199 = vunpack.c.l.b16 %v2936
    %v3200 = vunpack.c.l.b16 %v2937
    %v3201 = vunpack.c.l.b16 %v2938
    %v3202 = vunpack.c.l.b16 %v2939
    %v3203 = vunpack.c.l.b16 %v2940
    %v3204 = vunpack.c.l.b16 %v2941
    %v3205 = vunpack.c.l.b16 %v2942
    %v3206 = vunpack.c.l.b16 %v2943
    %v3207 = vunpack.c.l.b16 %v2944
    %v3208 = vunpack.c.l.b16 %v2945
    %v3209 = vunpack.c.l.b16 %v2946
    %v3210 = vunpack.c.l.b16 %v2947
    %v3211 = vunpack.c.l.b16 %v2948
    %v3212 = vunpack.c.l.b16 %v2949
    %v3213 = vunpack.c.l.b16 %v2950
    %v3214 = vunpack.c.l.b16 %v2951
    %v3215 = vunpack.c.l.b16 %v2952
    %v3216 = vunpack.c.l.b16 %v2953
    %v3217 = vunpack.c.l.b16 %v2954
    %v3218 = vunpack.c.l.b16 %v2955
    %v3219 = vunpack.c.l.b16 %v2956
    %v3220 = vunpack.c.l.b16 %v2957
    %v3221 = vunpack.c.l.b16 %v2958
    %v3222 = vunpack.c.l.b16 %v2959
    %v3223 = vunpack.c.l.b16 %v2960
    %v3224 = vunpack.c.l.b16 %v2961
    %v3225 = vunpack.c.l.b16 %v2962
    %v3226 = vunpack.c.l.b16 %v2963
    %v3227 = vunpack.c.l.b16 %v2964
    %v3228 = vunpack.c.l.b16 %v2965
    %v3229 = vunpack.c.l.b16 %v2966
    %v3230 = vunpack.c.l.b16 %v2967
    %v3231 = vunpack.c.l.b16 %v2968
    %v3232 = vunpack.c.l.b16 %v2969
    %v3233 = vunpack.c.l.b16 %v2970
    %v3234 = vunpack.c.l.b16 %v2971
    %v3235 = vunpack.c.l.b16 %v2972
    %v3236 = vunpack.c.l.b16 %v2973
    %v3237 = vunpack.c.l.b16 %v2974
    %v3238 = vunpack.c.l.b16 %v2975
    %v3239 = vunpack.c.l.b16 %v2976
    %v3240 = vunpack.c.l.b16 %v2977
    %v3241 = vunpack.c.l.b16 %v2978
    %v3242 = vunpack.c.l.b16 %v2979
    %v3243 = vunpack.c.l.b16 %v2980
    %v3244 = vunpack.c.l.b16 %v2981
    %v3245 = vunpack.c.l.b16 %v2982
    %v3246 = vunpack.c.l.b16 %v2983
    %v3247 = vunpack.c.l.b16 %v2984
    %v3248 = vunpack.c.l.b16 %v2985
    %v3249 = vunpack.c.l.b16 %v2986
    %v3250 = vunpack.c.l.b16 %v2987
    %v3251 = vunpack.c.l.b16 %v2988
    %v3252 = vunpack.c.l.b16 %v2989
    %v3253 = vunpack.c.l.b16 %v2990
    %v3254 = vunpack.c.l.b16 %v2991
    %v3255 = vunpack.c.l.b16 %v2992
    %v3256 = vunpack.c.l.b16 %v2993
    %v3257 = vunpack.c.l.b16 %v2994
    %v3258 = vunpack.c.l.b16 %v2995
    %v3259 = vunpack.c.l.b16 %v2996
    %v3260 = vunpack.c.l.b16 %v2997
    %v3261 = vunpack.c.l.b16 %v2998
    %v3262 = vunpack.c.l.b16 %v2999
    %v3263 = vunpack.c.l.b16 %v3000
    %v3264 = vunpack.c.l.b16 %v3001
    %v3265 = vunpack.c.l.b16 %v3002
    %v3266 = vunpack.c.l.b16 %v3003
    %v3267 = vunpack.c.l.b16 %v3004
    %v3268 = vunpack.c.l.b16 %v3005
    %v3269 = vunpack.c.l.b16 %v3006
    %v3270 = vunpack.c.l.b16 %v3007
    %v3271 = vunpack.c.l.b16 %v3008
    %v3272 = vunpack.c.l.b16 %v3009
    %v3273 = vunpack.c.l.b16 %v3010
    %v3274 = vunpack.c.l.b16 %v3011
    %v3275 = vunpack.c.l.b16 %v3012
    %v3276 = vunpack.c.l.b16 %v3013
    %v3277 = vunpack.c.l.b16 %v3014
    %v3278 = vunpack.c.l.b16 %v3015
    %v3279 = vunpack.c.l.b16 %v3016
    %v3280 = vunpack.c.l.b16 %v3017
    %v3281 = vunpack.c.l.b16 %v3018
    %v3282 = vunpack.c.l.b16 %v3019
    %v3283 = vunpack.c.l.b16 %v3020
    %v3284 = vunpack.c.l.b16 %v3021
    %v3285 = vunpack.c.l.b16 %v3022
    %v3286 = vunpack.c.l.b16 %v3023
    %v3287 = vunpack.c.l.b16 %v3024
    %v3288 = vunpack.c.l.b16 %v3025
    %v3289 = vunpack.c.l.b16 %v3026
    %v3290 = vunpack.c.l.b16 %v3027
    %v3291 = vpack.c.b16 %v3164, %v3163
    %v3292 = vpack.c.b16 %v3166, %v3165
    %v3293 = vpack.c.b16 %v3168, %v3167
    %v3294 = vpack.c.b16 %v3170, %v3169
    %v3295 = vpack.c.b16 %v3172, %v3171
    %v3296 = vpack.c.b16 %v3174, %v3173
    %v3297 = vpack.c.b16 %v3176, %v3175
    %v3298 = vpack.c.b16 %v3178, %v3177
    %v3299 = vpack.c.b16 %v3180, %v3179
    %v3300 = vpack.c.b16 %v3182, %v3181
    %v3301 = vpack.c.b16 %v3184, %v3183
    %v3302 = vpack.c.b16 %v3186, %v3185
    %v3303 = vpack.c.b16 %v3188, %v3187
    %v3304 = vpack.c.b16 %v3190, %v3189
    %v3305 = vpack.c.b16 %v3192, %v3191
    %v3306 = vpack.c.b16 %v3194, %v3193
    %v3307 = vpack.c.b16 %v3196, %v3195
    %v3308 = vpack.c.b16 %v3198, %v3197
    %v3309 = vpack.c.b16 %v3200, %v3199
    %v3310 = vpack.c.b16 %v3202, %v3201
    %v3311 = vpack.c.b16 %v3204, %v3203
    %v3312 = vpack.c.b16 %v3206, %v3205
    %v3313 = vpack.c.b16 %v3208, %v3207
    %v3314 = vpack.c.b16 %v3210, %v3209
    %v3315 = vpack.c.b16 %v3212, %v3211
    %v3316 = vpack.c.b16 %v3214, %v3213
    %v3317 = vpack.c.b16 %v3216, %v3215
    %v3318 = vpack.c.b16 %v3218, %v3217
    %v3319 = vpack.c.b16 %v3220, %v3219
    %v3320 = vpack.c.b16 %v3222, %v3221
    %v3321 = vpack.c.b16 %v3224, %v3223
    %v3322 = vpack.c.b16 %v3226, %v3225
    %v3323 = vpack.c.b16 %v3228, %v3227
    %v3324 = vpack.c.b16 %v3230, %v3229
    %v3325 = vpack.c.b16 %v3232, %v3231
    %v3326 = vpack.c.b16 %v3234, %v3233
    %v3327 = vpack.c.b16 %v3236, %v3235
    %v3328 = vpack.c.b16 %v3238, %v3237
    %v3329 = vpack.c.b16 %v3240, %v3239
    %v3330 = vpack.c.b16 %v3242, %v3241
    %v3331 = vpack.c.b16 %v3244, %v3243
    %v3332 = vpack.c.b16 %v3246, %v3245
    %v3333 = vpack.c.b16 %v3248, %v3247
    %v3334 = vpack.c.b16 %v3250, %v3249
    %v3335 = vpack.c.b16 %v3252, %v3251
    %v3336 = vpack.c.b16 %v3254, %v3253
    %v3337 = vpack.c.b16 %v3256, %v3255
    %v3338 = vpack.c.b16 %v3258, %v3257
    %v3339 = vpack.c.b16 %v3260, %v3259
    %v3340 = vpack.c.b16 %v3262, %v3261
    %v3341 = vpack.c.b16 %v3264, %v3263
    %v3342 = vpack.c.b16 %v3266, %v3265
    %v3343 = vpack.c.b16 %v3268, %v3267
    %v3344 = vpack.c.b16 %v3270, %v3269
    %v3345 = vpack.c.b16 %v3272, %v3271
    %v3346 = vpack.c.b16 %v3274, %v3273
    %v3347 = vpack.c.b16 %v3276, %v3275
    %v3348 = vpack.c.b16 %v3278, %v3277
    %v3349 = vpack.c.b16 %v3280, %v3279
    %v3350 = vpack.c.b16 %v3282, %v3281
    %v3351 = vpack.c.b16 %v3284, %v3283
    %v3352 = vpack.c.b16 %v3286, %v3285
    %v3353 = vpack.c.b16 %v3288, %v3287
    %v3354 = vpack.c.b16 %v3290, %v3289
    %3419 = vmatprep.subr.bf16.mxu0 0
    %3420 = vmatpush1.bf16.msra.mxu0 %v3298
    %3421 = vmatprep.subr.bf16.mxu0 0
    %3422 = vmatpush1.bf16.msra.mxu0 %v3297
    %3423 = vmatprep.subr.bf16.mxu0 0
    %3424 = vmatpush1.bf16.msra.mxu0 %v3296
    %3425 = vmatprep.subr.bf16.mxu0 0
    %3426 = vmatpush1.bf16.msra.mxu0 %v3295
    %3427 = vmatprep.subr.bf16.mxu0 0
    %3428 = vmatpush1.bf16.msra.mxu0 %v3294
    %3429 = vmatprep.subr.bf16.mxu0 0
    %3430 = vmatpush1.bf16.msra.mxu0 %v3293
    %3431 = vmatprep.subr.bf16.mxu0 0
    %3432 = vmatpush1.bf16.msra.mxu0 %v3292
    %3433 = vmatprep.subr.bf16.mxu0 0
    %3434 = vmatpush1.bf16.msra.mxu0 %v3291
    %3435 = vmatprep.subr.bf16.mxu0 0
    %3436 = vmatpush2.bf16.msra.mxu0 %v3306
    %3437 = vmatprep.subr.bf16.mxu0 0
    %3438 = vmatpush2.bf16.msra.mxu0 %v3305
    %3439 = vmatprep.subr.bf16.mxu0 0
    %3440 = vmatpush2.bf16.msra.mxu0 %v3304
    %3441 = vmatprep.subr.bf16.mxu0 0
    %3442 = vmatpush2.bf16.msra.mxu0 %v3303
    %3443 = vmatprep.subr.bf16.mxu0 0
    %3444 = vmatpush2.bf16.msra.mxu0 %v3302
    %3445 = vmatprep.subr.bf16.mxu0 0
    %3446 = vmatpush2.bf16.msra.mxu0 %v3301
    %3447 = vmatprep.subr.bf16.mxu0 0
    %3448 = vmatpush2.bf16.msra.mxu0 %v3300
    %3449 = vmatprep.subr.bf16.mxu0 0
    %3450 = vmatpush2.bf16.msra.mxu0 %v3299
    %3451 = vmatprep.mubr.bf16.mxu0 %v2893
    %3452 = vmatmul.mubr.bf16.gmra.mxu0 %v2892
    %v3453 = vpop.f32.mrf.mxu0
    %v3454 = vadd.f32 %v3033, %v3453
    %v3455 = vpop.f32.mrf.mxu0
    %v3456 = vpop.f32.mrf.mxu0
    %v3457 = vpop.f32.mrf.mxu0
    %3458 = vdwg.mxu0
    %3459 = vmatprep.subr.bf16.mxu0 0
    %3460 = vmatpush1.bf16.msra.mxu0 %v3314
    %3461 = vmatprep.subr.bf16.mxu0 0
    %3462 = vmatpush1.bf16.msra.mxu0 %v3313
    %3463 = vmatprep.subr.bf16.mxu0 0
    %3464 = vmatpush1.bf16.msra.mxu0 %v3312
    %3465 = vmatprep.subr.bf16.mxu0 0
    %3466 = vmatpush1.bf16.msra.mxu0 %v3311
    %3467 = vmatprep.subr.bf16.mxu0 0
    %3468 = vmatpush1.bf16.msra.mxu0 %v3310
    %3469 = vmatprep.subr.bf16.mxu0 0
    %3470 = vmatpush1.bf16.msra.mxu0 %v3309
    %3471 = vmatprep.subr.bf16.mxu0 0
    %3472 = vmatpush1.bf16.msra.mxu0 %v3308
    %3473 = vmatprep.subr.bf16.mxu0 0
    %3474 = vmatpush1.bf16.msra.mxu0 %v3307
    %3475 = vmatprep.subr.bf16.mxu0 0
    %3476 = vmatpush2.bf16.msra.mxu0 %v3322
    %3477 = vmatprep.subr.bf16.mxu0 0
    %3478 = vmatpush2.bf16.msra.mxu0 %v3321
    %3479 = vmatprep.subr.bf16.mxu0 0
    %3480 = vmatpush2.bf16.msra.mxu0 %v3320
    %3481 = vmatprep.subr.bf16.mxu0 0
    %3482 = vmatpush2.bf16.msra.mxu0 %v3319
    %3483 = vmatprep.subr.bf16.mxu0 0
    %3484 = vmatpush2.bf16.msra.mxu0 %v3318
    %3485 = vmatprep.subr.bf16.mxu0 0
    %3486 = vmatpush2.bf16.msra.mxu0 %v3317
    %3487 = vmatprep.subr.bf16.mxu0 0
    %3488 = vmatpush2.bf16.msra.mxu0 %v3316
    %3489 = vmatprep.subr.bf16.mxu0 0
    %3490 = vmatpush2.bf16.msra.mxu0 %v3315
    %3491 = vmatprep.mubr.bf16.mxu0 %v2895
    %3492 = vmatmul.mubr.bf16.gmra.mxu0 %v2894
    %v3493 = vpop.f32.mrf.mxu0
    %v3494 = vadd.f32 %v3454, %v3493
    %v3495 = vpop.f32.mrf.mxu0
    %v3496 = vpop.f32.mrf.mxu0
    %v3497 = vpop.f32.mrf.mxu0
    %3498 = vdwg.mxu0
    %3499 = vmatprep.subr.bf16.mxu0 0
    %3500 = vmatpush1.bf16.msra.mxu0 %v3330
    %3501 = vmatprep.subr.bf16.mxu0 0
    %3502 = vmatpush1.bf16.msra.mxu0 %v3329
    %3503 = vmatprep.subr.bf16.mxu0 0
    %3504 = vmatpush1.bf16.msra.mxu0 %v3328
    %3505 = vmatprep.subr.bf16.mxu0 0
    %3506 = vmatpush1.bf16.msra.mxu0 %v3327
    %3507 = vmatprep.subr.bf16.mxu0 0
    %3508 = vmatpush1.bf16.msra.mxu0 %v3326
    %3509 = vmatprep.subr.bf16.mxu0 0
    %3510 = vmatpush1.bf16.msra.mxu0 %v3325
    %3511 = vmatprep.subr.bf16.mxu0 0
    %3512 = vmatpush1.bf16.msra.mxu0 %v3324
    %3513 = vmatprep.subr.bf16.mxu0 0
    %3514 = vmatpush1.bf16.msra.mxu0 %v3323
    %3515 = vmatprep.subr.bf16.mxu0 0
    %3516 = vmatpush2.bf16.msra.mxu0 %v3338
    %3517 = vmatprep.subr.bf16.mxu0 0
    %3518 = vmatpush2.bf16.msra.mxu0 %v3337
    %3519 = vmatprep.subr.bf16.mxu0 0
    %3520 = vmatpush2.bf16.msra.mxu0 %v3336
    %3521 = vmatprep.subr.bf16.mxu0 0
    %3522 = vmatpush2.bf16.msra.mxu0 %v3335
    %3523 = vmatprep.subr.bf16.mxu0 0
    %3524 = vmatpush2.bf16.msra.mxu0 %v3334
    %3525 = vmatprep.subr.bf16.mxu0 0
    %3526 = vmatpush2.bf16.msra.mxu0 %v3333
    %3527 = vmatprep.subr.bf16.mxu0 0
    %3528 = vmatpush2.bf16.msra.mxu0 %v3332
    %3529 = vmatprep.subr.bf16.mxu0 0
    %3530 = vmatpush2.bf16.msra.mxu0 %v3331
    %3531 = vmatprep.mubr.bf16.mxu0 %v2897
    %3532 = vmatmul.mubr.bf16.gmra.mxu0 %v2896
    %v3533 = vpop.f32.mrf.mxu0
    %v3534 = vadd.f32 %v3494, %v3533
    %v3535 = vpop.f32.mrf.mxu0
    %v3536 = vpop.f32.mrf.mxu0
    %v3537 = vpop.f32.mrf.mxu0
    %3538 = vdwg.mxu0
    %3539 = vmatprep.subr.bf16.mxu0 0
    %3540 = vmatpush1.bf16.msra.mxu0 %v3346
    %3541 = vmatprep.subr.bf16.mxu0 0
    %3542 = vmatpush1.bf16.msra.mxu0 %v3345
    %3543 = vmatprep.subr.bf16.mxu0 0
    %3544 = vmatpush1.bf16.msra.mxu0 %v3344
    %3545 = vmatprep.subr.bf16.mxu0 0
    %3546 = vmatpush1.bf16.msra.mxu0 %v3343
    %3547 = vmatprep.subr.bf16.mxu0 0
    %3548 = vmatpush1.bf16.msra.mxu0 %v3342
    %3549 = vmatprep.subr.bf16.mxu0 0
    %3550 = vmatpush1.bf16.msra.mxu0 %v3341
    %3551 = vmatprep.subr.bf16.mxu0 0
    %3552 = vmatpush1.bf16.msra.mxu0 %v3340
    %3553 = vmatprep.subr.bf16.mxu0 0
    %3554 = vmatpush1.bf16.msra.mxu0 %v3339
    %3555 = vmatprep.subr.bf16.mxu0 0
    %3556 = vmatpush2.bf16.msra.mxu0 %v3354
    %3557 = vmatprep.subr.bf16.mxu0 0
    %3558 = vmatpush2.bf16.msra.mxu0 %v3353
    %3559 = vmatprep.subr.bf16.mxu0 0
    %3560 = vmatpush2.bf16.msra.mxu0 %v3352
    %3561 = vmatprep.subr.bf16.mxu0 0
    %3562 = vmatpush2.bf16.msra.mxu0 %v3351
    %3563 = vmatprep.subr.bf16.mxu0 0
    %3564 = vmatpush2.bf16.msra.mxu0 %v3350
    %3565 = vmatprep.subr.bf16.mxu0 0
    %3566 = vmatpush2.bf16.msra.mxu0 %v3349
    %3567 = vmatprep.subr.bf16.mxu0 0
    %3568 = vmatpush2.bf16.msra.mxu0 %v3348
    %3569 = vmatprep.subr.bf16.mxu0 0
    %3570 = vmatpush2.bf16.msra.mxu0 %v3347
    %3571 = vmatprep.mubr.bf16.mxu0 %v2899
    %3572 = vmatmul.mubr.bf16.gmra.mxu0 %v2898
    %v3573 = vpop.f32.mrf.mxu0
    %v3574 = vadd.f32 %v3534, %v3573
    %v3575 = vpop.f32.mrf.mxu0
    %v3576 = vpop.f32.mrf.mxu0
    %v3577 = vpop.f32.mrf.mxu0
    %3578 = vdwg.mxu0
    %v3579 = vmul.f32 %v3574, 0.2
    %v3580 = vmax.f32 %v3574, %v3579
    %v3581 = vpack.c.bf16 %v3580, %v3580
    %v3582 = vld [vmem:[#allocation16] sm:$0xf]
    %v3583 = vld [vmem:[#allocation16 + $0x4] sm:$0xf]
    %v3584 = vld [vmem:[#allocation16 + $0x8] sm:$0xf]
    %v3585 = vld [vmem:[#allocation16 + $0xc] sm:$0xf]
    %v3586 = vld [vmem:[#allocation16 + $0x10] sm:$0xf]
    %v3587 = vld [vmem:[#allocation16 + $0x14] sm:$0xf]
    %v3588 = vld [vmem:[#allocation16 + $0x18] sm:$0xf]
    %v3589 = vld [vmem:[#allocation16 + $0x1c] sm:$0xf]
    %v3590 = vld [vmem:[#allocation16 + $0x20] sm:$0xf]
    %v3591 = vld [vmem:[#allocation16 + $0x24] sm:$0xf]
    %v3592 = vld [vmem:[#allocation16 + $0x28] sm:$0xf]
    %v3593 = vld [vmem:[#allocation16 + $0x2c] sm:$0xf]
    %v3594 = vld [vmem:[#allocation16 + $0x30] sm:$0xf]
    %v3595 = vld [vmem:[#allocation16 + $0x34] sm:$0xf]
    %v3596 = vld [vmem:[#allocation16 + $0x38] sm:$0xf]
    %v3597 = vld [vmem:[#allocation16 + $0x3c] sm:$0xf]
    %v3598 = vld [vmem:[%s14] sm:$0x1]
    %v3600 = vlaneseq
    %v3601 = vshrl.u32 %v3600, 7
    %v3602 = vsub.s32 0, %v3601
    %v3603 = vrot.slane %v3598, %v3602
    %v3621 = vunpack.c.l.b16 %v3582
    %v3622 = vunpack.c.l.b16 %v3583
    %v3623 = vunpack.c.l.b16 %v3584
    %v3624 = vunpack.c.l.b16 %v3585
    %v3625 = vunpack.c.l.b16 %v3586
    %v3626 = vunpack.c.l.b16 %v3587
    %v3627 = vunpack.c.l.b16 %v3588
    %v3628 = vunpack.c.l.b16 %v3589
    %v3629 = vunpack.c.l.b16 %v3590
    %v3630 = vunpack.c.l.b16 %v3591
    %v3631 = vunpack.c.l.b16 %v3592
    %v3632 = vunpack.c.l.b16 %v3593
    %v3633 = vunpack.c.l.b16 %v3594
    %v3634 = vunpack.c.l.b16 %v3595
    %v3635 = vunpack.c.l.b16 %v3596
    %v3636 = vunpack.c.l.b16 %v3597
    %v3637 = vpack.c.b16 %v3622, %v3621
    %v3638 = vpack.c.b16 %v3624, %v3623
    %v3639 = vpack.c.b16 %v3626, %v3625
    %v3640 = vpack.c.b16 %v3628, %v3627
    %v3641 = vpack.c.b16 %v3630, %v3629
    %v3642 = vpack.c.b16 %v3632, %v3631
    %v3643 = vpack.c.b16 %v3634, %v3633
    %v3644 = vpack.c.b16 %v3636, %v3635
    %3653 = vmatprep.subr.bf16.mxu0 0
    %3654 = vmatpush1.bf16.msra.mxu0 %v3644
    %3655 = vmatprep.subr.bf16.mxu0 0
    %3656 = vmatpush1.bf16.msra.mxu0 %v3643
    %3657 = vmatprep.subr.bf16.mxu0 0
    %3658 = vmatpush1.bf16.msra.mxu0 %v3642
    %3659 = vmatprep.subr.bf16.mxu0 0
    %3660 = vmatpush1.bf16.msra.mxu0 %v3641
    %3661 = vmatprep.subr.bf16.mxu0 0
    %3662 = vmatpush1.bf16.msra.mxu0 %v3640
    %3663 = vmatprep.subr.bf16.mxu0 0
    %3664 = vmatpush1.bf16.msra.mxu0 %v3639
    %3665 = vmatprep.subr.bf16.mxu0 0
    %3666 = vmatpush1.bf16.msra.mxu0 %v3638
    %3667 = vmatprep.subr.bf16.mxu0 0
    %3668 = vmatpush1.bf16.msra.mxu0 %v3637
    %3669 = vmatprep.subr.bf16.mxu0 0
    %3670 = vmatpush2.bf16.msra.mxu0 0
    %3671 = vmatprep.subr.bf16.mxu0 0
    %3672 = vmatpush2.bf16.msra.mxu0 0
    %3673 = vmatprep.subr.bf16.mxu0 0
    %3674 = vmatpush2.bf16.msra.mxu0 0
    %3675 = vmatprep.subr.bf16.mxu0 0
    %3676 = vmatpush2.bf16.msra.mxu0 0
    %3677 = vmatprep.subr.bf16.mxu0 0
    %3678 = vmatpush2.bf16.msra.mxu0 0
    %3679 = vmatprep.subr.bf16.mxu0 0
    %3680 = vmatpush2.bf16.msra.mxu0 0
    %3681 = vmatprep.subr.bf16.mxu0 0
    %3682 = vmatpush2.bf16.msra.mxu0 0
    %3683 = vmatprep.subr.bf16.mxu0 0
    %3684 = vmatpush2.bf16.msra.mxu0 0
    %3685 = vmatprep.mubr.bf16.mxu0 0
    %3686 = vmatmul.mubr.bf16.gmra.mxu0 %v3581
    %v3687 = vpop.f32.mrf.mxu0
    %v3688 = vadd.f32 %v3603, %v3687
    %v3689 = vpop.f32.mrf.mxu0
    %v3690 = vpop.f32.mrf.mxu0
    %v3691 = vpop.f32.mrf.mxu0
    %3692 = vdwg.mxu0
    %3693 = vst [vmem:[#allocation17] sm:$0xff] %v3688
    // Predicated region
    $region98: #{tpu_custom_call.1} parent=1 // pred_check
      _
    $region99: #{tpu_custom_call.1} parent=1 // pred_check_branch
      %3695 = sbr.rel (0) target = $region101
    $region100: #{tpu_custom_call.1} parent=1 // pred_region
      %s3697 = ssub.s32 128, 128
      %3698 = vsyncadd [#allocation4], %s3697
      %s3700 = sshll.u32 [#allocation17], 4
      %s3701 = int_to_ptr.vmem [resolvable:$true] %s3700
      %3703 = dma.vmem_to_hbm [thread:$0]  %s3701, 128, %s15, [#allocation4]
    $region101: #{tpu_custom_call.1} parent=1 // pred_fallthru
      _
    // Predicated region
    $region102: #{tpu_custom_call.1} parent=1 // pred_check
      _
    $region103: #{tpu_custom_call.1} parent=1 // pred_check_branch
      %3705 = sbr.rel (0) target = $region105
    $region104: #{tpu_custom_call.1} parent=1 // pred_region
      %3706 = dma.done [#allocation4], 128
    $region105: #{tpu_custom_call.1} parent=1 // pred_fallthru
      _
    %3707 = vsyncpa [#allocation3], 1
    %3708 = vsyncpa [#allocation6], 1
    %3709 = vsyncpa [#allocation9], 1
    %3710 = vsyncpa [#allocation12], 1
    %3711 = vsyncpa [#allocation15], 1
    %3712 = vsyncpa [#allocation4], 1

</llo_original>
